<compile_context>
chip_gen: v7x
topology: tpu7x:2x2x1
jax: 0.10.0
libtpu: 0.0.40
codegen_flags: <defaults>
</compile_context>

<pallas_src>
import jax
import jax.numpy as jnp
import numpy as np
from jax.experimental import pallas as pl
from jax.experimental.pallas import tpu as pltpu

EPS = 2e-5  # matches nn.BatchNorm2d(..., eps=2e-05) in the module spec


# ---------------------------------------------------------------------------
# Generation-aware compiler params
# ---------------------------------------------------------------------------
def _vmem_limit_bytes():
    try:
        info = pltpu.get_tpu_info()
        cap = getattr(info, "vmem_capacity_bytes", None)
        if cap:
            return int(min(cap * 3 // 4, 100 * 1024 * 1024))
    except Exception:
        pass
    return 64 * 1024 * 1024


def _compiler_params():
    return pltpu.CompilerParams(
        dimension_semantics=("parallel", "parallel"),
        vmem_limit_bytes=_vmem_limit_bytes(),
    )


def _num_strips(h2):
    for s in (4, 2, 1):
        if h2 % (8 * s) == 0:
            return s
    return 1


# ---------------------------------------------------------------------------
# Wrapper-side weight packing (pure index plumbing; numpy at trace time)
# ---------------------------------------------------------------------------
def _pack_conv1_cols(w1, W, Cin, Cout):
    """w1 (3,3,Cin,Cout) HWIO -> (3, W*Cin, 2W*Cout): column 2x upsample +
    SAME pad + 3x3-conv column taps, expressed in the (w*c) lane layout."""
    W2 = 2 * W
    dw = np.arange(3)[:, None]
    c = np.arange(W2)[None, :]
    src = c + dw - 1                          # column in the upsampled grid
    valid = (src >= 0) & (src < W2)
    wi = np.where(valid, src // 2, 0)         # low-res source column
    sel = np.zeros((3, W, W2), np.float32)
    d_idx, c_idx = np.nonzero(valid)
    sel[d_idx, wi[d_idx, c_idx], c_idx] = 1.0
    colw = jnp.einsum("dwc,hdio->hwico", jnp.asarray(sel), w1)
    return colw.reshape(3, W * Cin, W2 * Cout)


def _pack_conv2_cols(w2, Wd, C):
    """w2 (3,3,C,C) -> (3, Wd*C, Wd*C): SAME-pad 3x3-conv column taps in the
    (w*c) lane layout (banded block-Toeplitz weight)."""
    dw = np.arange(3)[:, None]
    c = np.arange(Wd)[None, :]
    src = c + dw - 1
    valid = (src >= 0) & (src < Wd)
    cs = np.where(valid, src, 0)
    sel = np.zeros((3, Wd, Wd), np.float32)
    d_idx, c_idx = np.nonzero(valid)
    sel[d_idx, cs[d_idx, c_idx], c_idx] = 1.0
    colw = jnp.einsum("dsc,hdio->hsico", jnp.asarray(sel), w2)
    return colw.reshape(3, Wd * C, Wd * C)


def _pack_shortcut_cols(w_sc, W, Cin, Cout):
    """w_sc (Cin,Cout) -> (W*Cin, 2W*Cout): 1x1 conv fused with column upsample."""
    W2 = 2 * W
    sel = (np.arange(W2)[None, :] // 2 == np.arange(W)[:, None]).astype(np.float32)
    m = jnp.einsum("wc,io->wico", jnp.asarray(sel), w_sc)
    return m.reshape(W * Cin, W2 * Cout)


def _row_sel_up(H):
    """(3, 2H, H): RowSel[dh, r, hi]=1 iff conv row r+dh maps to low-res row hi
    after 2x row upsample + 1-row zero pad."""
    H2 = 2 * H
    dh = np.arange(3)[:, None, None]
    r = np.arange(H2)[None, :, None]
    hi = np.arange(H)[None, None, :]
    src = r + dh - 1
    return (((src >= 0) & (src < H2)) & (src // 2 == hi)).astype(np.float32)


def _row_shift(Hd):
    """(3, Hd, Hd): RowShift[dh, r, rs]=1 iff rs == r+dh-1 (SAME row pad)."""
    dh = np.arange(3)[:, None, None]
    r = np.arange(Hd)[None, :, None]
    rs = np.arange(Hd)[None, None, :]
    src = r + dh - 1
    return (((src >= 0) & (src < Hd)) & (src == rs)).astype(np.float32)


def _row_up(H):
    """(2H, H): nearest 2x row upsample, out[r] = in[r//2]."""
    return (np.arange(2 * H)[:, None] // 2 == np.arange(H)[None, :]).astype(np.float32)


# ---------------------------------------------------------------------------
# Pallas kernels
# ---------------------------------------------------------------------------
def conv1_kernel(x_ref, sc_ref, sh_ref, rowsel_ref, colw_ref, brow_ref,
                 y_ref, stat_ref):
    """CBN1 affine + ReLU + fused (2x upsample + pad + 3x3 conv) for one
    row-strip of one sample, plus fused partial CBN2 statistics.

    Per kernel-row dh:  y1_strip += (RowSel[dh] @ a) @ ColW1[dh]
    All operands/outputs are lane-dense; no activation reshapes in-kernel.
    """
    a = jnp.maximum(x_ref[0] * sc_ref[0] + sh_ref[0], 0.0)        # (H, W*Cin) f32
    rs, w2c = y_ref.shape[1], y_ref.shape[2]
    acc = jnp.zeros((rs, w2c), jnp.float32)
    for dh in range(3):                                           # static unroll
        rows = jnp.dot(rowsel_ref[dh], a,
                       preferred_element_type=jnp.float32)        # (rs, W*Cin)
        acc = acc + jnp.dot(rows.astype(jnp.bfloat16), colw_ref[dh],
                            preferred_element_type=jnp.float32)   # (rs, 2W*Cout)
    y = acc + brow_ref[...]
    y_ref[...] = y[None]
    # Fused CBN2 partial stats (per (w, cout) lane; folded per-channel in XLA).
    s = jnp.sum(y, axis=0, keepdims=True)
    q = jnp.sum(y * y, axis=0, keepdims=True)
    stat_ref[...] = jnp.concatenate([s, q], axis=0)[None, None]


def conv2_kernel(y_ref, x_ref, sc_ref, sh_ref, rowshift_ref, colw_ref,
                 rowup_ref, wsc_ref, brow_ref, o_ref):
    """CBN2 affine + ReLU + (pad + 3x3 conv) + fused low-res 1x1 shortcut
    (upsampled via selection matmuls) + residual add, one row-strip."""
    z = jnp.maximum(y_ref[0] * sc_ref[0] + sh_ref[0], 0.0)        # (2H, 2W*Cout) f32
    rs, w2c = o_ref.shape[1], o_ref.shape[2]
    acc = jnp.zeros((rs, w2c), jnp.float32)
    for dh in range(3):
        rows = jnp.dot(rowshift_ref[dh], z,
                       preferred_element_type=jnp.float32)        # (rs, 2W*Cout)
        acc = acc + jnp.dot(rows.astype(jnp.bfloat16), colw_ref[dh],
                            preferred_element_type=jnp.float32)
    # Shortcut: 1x1 conv commutes with nearest upsample -> compute at low res,
    # upsample with the RowUp / column-upsampled Wsc operators.
    xs = jnp.dot(rowup_ref[...], x_ref[0],
                 preferred_element_type=jnp.float32)              # (rs, W*Cin)
    acc = acc + jnp.dot(xs.astype(jnp.bfloat16), wsc_ref[...],
                        preferred_element_type=jnp.float32)
    o_ref[...] = (acc + brow_ref[...])[None]


# ---------------------------------------------------------------------------
# pallas_call wrappers
# ---------------------------------------------------------------------------
def conv1_call(x_rows, sc1, sh1, rowsel, colw, brow, *, strips):
    n, h, wcin = x_rows.shape
    h2 = rowsel.shape[1]
    w2cout = colw.shape[-1]
    rs = h2 // strips
    return pl.pallas_call(
        conv1_kernel,
        out_shape=(jax.ShapeDtypeStruct((n, h2, w2cout), jnp.float32),
                   jax.ShapeDtypeStruct((n, strips, 2, w2cout), jnp.float32)),
        grid=(n, strips),
        in_specs=[
            pl.BlockSpec((1, h, wcin), lambda i, s: (i, 0, 0)),
            pl.BlockSpec((1, 1, wcin), lambda i, s: (i, 0, 0)),
            pl.BlockSpec((1, 1, wcin), lambda i, s: (i, 0, 0)),
            pl.BlockSpec((3, rs, h), lambda i, s: (0, s, 0)),
            pl.BlockSpec((3, wcin, w2cout), lambda i, s: (0, 0, 0)),
            pl.BlockSpec((1, w2cout), lambda i, s: (0, 0)),
        ],
        out_specs=(
            pl.BlockSpec((1, rs, w2cout), lambda i, s: (i, s, 0)),
            pl.BlockSpec((1, 1, 2, w2cout), lambda i, s: (i, s, 0, 0)),
        ),
        compiler_params=_compiler_params(),
    )(x_rows, sc1, sh1, rowsel, colw, brow)


def conv2_call(y1, x_rows, sc2, sh2, rowshift, colw, rowup, wsc, brow, *, strips):
    n, h2, w2cout = y1.shape
    _, h, wcin = x_rows.shape
    rs = h2 // strips
    return pl.pallas_call(
        conv2_kernel,
        out_shape=jax.ShapeDtypeStruct((n, h2, w2cout), jnp.float32),
        grid=(n, strips),
        in_specs=[
            pl.BlockSpec((1, h2, w2cout), lambda i, s: (i, 0, 0)),
            pl.BlockSpec((1, h, wcin), lambda i, s: (i, 0, 0)),
            pl.BlockSpec((1, 1, w2cout), lambda i, s: (i, 0, 0)),
            pl.BlockSpec((1, 1, w2cout), lambda i, s: (i, 0, 0)),
            pl.BlockSpec((3, rs, h2), lambda i, s: (0, s, 0)),
            pl.BlockSpec((3, w2cout, w2cout), lambda i, s: (0, 0, 0)),
            pl.BlockSpec((rs, h), lambda i, s: (s, 0)),
            pl.BlockSpec((wcin, w2cout), lambda i, s: (0, 0)),
            pl.BlockSpec((1, w2cout), lambda i, s: (0, 0)),
        ],
        out_specs=pl.BlockSpec((1, rs, w2cout), lambda i, s: (i, s, 0)),
        compiler_params=_compiler_params(),
    )(y1, x_rows, sc2, sh2, rowshift, colw, rowup, wsc, brow)


# ---------------------------------------------------------------------------
# Forward
# ---------------------------------------------------------------------------
@jax.jit
def g_resblock_cond_forward(params, x_nchw, c):
    x = x_nchw.astype(jnp.float32)
    n, cin, h, w = x.shape
    cout = params["w1"].shape[-1]
    h2, w2 = 2 * h, 2 * w
    strips = _num_strips(h2)

    x_rows = jnp.transpose(x, (0, 2, 3, 1)).reshape(n, h, w * cin)  # (h, w*c) layout

    # --- CBN1 statistics: tiny reduction, plain XLA (no extra Pallas launch) ---
    xc = x_rows.reshape(n * h * w, cin)
    mean1 = jnp.mean(xc, axis=0)
    var1 = jnp.mean(jnp.square(xc - mean1), axis=0)       # biased, two-pass
    inv1 = jax.lax.rsqrt(var1 + EPS)
    scale1 = params["gamma1"][c] * inv1                   # (N, Cin)
    shift1 = params["beta1"][c] - mean1 * scale1
    sc1 = jnp.tile(scale1, (1, w)).reshape(n, 1, w * cin)
    sh1 = jnp.tile(shift1, (1, w)).reshape(n, 1, w * cin)

    # --- pack conv1 (upsample + pad + 3x3) into banded row/col operators ---
    colw1 = _pack_conv1_cols(params["w1"], w, cin, cout).astype(jnp.bfloat16)
    rowsel1 = jnp.asarray(_row_sel_up(h), jnp.float32)
    b1row = jnp.tile(params["b1"], w2).reshape(1, w2 * cout).astype(jnp.float32)

    y1, stats = conv1_call(x_rows, sc1, sh1, rowsel1, colw1, b1row, strips=strips)

    # --- CBN2 statistics from the fused per-strip partials (f32, consistent) ---
    cnt2 = n * h2 * w2
    tot = jnp.sum(stats, axis=(0, 1)).reshape(2, w2, cout).sum(axis=1)  # (2, Cout)
    mean2 = tot[0] / cnt2
    var2 = jnp.maximum(tot[1] / cnt2 - mean2 * mean2, 0.0)
    inv2 = jax.lax.rsqrt(var2 + EPS)
    scale2 = params["gamma2"][c] * inv2                   # (N, Cout)
    shift2 = params["beta2"][c] - mean2 * scale2
    sc2 = jnp.tile(scale2, (1, w2)).reshape(n, 1, w2 * cout)
    sh2 = jnp.tile(shift2, (1, w2)).reshape(n, 1, w2 * cout)

    # --- pack conv2 (pad + 3x3) and the upsampled 1x1 shortcut ---
    colw2 = _pack_conv2_cols(params["w2"], w2, cout).astype(jnp.bfloat16)
    rowshift2 = jnp.asarray(_row_shift(h2), jnp.float32)
    rowup = jnp.asarray(_row_up(h), jnp.float32)
    wscup = _pack_shortcut_cols(params["w_sc"], w, cin, cout).astype(jnp.bfloat16)
    btot = jnp.tile(params["b2"] + params["b_sc"], w2).reshape(1, w2 * cout)
    btot = btot.astype(jnp.float32)

    out_rows = conv2_call(y1, x_rows, sc2, sh2, rowshift2, colw2, rowup,
                          wscup, btot, strips=strips)
    out = out_rows.reshape(n, h2, w2, cout)
    return jnp.transpose(out, (0, 3, 1, 2)), c            # NCHW, matching PyTorch


# ---------------------------------------------------------------------------
# Pure-JAX reference (correctness check)
# ---------------------------------------------------------------------------
def _upsample2x(x_nhwc):
    return jnp.repeat(jnp.repeat(x_nhwc, 2, axis=1), 2, axis=2)


def ref_forward(params, x_nchw, c):
    x = jnp.transpose(x_nchw, (0, 2, 3, 1)).astype(jnp.float32)
    cin = x.shape[-1]
    cout = params["w1"].shape[-1]

    def cbn(z, gamma, beta):
        m = z.mean(axis=(0, 1, 2))
        v = z.var(axis=(0, 1, 2))
        zh = (z - m) / jnp.sqrt(v + EPS)
        return gamma[:, None, None, :] * zh + beta[:, None, None, :]

    def conv(z, wgt, b):
        return jax.lax.conv_general_dilated(
            z, wgt, (1, 1), "SAME",
            dimension_numbers=("NHWC", "HWIO", "NHWC")) + b

    hh = jax.nn.relu(cbn(x, params["gamma1"][c], params["beta1"][c]))
    hh = conv(_upsample2x(hh), params["w1"], params["b1"])
    hb = jax.nn.relu(cbn(hh, params["gamma2"][c], params["beta2"][c]))
    hb = conv(hb, params["w2"], params["b2"])
    scut = conv(_upsample2x(x), params["w_sc"].reshape(1, 1, cin, cout),
                params["b_sc"])
    out = hb + scut
    return jnp.transpose(out, (0, 3, 1, 2)), c


# ---------------------------------------------------------------------------
if __name__ == "__main__":
    in_dim, out_dim, num_classes = 4, 8, 5
    N, H, W = 2, 16, 16

    key = jax.random.PRNGKey(0)
    keys = jax.random.split(key, 12)
    params = {
        # ConditionalBatchNorm embeddings (gamma init 1, beta init 0; perturbed).
        "gamma1": 1.0 + 0.1 * jax.random.normal(keys[0], (num_classes, in_dim), jnp.float32),
        "beta1": 0.1 * jax.random.normal(keys[1], (num_classes, in_dim), jnp.float32),
        "gamma2": 1.0 + 0.1 * jax.random.normal(keys[2], (num_classes, out_dim), jnp.float32),
        "beta2": 0.1 * jax.random.normal(keys[3], (num_classes, out_dim), jnp.float32),
        # Conv weights in HWIO (= PyTorch OIHW transposed (2,3,1,0)).
        "w1": 0.1 * jax.random.normal(keys[4], (3, 3, in_dim, out_dim), jnp.float32),
        "b1": 0.1 * jax.random.normal(keys[5], (out_dim,), jnp.float32),
        "w2": 0.1 * jax.random.normal(keys[6], (3, 3, out_dim, out_dim), jnp.float32),
        "b2": 0.1 * jax.random.normal(keys[7], (out_dim,), jnp.float32),
        "w_sc": 0.1 * jax.random.normal(keys[8], (in_dim, out_dim), jnp.float32),
        "b_sc": 0.1 * jax.random.normal(keys[9], (out_dim,), jnp.float32),
    }

    x = jax.random.normal(keys[10], (N, in_dim, H, W), jnp.float32)   # NCHW
    c = jax.random.randint(keys[11], (N,), 0, num_classes, jnp.int32)

    out, c_out = g_resblock_cond_forward(params, x, c)
    out = jax.block_until_ready(out)
    assert out.shape == (N, out_dim, 2 * H, 2 * W), out.shape

    out_ref, _ = ref_forward(params, x, c)
    np.testing.assert_allclose(np.asarray(out), np.asarray(out_ref),
                               rtol=5e-2, atol=5e-2)

    print("KERNEL_OK")
</pallas_src>

<mosaic_0001>
module attributes {stable_mosaic.version = 11 : i64} {
  func.func @conv1_kernel(%arg0: i32, %arg1: i32, %arg2: memref<1x16x64xf32, #tpu.memory_space<vmem>>, %arg3: memref<1x1x64xf32, #tpu.memory_space<vmem>>, %arg4: memref<1x1x64xf32, #tpu.memory_space<vmem>>, %arg5: memref<3x8x16xf32, #tpu.memory_space<vmem>>, %arg6: memref<3x64x256xbf16, #tpu.memory_space<vmem>>, %arg7: memref<1x256xf32, #tpu.memory_space<vmem>>, %arg8: memref<1x8x256xf32, #tpu.memory_space<vmem>>, %arg9: memref<1x1x2x256xf32, #tpu.memory_space<vmem>>) attributes {dimension_semantics = [#tpu.dimension_semantics<parallel>, #tpu.dimension_semantics<parallel>], iteration_bounds = array<i64: 2, 4>, scalar_prefetch = 0 : i64, scratch_operands = 0 : i64, tpu.core_type = #tpu.core_type<tc>, window_params = [{transform_indices = @transform_0, window_bounds = array<i64: 1, 16, 64>}, {transform_indices = @transform_1, window_bounds = array<i64: 1, 1, 64>}, {transform_indices = @transform_2, window_bounds = array<i64: 1, 1, 64>}, {transform_indices = @transform_3, window_bounds = array<i64: 3, 8, 16>}, {pipeline_mode = #tpu.pipeline_mode<synchronous>, transform_indices = @transform_4, window_bounds = array<i64: 3, 64, 256>}, {pipeline_mode = #tpu.pipeline_mode<synchronous>, transform_indices = @transform_5, window_bounds = array<i64: 1, 256>}, {transform_indices = @transform_6, window_bounds = array<i64: 1, 8, 256>}, {transform_indices = @transform_7, window_bounds = array<i64: 1, 1, 2, 256>}]} {
    %c0 = arith.constant 0 : index
    %c0_0 = arith.constant 0 : index
    %c0_1 = arith.constant 0 : index
    %0 = vector.load %arg2[%c0, %c0_0, %c0_1] : memref<1x16x64xf32, #tpu.memory_space<vmem>>, vector<1x16x64xf32>
    %1 = vector.shape_cast %0 : vector<1x16x64xf32> to vector<16x64xf32>
    %c0_2 = arith.constant 0 : index
    %c0_3 = arith.constant 0 : index
    %c0_4 = arith.constant 0 : index
    %2 = vector.load %arg3[%c0_2, %c0_3, %c0_4] : memref<1x1x64xf32, #tpu.memory_space<vmem>>, vector<1x1x64xf32>
    %3 = vector.shape_cast %2 : vector<1x1x64xf32> to vector<1x64xf32>
    %4 = vector.broadcast %3 : vector<1x64xf32> to vector<16x64xf32>
    %5 = arith.mulf %1, %4 : vector<16x64xf32>
    %c0_5 = arith.constant 0 : index
    %c0_6 = arith.constant 0 : index
    %c0_7 = arith.constant 0 : index
    %6 = vector.load %arg4[%c0_5, %c0_6, %c0_7] : memref<1x1x64xf32, #tpu.memory_space<vmem>>, vector<1x1x64xf32>
    %7 = vector.shape_cast %6 : vector<1x1x64xf32> to vector<1x64xf32>
    %8 = vector.broadcast %7 : vector<1x64xf32> to vector<16x64xf32>
    %9 = arith.addf %5, %8 : vector<16x64xf32>
    %cst = arith.constant 0.000000e+00 : f32
    %10 = vector.broadcast %cst : f32 to vector<16x64xf32>
    %11 = arith.maximumf %9, %10 : vector<16x64xf32>
    %cst_8 = arith.constant 0.000000e+00 : f32
    %12 = vector.broadcast %cst_8 : f32 to vector<8x256xf32>
    %c0_9 = arith.constant 0 : index
    %c0_10 = arith.constant 0 : index
    %c0_11 = arith.constant 0 : index
    %13 = vector.load %arg5[%c0_9, %c0_10, %c0_11] : memref<3x8x16xf32, #tpu.memory_space<vmem>>, vector<1x8x16xf32>
    %14 = vector.shape_cast %13 : vector<1x8x16xf32> to vector<8x16xf32>
    %cst_12 = arith.constant dense<0.000000e+00> : vector<8x64xf32>
    %15 = tpu.matmul %14, %11, %cst_12 {dimension_numbers = #tpu.dot_dimension_numbers<[1], [0], [0], [1], [0, 0, 1, 1], [], []>} : vector<8x16xf32>, vector<16x64xf32>, vector<8x64xf32> -> vector<8x64xf32>
    %16 = arith.truncf %15 : vector<8x64xf32> to vector<8x64xbf16>
    %c0_13 = arith.constant 0 : index
    %c0_14 = arith.constant 0 : index
    %c0_15 = arith.constant 0 : index
    %17 = vector.load %arg6[%c0_13, %c0_14, %c0_15] : memref<3x64x256xbf16, #tpu.memory_space<vmem>>, vector<1x64x256xbf16>
    %18 = vector.shape_cast %17 : vector<1x64x256xbf16> to vector<64x256xbf16>
    %cst_16 = arith.constant dense<0.000000e+00> : vector<8x256xf32>
    %19 = tpu.matmul %16, %18, %cst_16 {dimension_numbers = #tpu.dot_dimension_numbers<[1], [0], [0], [1], [0, 0, 1, 1], [], []>} : vector<8x64xbf16>, vector<64x256xbf16>, vector<8x256xf32> -> vector<8x256xf32>
    %20 = arith.addf %12, %19 : vector<8x256xf32>
    %c1 = arith.constant 1 : index
    %c0_17 = arith.constant 0 : index
    %c0_18 = arith.constant 0 : index
    %21 = vector.load %arg5[%c1, %c0_17, %c0_18] : memref<3x8x16xf32, #tpu.memory_space<vmem>>, vector<1x8x16xf32>
    %22 = vector.shape_cast %21 : vector<1x8x16xf32> to vector<8x16xf32>
    %cst_19 = arith.constant dense<0.000000e+00> : vector<8x64xf32>
    %23 = tpu.matmul %22, %11, %cst_19 {dimension_numbers = #tpu.dot_dimension_numbers<[1], [0], [0], [1], [0, 0, 1, 1], [], []>} : vector<8x16xf32>, vector<16x64xf32>, vector<8x64xf32> -> vector<8x64xf32>
    %24 = arith.truncf %23 : vector<8x64xf32> to vector<8x64xbf16>
    %c1_20 = arith.constant 1 : index
    %c0_21 = arith.constant 0 : index
    %c0_22 = arith.constant 0 : index
    %25 = vector.load %arg6[%c1_20, %c0_21, %c0_22] : memref<3x64x256xbf16, #tpu.memory_space<vmem>>, vector<1x64x256xbf16>
    %26 = vector.shape_cast %25 : vector<1x64x256xbf16> to vector<64x256xbf16>
    %cst_23 = arith.constant dense<0.000000e+00> : vector<8x256xf32>
    %27 = tpu.matmul %24, %26, %cst_23 {dimension_numbers = #tpu.dot_dimension_numbers<[1], [0], [0], [1], [0, 0, 1, 1], [], []>} : vector<8x64xbf16>, vector<64x256xbf16>, vector<8x256xf32> -> vector<8x256xf32>
    %28 = arith.addf %20, %27 : vector<8x256xf32>
    %c2 = arith.constant 2 : index
    %c0_24 = arith.constant 0 : index
    %c0_25 = arith.constant 0 : index
    %29 = vector.load %arg5[%c2, %c0_24, %c0_25] : memref<3x8x16xf32, #tpu.memory_space<vmem>>, vector<1x8x16xf32>
    %30 = vector.shape_cast %29 : vector<1x8x16xf32> to vector<8x16xf32>
    %cst_26 = arith.constant dense<0.000000e+00> : vector<8x64xf32>
    %31 = tpu.matmul %30, %11, %cst_26 {dimension_numbers = #tpu.dot_dimension_numbers<[1], [0], [0], [1], [0, 0, 1, 1], [], []>} : vector<8x16xf32>, vector<16x64xf32>, vector<8x64xf32> -> vector<8x64xf32>
    %32 = arith.truncf %31 : vector<8x64xf32> to vector<8x64xbf16>
    %c2_27 = arith.constant 2 : index
    %c0_28 = arith.constant 0 : index
    %c0_29 = arith.constant 0 : index
    %33 = vector.load %arg6[%c2_27, %c0_28, %c0_29] : memref<3x64x256xbf16, #tpu.memory_space<vmem>>, vector<1x64x256xbf16>
    %34 = vector.shape_cast %33 : vector<1x64x256xbf16> to vector<64x256xbf16>
    %cst_30 = arith.constant dense<0.000000e+00> : vector<8x256xf32>
    %35 = tpu.matmul %32, %34, %cst_30 {dimension_numbers = #tpu.dot_dimension_numbers<[1], [0], [0], [1], [0, 0, 1, 1], [], []>} : vector<8x64xbf16>, vector<64x256xbf16>, vector<8x256xf32> -> vector<8x256xf32>
    %36 = arith.addf %28, %35 : vector<8x256xf32>
    %c0_31 = arith.constant 0 : index
    %c0_32 = arith.constant 0 : index
    %37 = vector.load %arg7[%c0_31, %c0_32] : memref<1x256xf32, #tpu.memory_space<vmem>>, vector<1x256xf32>
    %38 = vector.broadcast %37 : vector<1x256xf32> to vector<8x256xf32>
    %39 = arith.addf %36, %38 : vector<8x256xf32>
    %40 = vector.shape_cast %39 : vector<8x256xf32> to vector<1x8x256xf32>
    %c0_33 = arith.constant 0 : index
    %c0_34 = arith.constant 0 : index
    %c0_35 = arith.constant 0 : index
    %41 = vector.load %arg8[%c0_33, %c0_34, %c0_35] : memref<1x8x256xf32, #tpu.memory_space<vmem>>, vector<1x8x256xf32>
    tpu.vector_store %arg8[%c0_33, %c0_34, %c0_35], %40 {strides = array<i32>} : memref<1x8x256xf32, #tpu.memory_space<vmem>>, vector<1x8x256xf32>,
    %cst_36 = arith.constant dense<0.000000e+00> : vector<256xf32>
    %42 = vector.multi_reduction <add>, %39, %cst_36 [0] : vector<8x256xf32> to vector<256xf32>
    %43 = vector.shape_cast %42 : vector<256xf32> to vector<1x256xf32>
    %44 = arith.mulf %39, %39 : vector<8x256xf32>
    %cst_37 = arith.constant dense<0.000000e+00> : vector<256xf32>
    %45 = vector.multi_reduction <add>, %44, %cst_37 [0] : vector<8x256xf32> to vector<256xf32>
    %46 = vector.shape_cast %45 : vector<256xf32> to vector<1x256xf32>
    %47 = tpu.concatenate %43, %46 in 0 : vector<1x256xf32>, vector<1x256xf32> -> vector<2x256xf32>
    %48 = vector.shape_cast %47 : vector<2x256xf32> to vector<1x1x2x256xf32>
    %c0_38 = arith.constant 0 : index
    %c0_39 = arith.constant 0 : index
    %c0_40 = arith.constant 0 : index
    %c0_41 = arith.constant 0 : index
    %49 = vector.load %arg9[%c0_38, %c0_39, %c0_40, %c0_41] : memref<1x1x2x256xf32, #tpu.memory_space<vmem>>, vector<1x1x2x256xf32>
    tpu.vector_store %arg9[%c0_38, %c0_39, %c0_40, %c0_41], %48 {strides = array<i32>} : memref<1x1x2x256xf32, #tpu.memory_space<vmem>>, vector<1x1x2x256xf32>,
    return
  }
  func.func @transform_0(%arg0: i32, %arg1: i32) -> (i32, i32, i32) {
    %c0_i32 = arith.constant 0 : i32
    %c0_i32_0 = arith.constant 0 : i32
    %c0_i32_1 = arith.constant 0 : i32
    return %arg0, %c0_i32, %c0_i32_0 : i32, i32, i32
  }
  func.func @transform_1(%arg0: i32, %arg1: i32) -> (i32, i32, i32) {
    %c0_i32 = arith.constant 0 : i32
    %c0_i32_0 = arith.constant 0 : i32
    %c0_i32_1 = arith.constant 0 : i32
    return %arg0, %c0_i32, %c0_i32_0 : i32, i32, i32
  }
  func.func @transform_2(%arg0: i32, %arg1: i32) -> (i32, i32, i32) {
    %c0_i32 = arith.constant 0 : i32
    %c0_i32_0 = arith.constant 0 : i32
    %c0_i32_1 = arith.constant 0 : i32
    return %arg0, %c0_i32, %c0_i32_0 : i32, i32, i32
  }
  func.func @transform_3(%arg0: i32, %arg1: i32) -> (i32, i32, i32) {
    %c0_i32 = arith.constant 0 : i32
    %c0_i32_0 = arith.constant 0 : i32
    %c0_i32_1 = arith.constant 0 : i32
    return %c0_i32, %arg1, %c0_i32_0 : i32, i32, i32
  }
  func.func @transform_4(%arg0: i32, %arg1: i32) -> (i32, i32, i32) {
    %c0_i32 = arith.constant 0 : i32
    %c0_i32_0 = arith.constant 0 : i32
    %c0_i32_1 = arith.constant 0 : i32
    %c0_i32_2 = arith.constant 0 : i32
    return %c0_i32, %c0_i32_0, %c0_i32_1 : i32, i32, i32
  }
  func.func @transform_5(%arg0: i32, %arg1: i32) -> (i32, i32) {
    %c0_i32 = arith.constant 0 : i32
    %c0_i32_0 = arith.constant 0 : i32
    %c0_i32_1 = arith.constant 0 : i32
    return %c0_i32, %c0_i32_0 : i32, i32
  }
  func.func @transform_6(%arg0: i32, %arg1: i32) -> (i32, i32, i32) {
    %c0_i32 = arith.constant 0 : i32
    %c0_i32_0 = arith.constant 0 : i32
    return %arg0, %arg1, %c0_i32 : i32, i32, i32
  }
  func.func @transform_7(%arg0: i32, %arg1: i32) -> (i32, i32, i32, i32) {
    %c0_i32 = arith.constant 0 : i32
    %c0_i32_0 = arith.constant 0 : i32
    %c0_i32_1 = arith.constant 0 : i32
    return %arg0, %arg1, %c0_i32, %c0_i32_0 : i32, i32, i32, i32
  }
}

module attributes {stable_mosaic.version = 11 : i64} {
  func.func @conv2_kernel(%arg0: i32, %arg1: i32, %arg2: memref<1x32x256xf32, #tpu.memory_space<vmem>>, %arg3: memref<1x16x64xf32, #tpu.memory_space<vmem>>, %arg4: memref<1x1x256xf32, #tpu.memory_space<vmem>>, %arg5: memref<1x1x256xf32, #tpu.memory_space<vmem>>, %arg6: memref<3x8x32xf32, #tpu.memory_space<vmem>>, %arg7: memref<3x256x256xbf16, #tpu.memory_space<vmem>>, %arg8: memref<8x16xf32, #tpu.memory_space<vmem>>, %arg9: memref<64x256xbf16, #tpu.memory_space<vmem>>, %arg10: memref<1x256xf32, #tpu.memory_space<vmem>>, %arg11: memref<1x8x256xf32, #tpu.memory_space<vmem>>) attributes {dimension_semantics = [#tpu.dimension_semantics<parallel>, #tpu.dimension_semantics<parallel>], iteration_bounds = array<i64: 2, 4>, scalar_prefetch = 0 : i64, scratch_operands = 0 : i64, tpu.core_type = #tpu.core_type<tc>, window_params = [{transform_indices = @transform_0, window_bounds = array<i64: 1, 32, 256>}, {transform_indices = @transform_1, window_bounds = array<i64: 1, 16, 64>}, {transform_indices = @transform_2, window_bounds = array<i64: 1, 1, 256>}, {transform_indices = @transform_3, window_bounds = array<i64: 1, 1, 256>}, {transform_indices = @transform_4, window_bounds = array<i64: 3, 8, 32>}, {pipeline_mode = #tpu.pipeline_mode<synchronous>, transform_indices = @transform_5, window_bounds = array<i64: 3, 256, 256>}, {transform_indices = @transform_6, window_bounds = array<i64: 8, 16>}, {pipeline_mode = #tpu.pipeline_mode<synchronous>, transform_indices = @transform_7, window_bounds = array<i64: 64, 256>}, {pipeline_mode = #tpu.pipeline_mode<synchronous>, transform_indices = @transform_8, window_bounds = array<i64: 1, 256>}, {transform_indices = @transform_9, window_bounds = array<i64: 1, 8, 256>}]} {
    %c0 = arith.constant 0 : index
    %c0_0 = arith.constant 0 : index
    %c0_1 = arith.constant 0 : index
    %0 = vector.load %arg2[%c0, %c0_0, %c0_1] : memref<1x32x256xf32, #tpu.memory_space<vmem>>, vector<1x32x256xf32>
    %1 = vector.shape_cast %0 : vector<1x32x256xf32> to vector<32x256xf32>
    %c0_2 = arith.constant 0 : index
    %c0_3 = arith.constant 0 : index
    %c0_4 = arith.constant 0 : index
    %2 = vector.load %arg4[%c0_2, %c0_3, %c0_4] : memref<1x1x256xf32, #tpu.memory_space<vmem>>, vector<1x1x256xf32>
    %3 = vector.shape_cast %2 : vector<1x1x256xf32> to vector<1x256xf32>
    %4 = vector.broadcast %3 : vector<1x256xf32> to vector<32x256xf32>
    %5 = arith.mulf %1, %4 : vector<32x256xf32>
    %c0_5 = arith.constant 0 : index
    %c0_6 = arith.constant 0 : index
    %c0_7 = arith.constant 0 : index
    %6 = vector.load %arg5[%c0_5, %c0_6, %c0_7] : memref<1x1x256xf32, #tpu.memory_space<vmem>>, vector<1x1x256xf32>
    %7 = vector.shape_cast %6 : vector<1x1x256xf32> to vector<1x256xf32>
    %8 = vector.broadcast %7 : vector<1x256xf32> to vector<32x256xf32>
    %9 = arith.addf %5, %8 : vector<32x256xf32>
    %cst = arith.constant 0.000000e+00 : f32
    %10 = vector.broadcast %cst : f32 to vector<32x256xf32>
    %11 = arith.maximumf %9, %10 : vector<32x256xf32>
    %cst_8 = arith.constant 0.000000e+00 : f32
    %12 = vector.broadcast %cst_8 : f32 to vector<8x256xf32>
    %c0_9 = arith.constant 0 : index
    %c0_10 = arith.constant 0 : index
    %c0_11 = arith.constant 0 : index
    %13 = vector.load %arg6[%c0_9, %c0_10, %c0_11] : memref<3x8x32xf32, #tpu.memory_space<vmem>>, vector<1x8x32xf32>
    %14 = vector.shape_cast %13 : vector<1x8x32xf32> to vector<8x32xf32>
    %cst_12 = arith.constant dense<0.000000e+00> : vector<8x256xf32>
    %15 = tpu.matmul %14, %11, %cst_12 {dimension_numbers = #tpu.dot_dimension_numbers<[1], [0], [0], [1], [0, 0, 1, 1], [], []>} : vector<8x32xf32>, vector<32x256xf32>, vector<8x256xf32> -> vector<8x256xf32>
    %16 = arith.truncf %15 : vector<8x256xf32> to vector<8x256xbf16>
    %c0_13 = arith.constant 0 : index
    %c0_14 = arith.constant 0 : index
    %c0_15 = arith.constant 0 : index
    %17 = vector.load %arg7[%c0_13, %c0_14, %c0_15] : memref<3x256x256xbf16, #tpu.memory_space<vmem>>, vector<1x256x256xbf16>
    %18 = vector.shape_cast %17 : vector<1x256x256xbf16> to vector<256x256xbf16>
    %cst_16 = arith.constant dense<0.000000e+00> : vector<8x256xf32>
    %19 = tpu.matmul %16, %18, %cst_16 {dimension_numbers = #tpu.dot_dimension_numbers<[1], [0], [0], [1], [0, 0, 1, 1], [], []>} : vector<8x256xbf16>, vector<256x256xbf16>, vector<8x256xf32> -> vector<8x256xf32>
    %20 = arith.addf %12, %19 : vector<8x256xf32>
    %c1 = arith.constant 1 : index
    %c0_17 = arith.constant 0 : index
    %c0_18 = arith.constant 0 : index
    %21 = vector.load %arg6[%c1, %c0_17, %c0_18] : memref<3x8x32xf32, #tpu.memory_space<vmem>>, vector<1x8x32xf32>
    %22 = vector.shape_cast %21 : vector<1x8x32xf32> to vector<8x32xf32>
    %cst_19 = arith.constant dense<0.000000e+00> : vector<8x256xf32>
    %23 = tpu.matmul %22, %11, %cst_19 {dimension_numbers = #tpu.dot_dimension_numbers<[1], [0], [0], [1], [0, 0, 1, 1], [], []>} : vector<8x32xf32>, vector<32x256xf32>, vector<8x256xf32> -> vector<8x256xf32>
    %24 = arith.truncf %23 : vector<8x256xf32> to vector<8x256xbf16>
    %c1_20 = arith.constant 1 : index
    %c0_21 = arith.constant 0 : index
    %c0_22 = arith.constant 0 : index
    %25 = vector.load %arg7[%c1_20, %c0_21, %c0_22] : memref<3x256x256xbf16, #tpu.memory_space<vmem>>, vector<1x256x256xbf16>
    %26 = vector.shape_cast %25 : vector<1x256x256xbf16> to vector<256x256xbf16>
    %cst_23 = arith.constant dense<0.000000e+00> : vector<8x256xf32>
    %27 = tpu.matmul %24, %26, %cst_23 {dimension_numbers = #tpu.dot_dimension_numbers<[1], [0], [0], [1], [0, 0, 1, 1], [], []>} : vector<8x256xbf16>, vector<256x256xbf16>, vector<8x256xf32> -> vector<8x256xf32>
    %28 = arith.addf %20, %27 : vector<8x256xf32>
    %c2 = arith.constant 2 : index
    %c0_24 = arith.constant 0 : index
    %c0_25 = arith.constant 0 : index
    %29 = vector.load %arg6[%c2, %c0_24, %c0_25] : memref<3x8x32xf32, #tpu.memory_space<vmem>>, vector<1x8x32xf32>
    %30 = vector.shape_cast %29 : vector<1x8x32xf32> to vector<8x32xf32>
    %cst_26 = arith.constant dense<0.000000e+00> : vector<8x256xf32>
    %31 = tpu.matmul %30, %11, %cst_26 {dimension_numbers = #tpu.dot_dimension_numbers<[1], [0], [0], [1], [0, 0, 1, 1], [], []>} : vector<8x32xf32>, vector<32x256xf32>, vector<8x256xf32> -> vector<8x256xf32>
    %32 = arith.truncf %31 : vector<8x256xf32> to vector<8x256xbf16>
    %c2_27 = arith.constant 2 : index
    %c0_28 = arith.constant 0 : index
    %c0_29 = arith.constant 0 : index
    %33 = vector.load %arg7[%c2_27, %c0_28, %c0_29] : memref<3x256x256xbf16, #tpu.memory_space<vmem>>, vector<1x256x256xbf16>
    %34 = vector.shape_cast %33 : vector<1x256x256xbf16> to vector<256x256xbf16>
    %cst_30 = arith.constant dense<0.000000e+00> : vector<8x256xf32>
    %35 = tpu.matmul %32, %34, %cst_30 {dimension_numbers = #tpu.dot_dimension_numbers<[1], [0], [0], [1], [0, 0, 1, 1], [], []>} : vector<8x256xbf16>, vector<256x256xbf16>, vector<8x256xf32> -> vector<8x256xf32>
    %36 = arith.addf %28, %35 : vector<8x256xf32>
    %c0_31 = arith.constant 0 : index
    %c0_32 = arith.constant 0 : index
    %37 = vector.load %arg8[%c0_31, %c0_32] : memref<8x16xf32, #tpu.memory_space<vmem>>, vector<8x16xf32>
    %c0_33 = arith.constant 0 : index
    %c0_34 = arith.constant 0 : index
    %c0_35 = arith.constant 0 : index
    %38 = vector.load %arg3[%c0_33, %c0_34, %c0_35] : memref<1x16x64xf32, #tpu.memory_space<vmem>>, vector<1x16x64xf32>
    %39 = vector.shape_cast %38 : vector<1x16x64xf32> to vector<16x64xf32>
    %cst_36 = arith.constant dense<0.000000e+00> : vector<8x64xf32>
    %40 = tpu.matmul %37, %39, %cst_36 {dimension_numbers = #tpu.dot_dimension_numbers<[1], [0], [0], [1], [0, 0, 1, 1], [], []>} : vector<8x16xf32>, vector<16x64xf32>, vector<8x64xf32> -> vector<8x64xf32>
    %41 = arith.truncf %40 : vector<8x64xf32> to vector<8x64xbf16>
    %c0_37 = arith.constant 0 : index
    %c0_38 = arith.constant 0 : index
    %42 = vector.load %arg9[%c0_37, %c0_38] : memref<64x256xbf16, #tpu.memory_space<vmem>>, vector<64x256xbf16>
    %cst_39 = arith.constant dense<0.000000e+00> : vector<8x256xf32>
    %43 = tpu.matmul %41, %42, %cst_39 {dimension_numbers = #tpu.dot_dimension_numbers<[1], [0], [0], [1], [0, 0, 1, 1], [], []>} : vector<8x64xbf16>, vector<64x256xbf16>, vector<8x256xf32> -> vector<8x256xf32>
    %44 = arith.addf %36, %43 : vector<8x256xf32>
    %c0_40 = arith.constant 0 : index
    %c0_41 = arith.constant 0 : index
    %45 = vector.load %arg10[%c0_40, %c0_41] : memref<1x256xf32, #tpu.memory_space<vmem>>, vector<1x256xf32>
    %46 = vector.broadcast %45 : vector<1x256xf32> to vector<8x256xf32>
    %47 = arith.addf %44, %46 : vector<8x256xf32>
    %48 = vector.shape_cast %47 : vector<8x256xf32> to vector<1x8x256xf32>
    %c0_42 = arith.constant 0 : index
    %c0_43 = arith.constant 0 : index
    %c0_44 = arith.constant 0 : index
    %49 = vector.load %arg11[%c0_42, %c0_43, %c0_44] : memref<1x8x256xf32, #tpu.memory_space<vmem>>, vector<1x8x256xf32>
    tpu.vector_store %arg11[%c0_42, %c0_43, %c0_44], %48 {strides = array<i32>} : memref<1x8x256xf32, #tpu.memory_space<vmem>>, vector<1x8x256xf32>,
    return
  }
  func.func @transform_0(%arg0: i32, %arg1: i32) -> (i32, i32, i32) {
    %c0_i32 = arith.constant 0 : i32
    %c0_i32_0 = arith.constant 0 : i32
    %c0_i32_1 = arith.constant 0 : i32
    return %arg0, %c0_i32, %c0_i32_0 : i32, i32, i32
  }
  func.func @transform_1(%arg0: i32, %arg1: i32) -> (i32, i32, i32) {
    %c0_i32 = arith.constant 0 : i32
    %c0_i32_0 = arith.constant 0 : i32
    %c0_i32_1 = arith.constant 0 : i32
    return %arg0, %c0_i32, %c0_i32_0 : i32, i32, i32
  }
  func.func @transform_2(%arg0: i32, %arg1: i32) -> (i32, i32, i32) {
    %c0_i32 = arith.constant 0 : i32
    %c0_i32_0 = arith.constant 0 : i32
    %c0_i32_1 = arith.constant 0 : i32
    return %arg0, %c0_i32, %c0_i32_0 : i32, i32, i32
  }
  func.func @transform_3(%arg0: i32, %arg1: i32) -> (i32, i32, i32) {
    %c0_i32 = arith.constant 0 : i32
    %c0_i32_0 = arith.constant 0 : i32
    %c0_i32_1 = arith.constant 0 : i32
    return %arg0, %c0_i32, %c0_i32_0 : i32, i32, i32
  }
  func.func @transform_4(%arg0: i32, %arg1: i32) -> (i32, i32, i32) {
    %c0_i32 = arith.constant 0 : i32
    %c0_i32_0 = arith.constant 0 : i32
    %c0_i32_1 = arith.constant 0 : i32
    return %c0_i32, %arg1, %c0_i32_0 : i32, i32, i32
  }
  func.func @transform_5(%arg0: i32, %arg1: i32) -> (i32, i32, i32) {
    %c0_i32 = arith.constant 0 : i32
    %c0_i32_0 = arith.constant 0 : i32
    %c0_i32_1 = arith.constant 0 : i32
    %c0_i32_2 = arith.constant 0 : i32
    return %c0_i32, %c0_i32_0, %c0_i32_1 : i32, i32, i32
  }
  func.func @transform_6(%arg0: i32, %arg1: i32) -> (i32, i32) {
    %c0_i32 = arith.constant 0 : i32
    %c0_i32_0 = arith.constant 0 : i32
    return %arg1, %c0_i32 : i32, i32
  }
  func.func @transform_7(%arg0: i32, %arg1: i32) -> (i32, i32) {
    %c0_i32 = arith.constant 0 : i32
    %c0_i32_0 = arith.constant 0 : i32
    %c0_i32_1 = arith.constant 0 : i32
    return %c0_i32, %c0_i32_0 : i32, i32
  }
  func.func @transform_8(%arg0: i32, %arg1: i32) -> (i32, i32) {
    %c0_i32 = arith.constant 0 : i32
    %c0_i32_0 = arith.constant 0 : i32
    %c0_i32_1 = arith.constant 0 : i32
    return %c0_i32, %c0_i32_0 : i32, i32
  }
  func.func @transform_9(%arg0: i32, %arg1: i32) -> (i32, i32, i32) {
    %c0_i32 = arith.constant 0 : i32
    %c0_i32_0 = arith.constant 0 : i32
    return %arg0, %arg1, %c0_i32 : i32, i32, i32
  }
}

</mosaic_0001>

<llo_original>
// kernel: tile.43
$region0: #{tile.43}
  #allocation0 [shape = 's32[1]{0}', space=sflag, size = 0x4, scoped, tag = 'scoped memory for tile.43']
  %s0 = inlined_call_operand.vmem [shape: f32[8], index: 0, kind: input, shape index: {}]
  %s1 = inlined_call_operand.vmem [shape: f32[32,8], index: 1, kind: output, shape index: {}]
  // Predicated region
  $region2: #{tile.43} parent=0 // pred_check
    _
  $region3: #{tile.43} parent=0 // pred_check_branch
    %3 = sbr.rel (0) target = $region5
  $region4: #{tile.43} parent=0 // pred_region
    _
  $region5: #{tile.43} parent=0 // pred_fallthru
    _
  %v4 = vld [vmem:[%s0] ss:$0 sm:$0xff]
  %5 = vst [vmem:[%s1] sm:$0xff] %v4
  %s6 = scalar_lea.vmem %s1, 8
  %7 = vst [vmem:[%s6] sm:$0xff] %v4
  %s8 = scalar_lea.vmem %s1, 16
  %9 = vst [vmem:[%s8] sm:$0xff] %v4
  %s10 = scalar_lea.vmem %s1, 24
  %11 = vst [vmem:[%s10] sm:$0xff] %v4

// kernel: tile.44
$region0: #{tile.44}
  %s0 = inlined_call_operand.vmem [shape: f32[32,8], index: 0, kind: input, shape index: {}]
  %s1 = inlined_call_operand.hbm [shape: f32[1,256], index: 1, kind: output, shape index: {}]
  $region1: #{tile.44} parent=0
    #allocation0 [shape = 'u8[1024]{0}', space=vmem, size = 0x400, scoped, tag = 'operand span for operand 1']
    #allocation1 [shape = 's32[1]{0}', space=sflag, size = 0x4, scoped, tag = 'scoped memory for tile.44']
    #allocation2 [shape = 'u8[8192]{0}', space=vmem, size = 0x2000, scoped, tag = 'scoped mem for output reshape']
    %2 = vsyncpa [#allocation1], 0
    %s3 = smov 3
    %v4 = vld [vmem:[%s0] ss:$16 sm:%s3]
    %vm5 = vcmask 64512
    %6 = vst.msk [vmem:[#allocation2] ss:$8 sm:$0x3] %vm5, %v4
    %s7 = scalar_lea.vmem %s0, 15
    %s8 = smov 3
    %v9 = vld [vmem:[%s7] ss:$16 sm:%s8]
    %10 = vrot.lane.b32.xlu0 %v9, 120
    %v11 = vpop.permute.xlu0 %10
    %vm12 = vcmask 1048512
    %13 = vst.msk [vmem:[#allocation2] ss:$8 sm:$0x3] %vm12, %v11
    %s14 = scalar_lea.vmem %s0, 14
    %s15 = smov 3
    %v16 = vld [vmem:[%s14] ss:$16 sm:%s15]
    %17 = vrot.lane.b32.xlu0 %v16, 112
    %v18 = vpop.permute.xlu0 %17
    %vm19 = vcmask 982912
    %20 = vst.msk [vmem:[#allocation2] ss:$8 sm:$0x3] %vm19, %v18
    %s21 = scalar_lea.vmem %s0, 13
    %s22 = smov 3
    %v23 = vld [vmem:[%s21] ss:$16 sm:%s22]
    %24 = vrot.lane.b32.xlu0 %v23, 104
    %v25 = vpop.permute.xlu0 %24
    %vm26 = vcmask 917312
    %27 = vst.msk [vmem:[#allocation2] ss:$8 sm:$0x3] %vm26, %v25
    %s28 = scalar_lea.vmem %s0, 12
    %s29 = smov 3
    %v30 = vld [vmem:[%s28] ss:$16 sm:%s29]
    %31 = vrot.lane.b32.xlu0 %v30, 96
    %v32 = vpop.permute.xlu0 %31
    %vm33 = vcmask 851712
    %34 = vst.msk [vmem:[#allocation2] ss:$8 sm:$0x3] %vm33, %v32
    %s35 = scalar_lea.vmem %s0, 11
    %s36 = smov 3
    %v37 = vld [vmem:[%s35] ss:$16 sm:%s36]
    %38 = vrot.lane.b32.xlu0 %v37, 88
    %v39 = vpop.permute.xlu0 %38
    %vm40 = vcmask 786112
    %41 = vst.msk [vmem:[#allocation2] ss:$8 sm:$0x3] %vm40, %v39
    %s42 = scalar_lea.vmem %s0, 10
    %s43 = smov 3
    %v44 = vld [vmem:[%s42] ss:$16 sm:%s43]
    %45 = vrot.lane.b32.xlu0 %v44, 80
    %v46 = vpop.permute.xlu0 %45
    %vm47 = vcmask 720512
    %48 = vst.msk [vmem:[#allocation2] ss:$8 sm:$0x3] %vm47, %v46
    %s49 = scalar_lea.vmem %s0, 9
    %s50 = smov 3
    %v51 = vld [vmem:[%s49] ss:$16 sm:%s50]
    %52 = vrot.lane.b32.xlu0 %v51, 72
    %v53 = vpop.permute.xlu0 %52
    %vm54 = vcmask 654912
    %55 = vst.msk [vmem:[#allocation2] ss:$8 sm:$0x3] %vm54, %v53
    %s56 = scalar_lea.vmem %s0, 8
    %s57 = smov 3
    %v58 = vld [vmem:[%s56] ss:$16 sm:%s57]
    %59 = vrot.lane.b32.xlu0 %v58, 64
    %v60 = vpop.permute.xlu0 %59
    %vm61 = vcmask 589312
    %62 = vst.msk [vmem:[#allocation2] ss:$8 sm:$0x3] %vm61, %v60
    %s63 = scalar_lea.vmem %s0, 7
    %s64 = smov 3
    %v65 = vld [vmem:[%s63] ss:$16 sm:%s64]
    %66 = vrot.lane.b32.xlu0 %v65, 56
    %v67 = vpop.permute.xlu0 %66
    %vm68 = vcmask 523712
    %69 = vst.msk [vmem:[#allocation2] ss:$8 sm:$0x3] %vm68, %v67
    %s70 = scalar_lea.vmem %s0, 6
    %s71 = smov 3
    %v72 = vld [vmem:[%s70] ss:$16 sm:%s71]
    %73 = vrot.lane.b32.xlu0 %v72, 48
    %v74 = vpop.permute.xlu0 %73
    %vm75 = vcmask 458112
    %76 = vst.msk [vmem:[#allocation2] ss:$8 sm:$0x3] %vm75, %v74
    %s77 = scalar_lea.vmem %s0, 5
    %s78 = smov 3
    %v79 = vld [vmem:[%s77] ss:$16 sm:%s78]
    %80 = vrot.lane.b32.xlu0 %v79, 40
    %v81 = vpop.permute.xlu0 %80
    %vm82 = vcmask 392512
    %83 = vst.msk [vmem:[#allocation2] ss:$8 sm:$0x3] %vm82, %v81
    %s84 = scalar_lea.vmem %s0, 4
    %s85 = smov 3
    %v86 = vld [vmem:[%s84] ss:$16 sm:%s85]
    %87 = vrot.lane.b32.xlu0 %v86, 32
    %v88 = vpop.permute.xlu0 %87
    %vm89 = vcmask 326912
    %90 = vst.msk [vmem:[#allocation2] ss:$8 sm:$0x3] %vm89, %v88
    %s91 = scalar_lea.vmem %s0, 3
    %s92 = smov 3
    %v93 = vld [vmem:[%s91] ss:$16 sm:%s92]
    %94 = vrot.lane.b32.xlu0 %v93, 24
    %v95 = vpop.permute.xlu0 %94
    %vm96 = vcmask 261312
    %97 = vst.msk [vmem:[#allocation2] ss:$8 sm:$0x3] %vm96, %v95
    %s98 = scalar_lea.vmem %s0, 2
    %s99 = smov 3
    %v100 = vld [vmem:[%s98] ss:$16 sm:%s99]
    %101 = vrot.lane.b32.xlu0 %v100, 16
    %v102 = vpop.permute.xlu0 %101
    %vm103 = vcmask 195712
    %104 = vst.msk [vmem:[#allocation2] ss:$8 sm:$0x3] %vm103, %v102
    %s105 = scalar_lea.vmem %s0, 1
    %s106 = smov 3
    %v107 = vld [vmem:[%s105] ss:$16 sm:%s106]
    %108 = vrot.lane.b32.xlu0 %v107, 8
    %v109 = vpop.permute.xlu0 %108
    %vm110 = vcmask 130112
    %111 = vst.msk [vmem:[#allocation2] ss:$8 sm:$0x3] %vm110, %v109
    %s113 = sshllo.u32 0, 1
    %v115 = vld [vmem:[#allocation2] sm:%s113]
    %s116 = sshllo.u32 0, 1
    %117 = vst [vmem:[#allocation0] sm:%s116] %v115
    %s118 = scalar_lea.vmem [#allocation2], 8
    %v119 = vld [vmem:[%s118] sm:%s113]
    %s120 = sshllo.u32 0, 1
    %s121 = scalar_lea.vmem [#allocation0], 1
    %122 = vst [vmem:[%s121] sm:%s120] %v119
    %s124 = ssub.s32 32, 32
    %125 = vsyncadd [#allocation1], %s124
    %s127 = sshll.u32 [#allocation0], 4
    %s128 = int_to_ptr.vmem [resolvable:$true] %s127
    %130 = dma.vmem_to_hbm [thread:$0]  %s128, 32, %s1, [#allocation1]
    %131 = dma.done [#allocation1], 32
    %132 = vsyncpa [#allocation1], 1

// kernel: g_resblock_cond_forward.2
$region0: #{g_resblock_cond_forward.2}
  #allocation0 [shape = 'u32[]', space=smem, size = 0x4, offset = 0x4, fixed_abs, tag = 'smem constant byte address 0x4 - core index']
  #allocation1 [shape = 'u32[144,128]{1,0:T(1,128)}', space=vmem, size = 0x12000, scoped, tag = 'internal scratch']
  %s0 = inlined_call_operand.hbm [shape: f32[2,16,64], index: 0, kind: input, shape index: {}]
  %s1 = inlined_call_operand.hbm [shape: f32[2,1,64], index: 1, kind: input, shape index: {}]
  %s2 = inlined_call_operand.hbm [shape: f32[2,1,64], index: 2, kind: input, shape index: {}]
  %s3 = inlined_call_operand.hbm [shape: f32[3,32,16], index: 3, kind: input, shape index: {}]
  %s4 = inlined_call_operand.hbm [shape: bf16[3,64,256], index: 4, kind: input, shape index: {}]
  %s5 = inlined_call_operand.hbm [shape: f32[1,256], index: 5, kind: input, shape index: {}]
  %s6 = inlined_call_operand.hbm [shape: f32[2,32,256], index: 6, kind: output, shape index: {0}]
  %s7 = inlined_call_operand.hbm [shape: f32[2,4,2,256], index: 7, kind: output, shape index: {1}]
  %8 = xla_tuple %s6, %s7
  %s9 = sld [smem:[#allocation0]]
  $region89: #{g_resblock_cond_forward.2} parent=0
    _
  %s11 = ssub.s32 1, %s9
  %s12 = scalar_select 0, %s11, %s9
  $region1: #{g_resblock_cond_forward.2} parent=0
    #allocation2 [shape = 'u8[16384]{0}', space=vmem, size = 0x4000, scoped, tag = 'input window, operand 0']
    #allocation3 [shape = 's32[2]{0}', space=sflag, size = 0x8, scoped, tag = 'scoped memory for g_resblock_cond_forward.2']
    #allocation4 [shape = 's32[2]{0}', space=sflag, size = 0x8, scoped, tag = 'scoped memory for g_resblock_cond_forward.2']
    #allocation5 [shape = 'u8[1024]{0}', space=vmem, size = 0x400, scoped, tag = 'input window, operand 1']
    #allocation6 [shape = 's32[2]{0}', space=sflag, size = 0x8, scoped, tag = 'scoped memory for g_resblock_cond_forward.2']
    #allocation7 [shape = 'u8[1024]{0}', space=vmem, size = 0x400, scoped, tag = 'input window, operand 2']
    #allocation8 [shape = 'u8[24576]{0}', space=vmem, size = 0x6000, scoped, tag = 'input window, operand 3']
    #allocation9 [shape = 's32[2]{0}', space=sflag, size = 0x8, scoped, tag = 'scoped memory for g_resblock_cond_forward.2']
    #allocation10 [shape = 'u8[98304]{0}', space=vmem, size = 0x18000, scoped, tag = 'input window, operand 4, single buffered']
    #allocation11 [shape = 'u8[1024]{0}', space=vmem, size = 0x400, scoped, tag = 'input window, operand 5, single buffered']
    #allocation12 [shape = 's32[1]{0}', space=sflag, size = 0x4, scoped, tag = 'scoped memory for g_resblock_cond_forward.2']
    #allocation13 [shape = 'u8[16384]{0}', space=vmem, size = 0x4000, scoped, tag = 'output window, operand 0']
    #allocation14 [shape = 'u8[4096]{0}', space=vmem, size = 0x1000, scoped, tag = 'output window, operand 1']
    #allocation15 [shape = 's32[2]{0}', space=sflag, size = 0x8, scoped, tag = 'scoped memory for g_resblock_cond_forward.2']
    %13 = vsyncpa [#allocation3], 0
    %s14 = scalar_lea.sflag [#allocation3], 1
    %15 = vsyncpa %s14, 0
    %16 = vsyncpa [#allocation6], 0
    %s17 = scalar_lea.sflag [#allocation6], 1
    %18 = vsyncpa %s17, 0
    %19 = vsyncpa [#allocation9], 0
    %s20 = scalar_lea.sflag [#allocation9], 1
    %21 = vsyncpa %s20, 0
    %22 = vsyncpa [#allocation12], 0
    %23 = vsyncpa [#allocation4], 0
    %s24 = scalar_lea.sflag [#allocation4], 1
    %25 = vsyncpa %s24, 0
    %26 = vsyncpa [#allocation15], 0
    %s27 = scalar_lea.sflag [#allocation15], 1
    %28 = vsyncpa %s27, 0
    loop: start=0, step=1, limit=10
    $region2: #{g_resblock_cond_forward.2} parent=1 // loop_pre_header
      _
    $region3: #{g_resblock_cond_forward.2} parent=1 // loop_header
      %s30 = sphi 0, %s34
      %p31 = scmp.ge.s32.totalorder %s30, 10
      %s37 = sphi 0, %s49
      %s38 = sphi 0, %s45
      %s39 = sphi 0, %s37
      %s40 = sphi 0, %s38
      %s41 = sphi 0, %s39
      %s42 = sphi 0, %s40
      %s52 = sphi 0, %s54
      %s55 = sphi 0, %s52
      %s56 = sphi 0, %s55
      %s72 = sphi 0, %s56
      %s78 = sphi 0, %s80
      %s81 = sphi 0, %s78
      %s82 = sphi 0, %s81
      %s98 = sphi 0, %s82
      %s104 = sphi 0, %s106
      %s107 = sphi 0, %s104
      %s108 = sphi 0, %s107
      %s124 = sphi 0, %s108
      %s130 = sphi 0, %s132
      %s133 = sphi 0, %s130
      %s134 = sphi 0, %s133
      %s150 = sphi 0, %s134
      %s154 = sphi 0, %s154
      %s156 = sphi 0, %s154
      %s157 = sphi 0, %s156
      %s171 = sphi 0, %s157
      %s175 = sphi 0, %s175
      %s177 = sphi 0, %s175
      %s178 = sphi 0, %s177
      %s192 = sphi 0, %s178
      %s200 = sphi 0, %s202
      %s203 = sphi 0, %s200
      %s204 = sphi 0, %s203
      %s220 = sphi 0, %s204
      %s228 = sphi 0, %s230
      %s231 = sphi 0, %s228
      %s232 = sphi 0, %s231
      %s248 = sphi 0, %s232
    $region4: #{g_resblock_cond_forward.2} parent=1 // loop_header_branch
      %33 = sbr.rel (%p31) target = $region8
    $region5: #{g_resblock_cond_forward.2} parent=1 // loop_body
      %s35 = ssub.s32 %s30, 1
      %s36 = ssub.s32 %s30, 2
      %s43 = sadd.s32 1, %s38
      %p44 = scmp.ge.s32.totalorder %s43, 4
      %s45 = scalar_select %p44, 0, %s43
      %s46 = sadd.s32 1, %s37
      %s47 = scalar_select %p44, %s46, %s37
      %p48 = scmp.ge.s32.totalorder %s47, 2
      %s49 = scalar_select %p48, 0, %s47
      %s50 = ssub.s32 %s37, %s49
      %p51 = scmp.eq.s32.totalorder %s50, 0
      %s53 = sadd.s32 %s52, 1
      %s54 = scalar_select %p51, %s52, %s53
      %p57 = pneg %p51
      %p58 = scmp.eq.s32.totalorder %s30, 7
      %p59 = por %p57, %p58
      %p60 = scmp.ne.s32.totalorder %s52, %s55
      %p61 = scmp.eq.s32.totalorder %s30, 0
      %p62 = por %p60, %p61
      %p63 = scmp.ne.s32.totalorder %s52, %s55
      %p64 = scmp.eq.s32.totalorder %s35, 7
      %p65 = por %p63, %p64
      %p66 = scmp.ne.s32.totalorder %s55, %s56
      %p67 = scmp.eq.s32.totalorder %s35, 0
      %p68 = por %p66, %p67
      %p69 = scmp.ne.s32.totalorder %s55, %s56
      %p70 = scmp.eq.s32.totalorder %s36, 7
      %p71 = por %p69, %p70
      %p73 = scmp.ne.s32.totalorder %s56, %s72
      %p74 = scmp.eq.s32.totalorder %s36, 0
      %p75 = por %p73, %p74
      %s76 = ssub.s32 %s37, %s49
      %p77 = scmp.eq.s32.totalorder %s76, 0
      %s79 = sadd.s32 %s78, 1
      %s80 = scalar_select %p77, %s78, %s79
      %p83 = pneg %p77
      %p84 = scmp.eq.s32.totalorder %s30, 7
      %p85 = por %p83, %p84
      %p86 = scmp.ne.s32.totalorder %s78, %s81
      %p87 = scmp.eq.s32.totalorder %s30, 0
      %p88 = por %p86, %p87
      %p89 = scmp.ne.s32.totalorder %s78, %s81
      %p90 = scmp.eq.s32.totalorder %s35, 7
      %p91 = por %p89, %p90
      %p92 = scmp.ne.s32.totalorder %s81, %s82
      %p93 = scmp.eq.s32.totalorder %s35, 0
      %p94 = por %p92, %p93
      %p95 = scmp.ne.s32.totalorder %s81, %s82
      %p96 = scmp.eq.s32.totalorder %s36, 7
      %p97 = por %p95, %p96
      %p99 = scmp.ne.s32.totalorder %s82, %s98
      %p100 = scmp.eq.s32.totalorder %s36, 0
      %p101 = por %p99, %p100
      %s102 = ssub.s32 %s37, %s49
      %p103 = scmp.eq.s32.totalorder %s102, 0
      %s105 = sadd.s32 %s104, 1
      %s106 = scalar_select %p103, %s104, %s105
      %p109 = pneg %p103
      %p110 = scmp.eq.s32.totalorder %s30, 7
      %p111 = por %p109, %p110
      %p112 = scmp.ne.s32.totalorder %s104, %s107
      %p113 = scmp.eq.s32.totalorder %s30, 0
      %p114 = por %p112, %p113
      %p115 = scmp.ne.s32.totalorder %s104, %s107
      %p116 = scmp.eq.s32.totalorder %s35, 7
      %p117 = por %p115, %p116
      %p118 = scmp.ne.s32.totalorder %s107, %s108
      %p119 = scmp.eq.s32.totalorder %s35, 0
      %p120 = por %p118, %p119
      %p121 = scmp.ne.s32.totalorder %s107, %s108
      %p122 = scmp.eq.s32.totalorder %s36, 7
      %p123 = por %p121, %p122
      %p125 = scmp.ne.s32.totalorder %s108, %s124
      %p126 = scmp.eq.s32.totalorder %s36, 0
      %p127 = por %p125, %p126
      %s128 = ssub.s32 %s38, %s45
      %p129 = scmp.eq.s32.totalorder %s128, 0
      %s131 = sadd.s32 %s130, 1
      %s132 = scalar_select %p129, %s130, %s131
      %p135 = pneg %p129
      %p136 = scmp.eq.s32.totalorder %s30, 7
      %p137 = por %p135, %p136
      %p138 = scmp.ne.s32.totalorder %s130, %s133
      %p139 = scmp.eq.s32.totalorder %s30, 0
      %p140 = por %p138, %p139
      %p141 = scmp.ne.s32.totalorder %s130, %s133
      %p142 = scmp.eq.s32.totalorder %s35, 7
      %p143 = por %p141, %p142
      %p144 = scmp.ne.s32.totalorder %s133, %s134
      %p145 = scmp.eq.s32.totalorder %s35, 0
      %p146 = por %p144, %p145
      %p147 = scmp.ne.s32.totalorder %s133, %s134
      %p148 = scmp.eq.s32.totalorder %s36, 7
      %p149 = por %p147, %p148
      %p151 = scmp.ne.s32.totalorder %s134, %s150
      %p152 = scmp.eq.s32.totalorder %s36, 0
      %p153 = por %p151, %p152
      %s155 = sadd.s32 %s154, 1
      %p158 = scmp.eq.s32.totalorder %s30, 7
      %p159 = scmp.ne.s32.totalorder %s154, %s156
      %p160 = scmp.eq.s32.totalorder %s30, 0
      %p161 = por %p159, %p160
      %p162 = scmp.ne.s32.totalorder %s154, %s156
      %p163 = scmp.eq.s32.totalorder %s35, 7
      %p164 = por %p162, %p163
      %p165 = scmp.ne.s32.totalorder %s156, %s157
      %p166 = scmp.eq.s32.totalorder %s35, 0
      %p167 = por %p165, %p166
      %p168 = scmp.ne.s32.totalorder %s156, %s157
      %p169 = scmp.eq.s32.totalorder %s36, 7
      %p170 = por %p168, %p169
      %p172 = scmp.ne.s32.totalorder %s157, %s171
      %p173 = scmp.eq.s32.totalorder %s36, 0
      %p174 = por %p172, %p173
      %s176 = sadd.s32 %s175, 1
      %p179 = scmp.eq.s32.totalorder %s30, 7
      %p180 = scmp.ne.s32.totalorder %s175, %s177
      %p181 = scmp.eq.s32.totalorder %s30, 0
      %p182 = por %p180, %p181
      %p183 = scmp.ne.s32.totalorder %s175, %s177
      %p184 = scmp.eq.s32.totalorder %s35, 7
      %p185 = por %p183, %p184
      %p186 = scmp.ne.s32.totalorder %s177, %s178
      %p187 = scmp.eq.s32.totalorder %s35, 0
      %p188 = por %p186, %p187
      %p189 = scmp.ne.s32.totalorder %s177, %s178
      %p190 = scmp.eq.s32.totalorder %s36, 7
      %p191 = por %p189, %p190
      %p193 = scmp.ne.s32.totalorder %s178, %s192
      %p194 = scmp.eq.s32.totalorder %s36, 0
      %p195 = por %p193, %p194
      %s196 = ssub.s32 %s37, %s49
      %s197 = ssub.s32 %s38, %s45
      %s198 = sor.u32 %s196, %s197
      %p199 = scmp.eq.s32.totalorder %s198, 0
      %s201 = sadd.s32 %s200, 1
      %s202 = scalar_select %p199, %s200, %s201
      %p205 = pneg %p199
      %p206 = scmp.eq.s32.totalorder %s30, 7
      %p207 = por %p205, %p206
      %p208 = scmp.ne.s32.totalorder %s200, %s203
      %p209 = scmp.eq.s32.totalorder %s30, 0
      %p210 = por %p208, %p209
      %p211 = scmp.ne.s32.totalorder %s200, %s203
      %p212 = scmp.eq.s32.totalorder %s35, 7
      %p213 = por %p211, %p212
      %p214 = scmp.ne.s32.totalorder %s203, %s204
      %p215 = scmp.eq.s32.totalorder %s35, 0
      %p216 = por %p214, %p215
      %p217 = scmp.ne.s32.totalorder %s203, %s204
      %p218 = scmp.eq.s32.totalorder %s36, 7
      %p219 = por %p217, %p218
      %p221 = scmp.ne.s32.totalorder %s204, %s220
      %p222 = scmp.eq.s32.totalorder %s36, 0
      %p223 = por %p221, %p222
      %s224 = ssub.s32 %s37, %s49
      %s225 = ssub.s32 %s38, %s45
      %s226 = sor.u32 %s224, %s225
      %p227 = scmp.eq.s32.totalorder %s226, 0
      %s229 = sadd.s32 %s228, 1
      %s230 = scalar_select %p227, %s228, %s229
      %p233 = pneg %p227
      %p234 = scmp.eq.s32.totalorder %s30, 7
      %p235 = por %p233, %p234
      %p236 = scmp.ne.s32.totalorder %s228, %s231
      %p237 = scmp.eq.s32.totalorder %s30, 0
      %p238 = por %p236, %p237
      %p239 = scmp.ne.s32.totalorder %s228, %s231
      %p240 = scmp.eq.s32.totalorder %s35, 7
      %p241 = por %p239, %p240
      %p242 = scmp.ne.s32.totalorder %s231, %s232
      %p243 = scmp.eq.s32.totalorder %s35, 0
      %p244 = por %p242, %p243
      %p245 = scmp.ne.s32.totalorder %s231, %s232
      %p246 = scmp.eq.s32.totalorder %s36, 7
      %p247 = por %p245, %p246
      %p249 = scmp.ne.s32.totalorder %s232, %s248
      %p250 = scmp.eq.s32.totalorder %s36, 0
      %p251 = por %p249, %p250
      %p252 = scmp.le.s32.totalorder 1, %s30
      %p253 = scmp.lt.s32.totalorder %s30, 9
      %p254 = pnand %p252, %p253
      %p255 = pneg %p254
      // Predicated region
      $region9: #{g_resblock_cond_forward.2} parent=5 // pred_check
        _
      $region10: #{g_resblock_cond_forward.2} parent=5 // pred_check_branch
        %257 = sbr.rel (%p254) target = $region12
      $region11: #{g_resblock_cond_forward.2} parent=5 // pred_region
        %s258 = ssub.s32 %s30, 1
        // Predicated region
        $region13: #{g_resblock_cond_forward.2} parent=11 // pred_check
          %p259 = pneg %p167
        $region14: #{g_resblock_cond_forward.2} parent=11 // pred_check_branch
          %261 = sbr.rel (%p259) target = $region16
        $region15: #{g_resblock_cond_forward.2} parent=11 // pred_region
          %s263 = ssub.s32 3072, 3072
          %264 = vsyncadd [#allocation9], %s263
          %s265 = sshll.u32 [#allocation10], 4
          %s266 = int_to_ptr.vmem [resolvable:$true] %s265
          %271 = dma.hbm_to_vmem [thread:$0]  %s4, 3072, %s266, [#allocation9], 128, 128, 8
        $region16: #{g_resblock_cond_forward.2} parent=11 // pred_fallthru
          _
        // Predicated region
        $region17: #{g_resblock_cond_forward.2} parent=11 // pred_check
          %p272 = pneg %p188
        $region18: #{g_resblock_cond_forward.2} parent=11 // pred_check_branch
          %274 = sbr.rel (%p272) target = $region20
        $region19: #{g_resblock_cond_forward.2} parent=11 // pred_region
          %s276 = ssub.s32 32, 32
          %277 = vsyncadd [#allocation12], %s276
          %s279 = sshll.u32 [#allocation11], 4
          %s280 = int_to_ptr.vmem [resolvable:$true] %s279
          %282 = dma.hbm_to_vmem [thread:$0]  %s5, 32, %s280, [#allocation12]
        $region20: #{g_resblock_cond_forward.2} parent=11 // pred_fallthru
          _
      $region12: #{g_resblock_cond_forward.2} parent=5 // pred_fallthru
        _
      %p283 = scmp.lt.s32.totalorder %s30, 8
      // Predicated region
      $region21: #{g_resblock_cond_forward.2} parent=5 // pred_check
        %p284 = pneg %p283
      $region22: #{g_resblock_cond_forward.2} parent=5 // pred_check_branch
        %286 = sbr.rel (%p284) target = $region24
      $region23: #{g_resblock_cond_forward.2} parent=5 // pred_region
        // Predicated region
        $region25: #{g_resblock_cond_forward.2} parent=23 // pred_check
          %p287 = pneg %p62
        $region26: #{g_resblock_cond_forward.2} parent=23 // pred_check_branch
          %289 = sbr.rel (%p287) target = $region28
        $region27: #{g_resblock_cond_forward.2} parent=23 // pred_region
          %s290 = sand.u32 %s52, 1
          %s291 = scalar_lea.sflag [#allocation3], %s290
          %s292 = sand.u32 %s52, 1
          %s293 = smul.addr %s292, 16
          %s294 = scalar_lea.vmem [#allocation2], %s293
          %s296 = ssub.s32 256, 256
          %297 = vsyncadd %s291, %s296
          %s298 = smul.addr %s37, 2
          %s299 = smul.addr %s298, 128
          %s300 = scalar_lea.hbm %s0, %s299
          %s301 = sshll.u32 %s294, 4
          %s302 = int_to_ptr.vmem [resolvable:$true] %s301
          %307 = dma.hbm_to_vmem [thread:$0]  %s300, 256, %s302, %s291, 128, 128, 8
        $region28: #{g_resblock_cond_forward.2} parent=23 // pred_fallthru
          _
        // Predicated region
        $region29: #{g_resblock_cond_forward.2} parent=23 // pred_check
          %p308 = pneg %p88
        $region30: #{g_resblock_cond_forward.2} parent=23 // pred_check_branch
          %310 = sbr.rel (%p308) target = $region32
        $region31: #{g_resblock_cond_forward.2} parent=23 // pred_region
          %s311 = sand.u32 %s30, 1
          %s312 = scalar_lea.sflag [#allocation6], %s311
          %s313 = sand.u32 %s78, 1
          %s314 = scalar_lea.vmem [#allocation5], %s313
          %s316 = ssub.s32 16, 16
          %317 = vsyncadd %s312, %s316
          %s318 = smul.addr %s37, 16
          %s319 = scalar_lea.hbm %s1, %s318
          %s321 = sshll.u32 %s314, 4
          %s322 = int_to_ptr.vmem [resolvable:$true] %s321
          %324 = dma.hbm_to_vmem [thread:$0]  %s319, 16, %s322, %s312
        $region32: #{g_resblock_cond_forward.2} parent=23 // pred_fallthru
          _
        // Predicated region
        $region33: #{g_resblock_cond_forward.2} parent=23 // pred_check
          %p325 = pneg %p114
        $region34: #{g_resblock_cond_forward.2} parent=23 // pred_check_branch
          %327 = sbr.rel (%p325) target = $region36
        $region35: #{g_resblock_cond_forward.2} parent=23 // pred_region
          %s328 = sand.u32 %s30, 1
          %s329 = scalar_lea.sflag [#allocation6], %s328
          %s330 = sand.u32 %s104, 1
          %s331 = scalar_lea.vmem [#allocation7], %s330
          %s333 = ssub.s32 16, 16
          %334 = vsyncadd %s329, %s333
          %s335 = smul.addr %s37, 16
          %s336 = scalar_lea.hbm %s2, %s335
          %s338 = sshll.u32 %s331, 4
          %s339 = int_to_ptr.vmem [resolvable:$true] %s338
          %341 = dma.hbm_to_vmem [thread:$0]  %s336, 16, %s339, %s329
        $region36: #{g_resblock_cond_forward.2} parent=23 // pred_fallthru
          _
        // Predicated region
        $region37: #{g_resblock_cond_forward.2} parent=23 // pred_check
          %p342 = pneg %p140
        $region38: #{g_resblock_cond_forward.2} parent=23 // pred_check_branch
          %344 = sbr.rel (%p342) target = $region40
        $region39: #{g_resblock_cond_forward.2} parent=23 // pred_region
          %s345 = sand.u32 %s30, 1
          %s346 = scalar_lea.sflag [#allocation9], %s345
          %s347 = sand.u32 %s130, 1
          %s348 = smul.addr %s347, 24
          %s349 = scalar_lea.vmem [#allocation8], %s348
          %s351 = ssub.s32 384, 384
          %352 = vsyncadd %s346, %s351
          %s353 = smul.addr %s38, 128
          %s354 = scalar_lea.hbm %s3, %s353
          %s355 = sshll.u32 %s349, 4
          %s356 = int_to_ptr.vmem [resolvable:$true] %s355
          %361 = dma.hbm_to_vmem [thread:$0]  %s354, 384, %s356, %s346, 512, 128, 8
        $region40: #{g_resblock_cond_forward.2} parent=23 // pred_fallthru
          _
      $region24: #{g_resblock_cond_forward.2} parent=5 // pred_fallthru
        _
      %p362 = scmp.le.s32.totalorder 1, %s30
      %p363 = scmp.lt.s32.totalorder %s30, 9
      %p364 = pnand %p362, %p363
      %p365 = pneg %p364
      // Predicated region
      $region41: #{g_resblock_cond_forward.2} parent=5 // pred_check
        _
      $region42: #{g_resblock_cond_forward.2} parent=5 // pred_check_branch
        %367 = sbr.rel (%p364) target = $region44
      $region43: #{g_resblock_cond_forward.2} parent=5 // pred_region
        %s368 = ssub.s32 %s30, 1
        %s369 = sand.u32 %s55, 1
        %s370 = scalar_lea.sflag [#allocation3], %s369
        %s371 = sand.u32 %s55, 1
        %s372 = smul.addr %s371, 16
        %s373 = scalar_lea.vmem [#allocation2], %s372
        // Predicated region
        $region45: #{g_resblock_cond_forward.2} parent=43 // pred_check
          %p374 = pneg %p68
        $region46: #{g_resblock_cond_forward.2} parent=43 // pred_check_branch
          %376 = sbr.rel (%p374) target = $region48
        $region47: #{g_resblock_cond_forward.2} parent=43 // pred_region
          %377 = dma.done %s370, 256
        $region48: #{g_resblock_cond_forward.2} parent=43 // pred_fallthru
          _
        %s378 = sand.u32 %s35, 1
        %s379 = scalar_lea.sflag [#allocation6], %s378
        %s380 = sand.u32 %s81, 1
        %s381 = scalar_lea.vmem [#allocation5], %s380
        // Predicated region
        $region49: #{g_resblock_cond_forward.2} parent=43 // pred_check
          %p382 = pneg %p94
        $region50: #{g_resblock_cond_forward.2} parent=43 // pred_check_branch
          %384 = sbr.rel (%p382) target = $region52
        $region51: #{g_resblock_cond_forward.2} parent=43 // pred_region
          %385 = dma.done %s379, 16
        $region52: #{g_resblock_cond_forward.2} parent=43 // pred_fallthru
          _
        %s386 = sand.u32 %s35, 1
        %s387 = scalar_lea.sflag [#allocation6], %s386
        %s388 = sand.u32 %s107, 1
        %s389 = scalar_lea.vmem [#allocation7], %s388
        // Predicated region
        $region53: #{g_resblock_cond_forward.2} parent=43 // pred_check
          %p390 = pneg %p120
        $region54: #{g_resblock_cond_forward.2} parent=43 // pred_check_branch
          %392 = sbr.rel (%p390) target = $region56
        $region55: #{g_resblock_cond_forward.2} parent=43 // pred_region
          %393 = dma.done %s387, 16
        $region56: #{g_resblock_cond_forward.2} parent=43 // pred_fallthru
          _
        %s394 = sand.u32 %s35, 1
        %s395 = scalar_lea.sflag [#allocation9], %s394
        %s396 = sand.u32 %s133, 1
        %s397 = smul.addr %s396, 24
        %s398 = scalar_lea.vmem [#allocation8], %s397
        // Predicated region
        $region57: #{g_resblock_cond_forward.2} parent=43 // pred_check
          %p399 = pneg %p146
        $region58: #{g_resblock_cond_forward.2} parent=43 // pred_check_branch
          %401 = sbr.rel (%p399) target = $region60
        $region59: #{g_resblock_cond_forward.2} parent=43 // pred_region
          %402 = dma.done %s395, 384
        $region60: #{g_resblock_cond_forward.2} parent=43 // pred_fallthru
          _
        // Predicated region
        $region61: #{g_resblock_cond_forward.2} parent=43 // pred_check
          %p403 = pneg %p167
        $region62: #{g_resblock_cond_forward.2} parent=43 // pred_check_branch
          %405 = sbr.rel (%p403) target = $region64
        $region63: #{g_resblock_cond_forward.2} parent=43 // pred_region
          %406 = dma.done [#allocation9], 3072
        $region64: #{g_resblock_cond_forward.2} parent=43 // pred_fallthru
          _
        // Predicated region
        $region65: #{g_resblock_cond_forward.2} parent=43 // pred_check
          %p407 = pneg %p188
        $region66: #{g_resblock_cond_forward.2} parent=43 // pred_check_branch
          %409 = sbr.rel (%p407) target = $region68
        $region67: #{g_resblock_cond_forward.2} parent=43 // pred_region
          %410 = dma.done [#allocation12], 32
        $region68: #{g_resblock_cond_forward.2} parent=43 // pred_fallthru
          _
        %s411 = sand.u32 %s55, 1
        %s412 = scalar_lea.sflag [#allocation3], %s411
        %s413 = sand.u32 %s55, 1
        %s414 = smul.addr %s413, 16
        %s415 = scalar_lea.vmem [#allocation2], %s414
        %p416 = pneg %p68
        %p417 = pneg %p65
        %s418 = sand.u32 %s35, 1
        %s419 = scalar_lea.sflag [#allocation6], %s418
        %s420 = sand.u32 %s81, 1
        %s421 = scalar_lea.vmem [#allocation5], %s420
        %p422 = pneg %p94
        %p423 = pneg %p91
        %s424 = sand.u32 %s35, 1
        %s425 = scalar_lea.sflag [#allocation6], %s424
        %s426 = sand.u32 %s107, 1
        %s427 = scalar_lea.vmem [#allocation7], %s426
        %p428 = pneg %p120
        %p429 = pneg %p117
        %s430 = sand.u32 %s35, 1
        %s431 = scalar_lea.sflag [#allocation9], %s430
        %s432 = sand.u32 %s133, 1
        %s433 = smul.addr %s432, 24
        %s434 = scalar_lea.vmem [#allocation8], %s433
        %p435 = pneg %p146
        %p436 = pneg %p143
        %p437 = pneg %p167
        %p438 = pneg %p164
        %p439 = pneg %p188
        %p440 = pneg %p185
        %p441 = pneg %p216
        %p442 = pneg %p213
        %s443 = sand.u32 %s203, 1
        %s444 = scalar_lea.sflag [#allocation4], %s443
        %s445 = sand.u32 %s203, 1
        %s446 = smul.addr %s445, 16
        %s447 = scalar_lea.vmem [#allocation13], %s446
        %p448 = pneg %p244
        %p449 = pneg %p241
        %s450 = sand.u32 %s231, 1
        %s451 = scalar_lea.sflag [#allocation15], %s450
        %s452 = sand.u32 %s231, 1
        %s453 = smul.addr %s452, 4
        %s454 = scalar_lea.vmem [#allocation14], %s453
        %v456 = vld [vmem:[%s373] sm:$0xff]
        %v457 = vld [vmem:[%s373 + $0x8] sm:$0xff]
        %v458 = vld [vmem:[%s381] sm:$0x1]
        %v460 = vlaneseq
        %v461 = vshrl.u32 %v460, 7
        %v462 = vsub.s32 0, %v461
        %v463 = vrot.slane %v458, %v462
        %v465 = vmul.f32 %v456, %v463
        %v466 = vmul.f32 %v457, %v463
        %v467 = vld [vmem:[%s389] sm:$0x1]
        %v469 = vlaneseq
        %v470 = vshrl.u32 %v469, 7
        %v471 = vsub.s32 0, %v470
        %v472 = vrot.slane %v467, %v471
        %v474 = vadd.f32 %v465, %v472
        %v475 = vadd.f32 %v466, %v472
        %v476 = vmax.f32 %v474, 0.0
        %v477 = vmax.f32 %v475, 0.0
        %v478 = vld [vmem:[%s398] sm:$0xff]
        %vm479 = vcmask 130048
        %v481 = vsel %vm479, %v478, 0
        %483 = vmatprep.subr.mxu0 0.0
        %484 = vmatpush1.msra.mxu0 %v476
        %485 = vmatprep.subr.mxu0 0.0
        %486 = vmatpush1.msra.mxu0 %v477
        %487 = vmatprep.subr.mxu0 0.0
        %488 = vmatpush1.msra.mxu0 0.0
        %489 = vmatprep.subr.mxu0 0.0
        %490 = vmatpush1.msra.mxu0 0.0
        %491 = vmatprep.subr.mxu0 0.0
        %492 = vmatpush1.msra.mxu0 0.0
        %493 = vmatprep.subr.mxu0 0.0
        %494 = vmatpush1.msra.mxu0 0.0
        %495 = vmatprep.subr.mxu0 0.0
        %496 = vmatpush1.msra.mxu0 0.0
        %497 = vmatprep.subr.mxu0 0.0
        %498 = vmatpush1.msra.mxu0 0.0
        %499 = vmatprep.subr.mxu0 0.0
        %500 = vmatpush1.msra.mxu0 0.0
        %501 = vmatprep.subr.mxu0 0.0
        %502 = vmatpush1.msra.mxu0 0.0
        %503 = vmatprep.subr.mxu0 0.0
        %504 = vmatpush1.msra.mxu0 0.0
        %505 = vmatprep.subr.mxu0 0.0
        %506 = vmatpush1.msra.mxu0 0.0
        %507 = vmatprep.subr.mxu0 0.0
        %508 = vmatpush1.msra.mxu0 0.0
        %509 = vmatprep.subr.mxu0 0.0
        %510 = vmatpush1.msra.mxu0 0.0
        %511 = vmatprep.subr.mxu0 0.0
        %512 = vmatpush1.msra.mxu0 0.0
        %513 = vmatprep.subr.mxu0 0.0
        %514 = vmatpush1.msra.mxu0 0.0
        %515 = vmatprep.subr.mxu0 0.0
        %516 = vmatpush1.msra.mxu0 0.0
        %517 = vmatprep.subr.mxu0 0.0
        %518 = vmatpush1.msra.mxu0 0.0
        %519 = vmatprep.subr.mxu0 0.0
        %520 = vmatpush1.msra.mxu0 0.0
        %521 = vmatprep.subr.mxu0 0.0
        %522 = vmatpush1.msra.mxu0 0.0
        %523 = vmatprep.subr.mxu0 0.0
        %524 = vmatpush1.msra.mxu0 0.0
        %525 = vmatprep.subr.mxu0 0.0
        %526 = vmatpush1.msra.mxu0 0.0
        %527 = vmatprep.subr.mxu0 0.0
        %528 = vmatpush1.msra.mxu0 0.0
        %529 = vmatprep.subr.mxu0 0.0
        %530 = vmatpush1.msra.mxu0 0.0
        %531 = vmatprep.subr.mxu0 0.0
        %532 = vmatpush1.msra.mxu0 0.0
        %533 = vmatprep.subr.mxu0 0.0
        %534 = vmatpush1.msra.mxu0 0.0
        %535 = vmatprep.subr.mxu0 0.0
        %536 = vmatpush1.msra.mxu0 0.0
        %537 = vmatprep.subr.mxu0 0.0
        %538 = vmatpush1.msra.mxu0 0.0
        %539 = vmatprep.subr.mxu0 0.0
        %540 = vmatpush1.msra.mxu0 0.0
        %541 = vmatprep.subr.mxu0 0.0
        %542 = vmatpush1.msra.mxu0 0.0
        %543 = vmatprep.subr.mxu0 0.0
        %544 = vmatpush1.msra.mxu0 0.0
        %545 = vmatprep.subr.mxu0 0.0
        %546 = vmatpush1.msra.mxu0 0.0
        %547 = vmatprep.mubr.f32.mxu0 0.0
        %548 = vmatmul.mubr.f32.gmra.mrb[0].mxu0 %v481
        %v549 = vpop.f32.mrb[0].mxu0
        %v550 = vadd.f32 0.0, %v549
        %v551 = vpop.f32.mrb[0].mxu0
        %552 = vdwg.mxu0
        %v553 = vpack.c.bf16 %v550, %v550
        %v554 = vld [vmem:[#allocation10] sm:$0xff]
        %v555 = vld [vmem:[#allocation10 + $0x8] sm:$0xff]
        %v556 = vld [vmem:[#allocation10 + $0x10] sm:$0xff]
        %v557 = vld [vmem:[#allocation10 + $0x18] sm:$0xff]
        %v558 = vld [vmem:[#allocation10 + $0x20] sm:$0xff]
        %v559 = vld [vmem:[#allocation10 + $0x28] sm:$0xff]
        %v560 = vld [vmem:[#allocation10 + $0x30] sm:$0xff]
        %v561 = vld [vmem:[#allocation10 + $0x38] sm:$0xff]
        %s562 = scalar_lea.vmem %s398, 8 [#allocation8]
        %v563 = vld [vmem:[%s562] sm:$0xff]
        %v565 = vsel %vm479, %v563, 0
        %567 = vmatprep.subr.mxu0 0.0
        %568 = vmatpush1.msra.mxu0 %v476
        %569 = vmatprep.subr.mxu0 0.0
        %570 = vmatpush1.msra.mxu0 %v477
        %571 = vmatprep.subr.mxu0 0.0
        %572 = vmatpush1.msra.mxu0 0.0
        %573 = vmatprep.subr.mxu0 0.0
        %574 = vmatpush1.msra.mxu0 0.0
        %575 = vmatprep.subr.mxu0 0.0
        %576 = vmatpush1.msra.mxu0 0.0
        %577 = vmatprep.subr.mxu0 0.0
        %578 = vmatpush1.msra.mxu0 0.0
        %579 = vmatprep.subr.mxu0 0.0
        %580 = vmatpush1.msra.mxu0 0.0
        %581 = vmatprep.subr.mxu0 0.0
        %582 = vmatpush1.msra.mxu0 0.0
        %583 = vmatprep.subr.mxu0 0.0
        %584 = vmatpush1.msra.mxu0 0.0
        %585 = vmatprep.subr.mxu0 0.0
        %586 = vmatpush1.msra.mxu0 0.0
        %587 = vmatprep.subr.mxu0 0.0
        %588 = vmatpush1.msra.mxu0 0.0
        %589 = vmatprep.subr.mxu0 0.0
        %590 = vmatpush1.msra.mxu0 0.0
        %591 = vmatprep.subr.mxu0 0.0
        %592 = vmatpush1.msra.mxu0 0.0
        %593 = vmatprep.subr.mxu0 0.0
        %594 = vmatpush1.msra.mxu0 0.0
        %595 = vmatprep.subr.mxu0 0.0
        %596 = vmatpush1.msra.mxu0 0.0
        %597 = vmatprep.subr.mxu0 0.0
        %598 = vmatpush1.msra.mxu0 0.0
        %599 = vmatprep.subr.mxu0 0.0
        %600 = vmatpush1.msra.mxu0 0.0
        %601 = vmatprep.subr.mxu0 0.0
        %602 = vmatpush1.msra.mxu0 0.0
        %603 = vmatprep.subr.mxu0 0.0
        %604 = vmatpush1.msra.mxu0 0.0
        %605 = vmatprep.subr.mxu0 0.0
        %606 = vmatpush1.msra.mxu0 0.0
        %607 = vmatprep.subr.mxu0 0.0
        %608 = vmatpush1.msra.mxu0 0.0
        %609 = vmatprep.subr.mxu0 0.0
        %610 = vmatpush1.msra.mxu0 0.0
        %611 = vmatprep.subr.mxu0 0.0
        %612 = vmatpush1.msra.mxu0 0.0
        %613 = vmatprep.subr.mxu0 0.0
        %614 = vmatpush1.msra.mxu0 0.0
        %615 = vmatprep.subr.mxu0 0.0
        %616 = vmatpush1.msra.mxu0 0.0
        %617 = vmatprep.subr.mxu0 0.0
        %618 = vmatpush1.msra.mxu0 0.0
        %619 = vmatprep.subr.mxu0 0.0
        %620 = vmatpush1.msra.mxu0 0.0
        %621 = vmatprep.subr.mxu0 0.0
        %622 = vmatpush1.msra.mxu0 0.0
        %623 = vmatprep.subr.mxu0 0.0
        %624 = vmatpush1.msra.mxu0 0.0
        %625 = vmatprep.subr.mxu0 0.0
        %626 = vmatpush1.msra.mxu0 0.0
        %627 = vmatprep.subr.mxu0 0.0
        %628 = vmatpush1.msra.mxu0 0.0
        %629 = vmatprep.subr.mxu0 0.0
        %630 = vmatpush1.msra.mxu0 0.0
        %631 = vmatprep.mubr.f32.mxu0 0.0
        %632 = vmatmul.mubr.f32.gmra.mrb[0].mxu0 %v565
        %v633 = vpop.f32.mrb[0].mxu0
        %v634 = vadd.f32 0.0, %v633
        %v635 = vpop.f32.mrb[0].mxu0
        %636 = vdwg.mxu0
        %v637 = vpack.c.bf16 %v634, %v634
        %s638 = scalar_lea.vmem [#allocation10], 64
        %v639 = vld [vmem:[%s638] sm:$0xff]
        %v640 = vld [vmem:[%s638 + $0x8] sm:$0xff]
        %v641 = vld [vmem:[%s638 + $0x10] sm:$0xff]
        %v642 = vld [vmem:[%s638 + $0x18] sm:$0xff]
        %v643 = vld [vmem:[%s638 + $0x20] sm:$0xff]
        %v644 = vld [vmem:[%s638 + $0x28] sm:$0xff]
        %v645 = vld [vmem:[%s638 + $0x30] sm:$0xff]
        %v646 = vld [vmem:[%s638 + $0x38] sm:$0xff]
        %v655 = vunpack.c.l.b16 %v639
        %v656 = vunpack.c.h.b16 %v639
        %v657 = vunpack.c.l.b16 %v640
        %v658 = vunpack.c.h.b16 %v640
        %v659 = vunpack.c.l.b16 %v641
        %v660 = vunpack.c.h.b16 %v641
        %v661 = vunpack.c.l.b16 %v642
        %v662 = vunpack.c.h.b16 %v642
        %v663 = vunpack.c.l.b16 %v643
        %v664 = vunpack.c.h.b16 %v643
        %v665 = vunpack.c.l.b16 %v644
        %v666 = vunpack.c.h.b16 %v644
        %v667 = vunpack.c.l.b16 %v645
        %v668 = vunpack.c.h.b16 %v645
        %v669 = vunpack.c.l.b16 %v646
        %v670 = vunpack.c.h.b16 %v646
        %v671 = vpack.c.b16 %v657, %v655
        %v672 = vpack.c.b16 %v658, %v656
        %v673 = vpack.c.b16 %v661, %v659
        %v674 = vpack.c.b16 %v662, %v660
        %v675 = vpack.c.b16 %v665, %v663
        %v676 = vpack.c.b16 %v666, %v664
        %v677 = vpack.c.b16 %v669, %v667
        %v678 = vpack.c.b16 %v670, %v668
        %vm687 = vcmask 523264
        %v689 = vsel %vm687, %v637, 0
        %691 = vmatprep.subr.bf16.mxu0 %v672
        %692 = vmatpush1.bf16.msra.mxu0 %v671
        %693 = vmatprep.subr.bf16.mxu0 %v674
        %694 = vmatpush1.bf16.msra.mxu0 %v673
        %695 = vmatprep.subr.bf16.mxu0 %v676
        %696 = vmatpush1.bf16.msra.mxu0 %v675
        %697 = vmatprep.subr.bf16.mxu0 %v678
        %698 = vmatpush1.bf16.msra.mxu0 %v677
        %699 = vmatprep.subr.bf16.mxu0 0
        %700 = vmatpush1.bf16.msra.mxu0 0
        %701 = vmatprep.subr.bf16.mxu0 0
        %702 = vmatpush1.bf16.msra.mxu0 0
        %703 = vmatprep.subr.bf16.mxu0 0
        %704 = vmatpush1.bf16.msra.mxu0 0
        %705 = vmatprep.subr.bf16.mxu0 0
        %706 = vmatpush1.bf16.msra.mxu0 0
        %707 = vmatprep.subr.bf16.mxu0 0
        %708 = vmatpush1.bf16.msra.mxu0 0
        %709 = vmatprep.subr.bf16.mxu0 0
        %710 = vmatpush1.bf16.msra.mxu0 0
        %711 = vmatprep.subr.bf16.mxu0 0
        %712 = vmatpush1.bf16.msra.mxu0 0
        %713 = vmatprep.subr.bf16.mxu0 0
        %714 = vmatpush1.bf16.msra.mxu0 0
        %715 = vmatprep.subr.bf16.mxu0 0
        %716 = vmatpush1.bf16.msra.mxu0 0
        %717 = vmatprep.subr.bf16.mxu0 0
        %718 = vmatpush1.bf16.msra.mxu0 0
        %719 = vmatprep.subr.bf16.mxu0 0
        %720 = vmatpush1.bf16.msra.mxu0 0
        %721 = vmatprep.subr.bf16.mxu0 0
        %722 = vmatpush1.bf16.msra.mxu0 0
        %723 = vmatprep.mubr.bf16.mxu0 0
        %724 = vmatmul.mubr.bf16.gmra.mrb[0].mxu0 %v689
        %v725 = vpop.f32.mrb[0].mxu0
        %v726 = vadd.f32 0.0, %v725
        %v727 = vpop.f32.mrb[0].mxu0
        %v728 = vadd.f32 0.0, %v727
        %v729 = vpop.f32.mrb[0].mxu0
        %v730 = vpop.f32.mrb[0].mxu0
        %731 = vdwg.mxu0
        %v740 = vunpack.c.l.b16 %v554
        %v741 = vunpack.c.h.b16 %v554
        %v742 = vunpack.c.l.b16 %v555
        %v743 = vunpack.c.h.b16 %v555
        %v744 = vunpack.c.l.b16 %v556
        %v745 = vunpack.c.h.b16 %v556
        %v746 = vunpack.c.l.b16 %v557
        %v747 = vunpack.c.h.b16 %v557
        %v748 = vunpack.c.l.b16 %v558
        %v749 = vunpack.c.h.b16 %v558
        %v750 = vunpack.c.l.b16 %v559
        %v751 = vunpack.c.h.b16 %v559
        %v752 = vunpack.c.l.b16 %v560
        %v753 = vunpack.c.h.b16 %v560
        %v754 = vunpack.c.l.b16 %v561
        %v755 = vunpack.c.h.b16 %v561
        %v756 = vpack.c.b16 %v742, %v740
        %v757 = vpack.c.b16 %v743, %v741
        %v758 = vpack.c.b16 %v746, %v744
        %v759 = vpack.c.b16 %v747, %v745
        %v760 = vpack.c.b16 %v750, %v748
        %v761 = vpack.c.b16 %v751, %v749
        %v762 = vpack.c.b16 %v754, %v752
        %v763 = vpack.c.b16 %v755, %v753
        %v773 = vsel %vm687, %v553, 0
        %775 = vmatprep.subr.bf16.mxu0 %v757
        %776 = vmatpush1.bf16.msra.mxu0 %v756
        %777 = vmatprep.subr.bf16.mxu0 %v759
        %778 = vmatpush1.bf16.msra.mxu0 %v758
        %779 = vmatprep.subr.bf16.mxu0 %v761
        %780 = vmatpush1.bf16.msra.mxu0 %v760
        %781 = vmatprep.subr.bf16.mxu0 %v763
        %782 = vmatpush1.bf16.msra.mxu0 %v762
        %783 = vmatprep.subr.bf16.mxu0 0
        %784 = vmatpush1.bf16.msra.mxu0 0
        %785 = vmatprep.subr.bf16.mxu0 0
        %786 = vmatpush1.bf16.msra.mxu0 0
        %787 = vmatprep.subr.bf16.mxu0 0
        %788 = vmatpush1.bf16.msra.mxu0 0
        %789 = vmatprep.subr.bf16.mxu0 0
        %790 = vmatpush1.bf16.msra.mxu0 0
        %791 = vmatprep.subr.bf16.mxu0 0
        %792 = vmatpush1.bf16.msra.mxu0 0
        %793 = vmatprep.subr.bf16.mxu0 0
        %794 = vmatpush1.bf16.msra.mxu0 0
        %795 = vmatprep.subr.bf16.mxu0 0
        %796 = vmatpush1.bf16.msra.mxu0 0
        %797 = vmatprep.subr.bf16.mxu0 0
        %798 = vmatpush1.bf16.msra.mxu0 0
        %799 = vmatprep.subr.bf16.mxu0 0
        %800 = vmatpush1.bf16.msra.mxu0 0
        %801 = vmatprep.subr.bf16.mxu0 0
        %802 = vmatpush1.bf16.msra.mxu0 0
        %803 = vmatprep.subr.bf16.mxu0 0
        %804 = vmatpush1.bf16.msra.mxu0 0
        %805 = vmatprep.subr.bf16.mxu0 0
        %806 = vmatpush1.bf16.msra.mxu0 0
        %807 = vmatprep.mubr.bf16.mxu0 0
        %808 = vmatmul.mubr.bf16.gmra.mrb[0].mxu0 %v773
        %v809 = vpop.f32.mrb[0].mxu0
        %v810 = vadd.f32 %v726, %v809
        %v811 = vpop.f32.mrb[0].mxu0
        %v812 = vadd.f32 %v728, %v811
        %v813 = vpop.f32.mrb[0].mxu0
        %v814 = vpop.f32.mrb[0].mxu0
        %815 = vdwg.mxu0
        %s816 = scalar_lea.vmem %s398, 16 [#allocation8]
        %v817 = vld [vmem:[%s816] sm:$0xff]
        %v819 = vsel %vm479, %v817, 0
        %821 = vmatprep.subr.mxu0 0.0
        %822 = vmatpush1.msra.mxu0 %v476
        %823 = vmatprep.subr.mxu0 0.0
        %824 = vmatpush1.msra.mxu0 %v477
        %825 = vmatprep.subr.mxu0 0.0
        %826 = vmatpush1.msra.mxu0 0.0
        %827 = vmatprep.subr.mxu0 0.0
        %828 = vmatpush1.msra.mxu0 0.0
        %829 = vmatprep.subr.mxu0 0.0
        %830 = vmatpush1.msra.mxu0 0.0
        %831 = vmatprep.subr.mxu0 0.0
        %832 = vmatpush1.msra.mxu0 0.0
        %833 = vmatprep.subr.mxu0 0.0
        %834 = vmatpush1.msra.mxu0 0.0
        %835 = vmatprep.subr.mxu0 0.0
        %836 = vmatpush1.msra.mxu0 0.0
        %837 = vmatprep.subr.mxu0 0.0
        %838 = vmatpush1.msra.mxu0 0.0
        %839 = vmatprep.subr.mxu0 0.0
        %840 = vmatpush1.msra.mxu0 0.0
        %841 = vmatprep.subr.mxu0 0.0
        %842 = vmatpush1.msra.mxu0 0.0
        %843 = vmatprep.subr.mxu0 0.0
        %844 = vmatpush1.msra.mxu0 0.0
        %845 = vmatprep.subr.mxu0 0.0
        %846 = vmatpush1.msra.mxu0 0.0
        %847 = vmatprep.subr.mxu0 0.0
        %848 = vmatpush1.msra.mxu0 0.0
        %849 = vmatprep.subr.mxu0 0.0
        %850 = vmatpush1.msra.mxu0 0.0
        %851 = vmatprep.subr.mxu0 0.0
        %852 = vmatpush1.msra.mxu0 0.0
        %853 = vmatprep.subr.mxu0 0.0
        %854 = vmatpush1.msra.mxu0 0.0
        %855 = vmatprep.subr.mxu0 0.0
        %856 = vmatpush1.msra.mxu0 0.0
        %857 = vmatprep.subr.mxu0 0.0
        %858 = vmatpush1.msra.mxu0 0.0
        %859 = vmatprep.subr.mxu0 0.0
        %860 = vmatpush1.msra.mxu0 0.0
        %861 = vmatprep.subr.mxu0 0.0
        %862 = vmatpush1.msra.mxu0 0.0
        %863 = vmatprep.subr.mxu0 0.0
        %864 = vmatpush1.msra.mxu0 0.0
        %865 = vmatprep.subr.mxu0 0.0
        %866 = vmatpush1.msra.mxu0 0.0
        %867 = vmatprep.subr.mxu0 0.0
        %868 = vmatpush1.msra.mxu0 0.0
        %869 = vmatprep.subr.mxu0 0.0
        %870 = vmatpush1.msra.mxu0 0.0
        %871 = vmatprep.subr.mxu0 0.0
        %872 = vmatpush1.msra.mxu0 0.0
        %873 = vmatprep.subr.mxu0 0.0
        %874 = vmatpush1.msra.mxu0 0.0
        %875 = vmatprep.subr.mxu0 0.0
        %876 = vmatpush1.msra.mxu0 0.0
        %877 = vmatprep.subr.mxu0 0.0
        %878 = vmatpush1.msra.mxu0 0.0
        %879 = vmatprep.subr.mxu0 0.0
        %880 = vmatpush1.msra.mxu0 0.0
        %881 = vmatprep.subr.mxu0 0.0
        %882 = vmatpush1.msra.mxu0 0.0
        %883 = vmatprep.subr.mxu0 0.0
        %884 = vmatpush1.msra.mxu0 0.0
        %885 = vmatprep.mubr.f32.mxu0 0.0
        %886 = vmatmul.mubr.f32.gmra.mrb[0].mxu0 %v819
        %v887 = vpop.f32.mrb[0].mxu0
        %v888 = vadd.f32 0.0, %v887
        %v889 = vpop.f32.mrb[0].mxu0
        %890 = vdwg.mxu0
        %v891 = vpack.c.bf16 %v888, %v888
        %s892 = scalar_lea.vmem [#allocation10], 128
        %v893 = vld [vmem:[%s892] sm:$0xff]
        %v894 = vld [vmem:[%s892 + $0x8] sm:$0xff]
        %v895 = vld [vmem:[%s892 + $0x10] sm:$0xff]
        %v896 = vld [vmem:[%s892 + $0x18] sm:$0xff]
        %v897 = vld [vmem:[%s892 + $0x20] sm:$0xff]
        %v898 = vld [vmem:[%s892 + $0x28] sm:$0xff]
        %v899 = vld [vmem:[%s892 + $0x30] sm:$0xff]
        %v900 = vld [vmem:[%s892 + $0x38] sm:$0xff]
        %v909 = vunpack.c.l.b16 %v893
        %v910 = vunpack.c.h.b16 %v893
        %v911 = vunpack.c.l.b16 %v894
        %v912 = vunpack.c.h.b16 %v894
        %v913 = vunpack.c.l.b16 %v895
        %v914 = vunpack.c.h.b16 %v895
        %v915 = vunpack.c.l.b16 %v896
        %v916 = vunpack.c.h.b16 %v896
        %v917 = vunpack.c.l.b16 %v897
        %v918 = vunpack.c.h.b16 %v897
        %v919 = vunpack.c.l.b16 %v898
        %v920 = vunpack.c.h.b16 %v898
        %v921 = vunpack.c.l.b16 %v899
        %v922 = vunpack.c.h.b16 %v899
        %v923 = vunpack.c.l.b16 %v900
        %v924 = vunpack.c.h.b16 %v900
        %v925 = vpack.c.b16 %v911, %v909
        %v926 = vpack.c.b16 %v912, %v910
        %v927 = vpack.c.b16 %v915, %v913
        %v928 = vpack.c.b16 %v916, %v914
        %v929 = vpack.c.b16 %v919, %v917
        %v930 = vpack.c.b16 %v920, %v918
        %v931 = vpack.c.b16 %v923, %v921
        %v932 = vpack.c.b16 %v924, %v922
        %v942 = vsel %vm687, %v891, 0
        %944 = vmatprep.subr.bf16.mxu0 %v926
        %945 = vmatpush1.bf16.msra.mxu0 %v925
        %946 = vmatprep.subr.bf16.mxu0 %v928
        %947 = vmatpush1.bf16.msra.mxu0 %v927
        %948 = vmatprep.subr.bf16.mxu0 %v930
        %949 = vmatpush1.bf16.msra.mxu0 %v929
        %950 = vmatprep.subr.bf16.mxu0 %v932
        %951 = vmatpush1.bf16.msra.mxu0 %v931
        %952 = vmatprep.subr.bf16.mxu0 0
        %953 = vmatpush1.bf16.msra.mxu0 0
        %954 = vmatprep.subr.bf16.mxu0 0
        %955 = vmatpush1.bf16.msra.mxu0 0
        %956 = vmatprep.subr.bf16.mxu0 0
        %957 = vmatpush1.bf16.msra.mxu0 0
        %958 = vmatprep.subr.bf16.mxu0 0
        %959 = vmatpush1.bf16.msra.mxu0 0
        %960 = vmatprep.subr.bf16.mxu0 0
        %961 = vmatpush1.bf16.msra.mxu0 0
        %962 = vmatprep.subr.bf16.mxu0 0
        %963 = vmatpush1.bf16.msra.mxu0 0
        %964 = vmatprep.subr.bf16.mxu0 0
        %965 = vmatpush1.bf16.msra.mxu0 0
        %966 = vmatprep.subr.bf16.mxu0 0
        %967 = vmatpush1.bf16.msra.mxu0 0
        %968 = vmatprep.subr.bf16.mxu0 0
        %969 = vmatpush1.bf16.msra.mxu0 0
        %970 = vmatprep.subr.bf16.mxu0 0
        %971 = vmatpush1.bf16.msra.mxu0 0
        %972 = vmatprep.subr.bf16.mxu0 0
        %973 = vmatpush1.bf16.msra.mxu0 0
        %974 = vmatprep.subr.bf16.mxu0 0
        %975 = vmatpush1.bf16.msra.mxu0 0
        %976 = vmatprep.mubr.bf16.mxu0 0
        %977 = vmatmul.mubr.bf16.gmra.mrb[0].mxu0 %v942
        %v978 = vpop.f32.mrb[0].mxu0
        %v979 = vadd.f32 0.0, %v978
        %v980 = vpop.f32.mrb[0].mxu0
        %v981 = vadd.f32 0.0, %v980
        %v982 = vpop.f32.mrb[0].mxu0
        %v983 = vpop.f32.mrb[0].mxu0
        %984 = vdwg.mxu0
        %v985 = vadd.f32 %v810, %v979
        %v986 = vadd.f32 %v812, %v981
        %v987 = vld [vmem:[#allocation11] sm:$0x3]
        %v989 = vlaneseq
        %v990 = vshrl.u32 %v989, 7
        %v991 = vsub.s32 0, %v990
        %v992 = vrot.slane %v987, %v991
        %v993 = vlaneseq
        %v994 = vshrl.u32 %v993, 7
        %v995 = vsub.s32 1, %v994
        %v996 = vrot.slane %v987, %v995
        %v999 = vadd.f32 %v985, %v992
        %v1000 = vadd.f32 %v986, %v996
        %1001 = vst [vmem:[%s447] sm:$0xff] %v999
        %1002 = vst [vmem:[%s447 + $0x8] sm:$0xff] %v1000
        %v1003 = vrot.slane %v999, 4
        %v1004 = vadd.f32 %v999, %v1003
        %v1005 = vrot.slane %v1004, 2
        %v1006 = vadd.f32 %v1004, %v1005
        %v1007 = vrot.slane %v1006, 1
        %v1008 = vadd.f32 %v1006, %v1007
        %v1009 = vrot.slane %v1000, 4
        %v1010 = vadd.f32 %v1000, %v1009
        %v1011 = vrot.slane %v1010, 2
        %v1012 = vadd.f32 %v1010, %v1011
        %v1013 = vrot.slane %v1012, 1
        %v1014 = vadd.f32 %v1012, %v1013
        %v1015 = vmul.f32 %v999, %v999
        %v1016 = vmul.f32 %v1000, %v1000
        %v1017 = vrot.slane %v1015, 4
        %v1018 = vadd.f32 %v1015, %v1017
        %v1019 = vrot.slane %v1018, 2
        %v1020 = vadd.f32 %v1018, %v1019
        %v1021 = vrot.slane %v1020, 1
        %v1022 = vadd.f32 %v1020, %v1021
        %v1023 = vrot.slane %v1016, 4
        %v1024 = vadd.f32 %v1016, %v1023
        %v1025 = vrot.slane %v1024, 2
        %v1026 = vadd.f32 %v1024, %v1025
        %v1027 = vrot.slane %v1026, 1
        %v1028 = vadd.f32 %v1026, %v1027
        %vm1029 = vcmask 1040384
        %v1030 = vsel %vm1029, %v1008, %v1022
        %v1031 = vsel %vm1029, %v1014, %v1028
        %v1034 = vcombine.low %v1030, %v1031
        %v1036 = vunpack.c.l.s4 1983009808
        %v1037 = vunpack.c.0.s8 %v1036
        %v1038 = vlaneseq
        %v1039 = vshrl.u32 %v1038, 7
        %v1040 = vsub.s32 %v1037, %v1039
        %v1041 = vrot.slane %v1034, %v1040
        %1043 = vst [vmem:[%s454] sm:$0xf] %v1041
        %s1044 = sand.u32 %s203, 1
        %s1045 = scalar_lea.sflag [#allocation4], %s1044
        %s1046 = sand.u32 %s203, 1
        %s1047 = smul.addr %s1046, 16
        %s1048 = scalar_lea.vmem [#allocation13], %s1047
        %s1049 = sand.u32 %s231, 1
        %s1050 = scalar_lea.sflag [#allocation15], %s1049
        %s1051 = sand.u32 %s231, 1
        %s1052 = smul.addr %s1051, 4
        %s1053 = scalar_lea.vmem [#allocation14], %s1052
        // Predicated region
        $region69: #{g_resblock_cond_forward.2} parent=43 // pred_check
          %p1054 = pneg %p213
        $region70: #{g_resblock_cond_forward.2} parent=43 // pred_check_branch
          %1056 = sbr.rel (%p1054) target = $region72
        $region71: #{g_resblock_cond_forward.2} parent=43 // pred_region
          %s1058 = ssub.s32 256, 256
          %1059 = vsyncadd %s1045, %s1058
          %s1060 = smul.addr %s40, 2
          %s1061 = smul.addr %s39, 8
          %s1062 = sadd.s32 %s1060, %s1061
          %s1063 = smul.addr %s1062, 128
          %s1064 = scalar_lea.hbm %s6, %s1063
          %s1066 = sshll.u32 %s1048, 4
          %s1067 = int_to_ptr.vmem [resolvable:$true] %s1066
          %1069 = dma.vmem_to_hbm [thread:$0]  %s1067, 256, %s1064, %s1045
        $region72: #{g_resblock_cond_forward.2} parent=43 // pred_fallthru
          _
        // Predicated region
        $region73: #{g_resblock_cond_forward.2} parent=43 // pred_check
          %p1070 = pneg %p241
        $region74: #{g_resblock_cond_forward.2} parent=43 // pred_check_branch
          %1072 = sbr.rel (%p1070) target = $region76
        $region75: #{g_resblock_cond_forward.2} parent=43 // pred_region
          %s1074 = ssub.s32 64, 64
          %1075 = vsyncadd %s1050, %s1074
          %s1076 = smul.addr %s40, 2
          %s1077 = smul.addr %s39, 8
          %s1078 = sadd.s32 %s1076, %s1077
          %s1079 = smul.addr %s1078, 32
          %s1080 = scalar_lea.hbm %s7, %s1079
          %s1082 = sshll.u32 %s1053, 4
          %s1083 = int_to_ptr.vmem [resolvable:$true] %s1082
          %1085 = dma.vmem_to_hbm [thread:$0]  %s1083, 64, %s1080, %s1050
        $region76: #{g_resblock_cond_forward.2} parent=43 // pred_fallthru
          _
      $region44: #{g_resblock_cond_forward.2} parent=5 // pred_fallthru
        _
      %p1086 = scmp.le.s32.totalorder 2, %s30
      // Predicated region
      $region77: #{g_resblock_cond_forward.2} parent=5 // pred_check
        %p1087 = pneg %p1086
      $region78: #{g_resblock_cond_forward.2} parent=5 // pred_check_branch
        %1089 = sbr.rel (%p1087) target = $region80
      $region79: #{g_resblock_cond_forward.2} parent=5 // pred_region
        %s1090 = ssub.s32 %s30, 2
        // Predicated region
        $region81: #{g_resblock_cond_forward.2} parent=79 // pred_check
          %p1091 = pneg %p219
        $region82: #{g_resblock_cond_forward.2} parent=79 // pred_check_branch
          %1093 = sbr.rel (%p1091) target = $region84
        $region83: #{g_resblock_cond_forward.2} parent=79 // pred_region
          %s1094 = sand.u32 %s204, 1
          %s1095 = scalar_lea.sflag [#allocation4], %s1094
          %s1096 = sand.u32 %s204, 1
          %s1097 = smul.addr %s1096, 16
          %s1098 = scalar_lea.vmem [#allocation13], %s1097
          %1099 = dma.done %s1095, 256
        $region84: #{g_resblock_cond_forward.2} parent=79 // pred_fallthru
          _
        // Predicated region
        $region85: #{g_resblock_cond_forward.2} parent=79 // pred_check
          %p1100 = pneg %p247
        $region86: #{g_resblock_cond_forward.2} parent=79 // pred_check_branch
          %1102 = sbr.rel (%p1100) target = $region88
        $region87: #{g_resblock_cond_forward.2} parent=79 // pred_region
          %s1103 = sand.u32 %s232, 1
          %s1104 = scalar_lea.sflag [#allocation15], %s1103
          %s1105 = sand.u32 %s232, 1
          %s1106 = smul.addr %s1105, 4
          %s1107 = scalar_lea.vmem [#allocation14], %s1106
          %1108 = dma.done %s1104, 64
        $region88: #{g_resblock_cond_forward.2} parent=79 // pred_fallthru
          _
      $region80: #{g_resblock_cond_forward.2} parent=5 // pred_fallthru
        _
    $region6: #{g_resblock_cond_forward.2} parent=1 // loop_footer
      %s34 = sadd.s32 1, %s30
    $region7: #{g_resblock_cond_forward.2} parent=1 // loop_footer_branch
      %29 = sbr.rel target = $region3
    $region8: #{g_resblock_cond_forward.2} parent=1 // loop_exit
      _
    %1109 = vsyncpa [#allocation3], 1
    %s1110 = scalar_lea.sflag [#allocation3], 1
    %1111 = vsyncpa %s1110, 1
    %1112 = vsyncpa [#allocation6], 1
    %s1113 = scalar_lea.sflag [#allocation6], 1
    %1114 = vsyncpa %s1113, 1
    %1115 = vsyncpa [#allocation9], 1
    %s1116 = scalar_lea.sflag [#allocation9], 1
    %1117 = vsyncpa %s1116, 1
    %1118 = vsyncpa [#allocation12], 1
    %1119 = vsyncpa [#allocation4], 1
    %s1120 = scalar_lea.sflag [#allocation4], 1
    %1121 = vsyncpa %s1120, 1
    %1122 = vsyncpa [#allocation15], 1
    %s1123 = scalar_lea.sflag [#allocation15], 1
    %1124 = vsyncpa %s1123, 1

// kernel: g_resblock_cond_forward.3
$region0: #{g_resblock_cond_forward.3}
  #allocation0 [shape = 'u32[]', space=smem, size = 0x4, offset = 0x4, fixed_abs, tag = 'smem constant byte address 0x4 - core index']
  #allocation1 [shape = 'u32[144,128]{1,0:T(1,128)}', space=vmem, size = 0x12000, scoped, tag = 'internal scratch']
  %s0 = inlined_call_operand.hbm [shape: f32[2,32,256], index: 0, kind: input, shape index: {}]
  %s1 = inlined_call_operand.hbm [shape: f32[2,16,64], index: 1, kind: input, shape index: {}]
  %s2 = inlined_call_operand.hbm [shape: f32[2,1,256], index: 2, kind: input, shape index: {}]
  %s3 = inlined_call_operand.hbm [shape: f32[2,1,256], index: 3, kind: input, shape index: {}]
  %s4 = inlined_call_operand.hbm [shape: f32[3,32,32], index: 4, kind: input, shape index: {}]
  %s5 = inlined_call_operand.hbm [shape: bf16[3,256,256], index: 5, kind: input, shape index: {}]
  %s6 = inlined_call_operand.hbm [shape: f32[32,16], index: 6, kind: input, shape index: {}]
  %s7 = inlined_call_operand.hbm [shape: bf16[64,256], index: 7, kind: input, shape index: {}]
  %s8 = inlined_call_operand.hbm [shape: f32[1,256], index: 8, kind: input, shape index: {}]
  %s9 = inlined_call_operand.hbm [shape: f32[2,32,256], index: 9, kind: output, shape index: {}]
  %s10 = sld [smem:[#allocation0]]
  $region105: #{g_resblock_cond_forward.3} parent=0
    _
  %s12 = ssub.s32 1, %s10
  %s13 = scalar_select 0, %s12, %s10
  $region1: #{g_resblock_cond_forward.3} parent=0
    #allocation2 [shape = 'u8[65536]{0}', space=vmem, size = 0x10000, scoped, tag = 'input window, operand 0']
    #allocation3 [shape = 's32[2]{0}', space=sflag, size = 0x8, scoped, tag = 'scoped memory for g_resblock_cond_forward.3']
    #allocation4 [shape = 's32[2]{0}', space=sflag, size = 0x8, scoped, tag = 'scoped memory for g_resblock_cond_forward.3']
    #allocation5 [shape = 'u8[16384]{0}', space=vmem, size = 0x4000, scoped, tag = 'input window, operand 1']
    #allocation6 [shape = 's32[2]{0}', space=sflag, size = 0x8, scoped, tag = 'scoped memory for g_resblock_cond_forward.3']
    #allocation7 [shape = 'u8[2048]{0}', space=vmem, size = 0x800, scoped, tag = 'input window, operand 2']
    #allocation8 [shape = 'u8[2048]{0}', space=vmem, size = 0x800, scoped, tag = 'input window, operand 3']
    #allocation9 [shape = 's32[2]{0}', space=sflag, size = 0x8, scoped, tag = 'scoped memory for g_resblock_cond_forward.3']
    #allocation10 [shape = 'u8[24576]{0}', space=vmem, size = 0x6000, scoped, tag = 'input window, operand 4']
    #allocation11 [shape = 'u8[393216]{0}', space=vmem, size = 0x60000, scoped, tag = 'input window, operand 5, single buffered']
    #allocation12 [shape = 's32[1]{0}', space=sflag, size = 0x4, scoped, tag = 'scoped memory for g_resblock_cond_forward.3']
    #allocation13 [shape = 'u8[8192]{0}', space=vmem, size = 0x2000, scoped, tag = 'input window, operand 6']
    #allocation14 [shape = 'u8[32768]{0}', space=vmem, size = 0x8000, scoped, tag = 'input window, operand 7, single buffered']
    #allocation15 [shape = 'u8[1024]{0}', space=vmem, size = 0x400, scoped, tag = 'input window, operand 8, single buffered']
    #allocation16 [shape = 'u8[16384]{0}', space=vmem, size = 0x4000, scoped, tag = 'output window, operand 0']
    %14 = vsyncpa [#allocation3], 0
    %s15 = scalar_lea.sflag [#allocation3], 1
    %16 = vsyncpa %s15, 0
    %17 = vsyncpa [#allocation6], 0
    %s18 = scalar_lea.sflag [#allocation6], 1
    %19 = vsyncpa %s18, 0
    %20 = vsyncpa [#allocation9], 0
    %s21 = scalar_lea.sflag [#allocation9], 1
    %22 = vsyncpa %s21, 0
    %23 = vsyncpa [#allocation12], 0
    %24 = vsyncpa [#allocation4], 0
    %s25 = scalar_lea.sflag [#allocation4], 1
    %26 = vsyncpa %s25, 0
    loop: start=0, step=1, limit=10
    $region2: #{g_resblock_cond_forward.3} parent=1 // loop_pre_header
      _
    $region3: #{g_resblock_cond_forward.3} parent=1 // loop_header
      %s28 = sphi 0, %s32
      %p29 = scmp.ge.s32.totalorder %s28, 10
      %s35 = sphi 0, %s47
      %s36 = sphi 0, %s43
      %s37 = sphi 0, %s35
      %s38 = sphi 0, %s36
      %s39 = sphi 0, %s37
      %s40 = sphi 0, %s38
      %s50 = sphi 0, %s52
      %s53 = sphi 0, %s50
      %s54 = sphi 0, %s53
      %s70 = sphi 0, %s54
      %s76 = sphi 0, %s78
      %s79 = sphi 0, %s76
      %s80 = sphi 0, %s79
      %s96 = sphi 0, %s80
      %s102 = sphi 0, %s104
      %s105 = sphi 0, %s102
      %s106 = sphi 0, %s105
      %s122 = sphi 0, %s106
      %s128 = sphi 0, %s130
      %s131 = sphi 0, %s128
      %s132 = sphi 0, %s131
      %s148 = sphi 0, %s132
      %s154 = sphi 0, %s156
      %s157 = sphi 0, %s154
      %s158 = sphi 0, %s157
      %s174 = sphi 0, %s158
      %s178 = sphi 0, %s178
      %s180 = sphi 0, %s178
      %s181 = sphi 0, %s180
      %s195 = sphi 0, %s181
      %s201 = sphi 0, %s203
      %s204 = sphi 0, %s201
      %s205 = sphi 0, %s204
      %s221 = sphi 0, %s205
      %s225 = sphi 0, %s225
      %s227 = sphi 0, %s225
      %s228 = sphi 0, %s227
      %s242 = sphi 0, %s228
      %s246 = sphi 0, %s246
      %s248 = sphi 0, %s246
      %s249 = sphi 0, %s248
      %s263 = sphi 0, %s249
      %s271 = sphi 0, %s273
      %s274 = sphi 0, %s271
      %s275 = sphi 0, %s274
      %s291 = sphi 0, %s275
    $region4: #{g_resblock_cond_forward.3} parent=1 // loop_header_branch
      %31 = sbr.rel (%p29) target = $region8
    $region5: #{g_resblock_cond_forward.3} parent=1 // loop_body
      %s33 = ssub.s32 %s28, 1
      %s34 = ssub.s32 %s28, 2
      %s41 = sadd.s32 1, %s36
      %p42 = scmp.ge.s32.totalorder %s41, 4
      %s43 = scalar_select %p42, 0, %s41
      %s44 = sadd.s32 1, %s35
      %s45 = scalar_select %p42, %s44, %s35
      %p46 = scmp.ge.s32.totalorder %s45, 2
      %s47 = scalar_select %p46, 0, %s45
      %s48 = ssub.s32 %s35, %s47
      %p49 = scmp.eq.s32.totalorder %s48, 0
      %s51 = sadd.s32 %s50, 1
      %s52 = scalar_select %p49, %s50, %s51
      %p55 = pneg %p49
      %p56 = scmp.eq.s32.totalorder %s28, 7
      %p57 = por %p55, %p56
      %p58 = scmp.ne.s32.totalorder %s50, %s53
      %p59 = scmp.eq.s32.totalorder %s28, 0
      %p60 = por %p58, %p59
      %p61 = scmp.ne.s32.totalorder %s50, %s53
      %p62 = scmp.eq.s32.totalorder %s33, 7
      %p63 = por %p61, %p62
      %p64 = scmp.ne.s32.totalorder %s53, %s54
      %p65 = scmp.eq.s32.totalorder %s33, 0
      %p66 = por %p64, %p65
      %p67 = scmp.ne.s32.totalorder %s53, %s54
      %p68 = scmp.eq.s32.totalorder %s34, 7
      %p69 = por %p67, %p68
      %p71 = scmp.ne.s32.totalorder %s54, %s70
      %p72 = scmp.eq.s32.totalorder %s34, 0
      %p73 = por %p71, %p72
      %s74 = ssub.s32 %s35, %s47
      %p75 = scmp.eq.s32.totalorder %s74, 0
      %s77 = sadd.s32 %s76, 1
      %s78 = scalar_select %p75, %s76, %s77
      %p81 = pneg %p75
      %p82 = scmp.eq.s32.totalorder %s28, 7
      %p83 = por %p81, %p82
      %p84 = scmp.ne.s32.totalorder %s76, %s79
      %p85 = scmp.eq.s32.totalorder %s28, 0
      %p86 = por %p84, %p85
      %p87 = scmp.ne.s32.totalorder %s76, %s79
      %p88 = scmp.eq.s32.totalorder %s33, 7
      %p89 = por %p87, %p88
      %p90 = scmp.ne.s32.totalorder %s79, %s80
      %p91 = scmp.eq.s32.totalorder %s33, 0
      %p92 = por %p90, %p91
      %p93 = scmp.ne.s32.totalorder %s79, %s80
      %p94 = scmp.eq.s32.totalorder %s34, 7
      %p95 = por %p93, %p94
      %p97 = scmp.ne.s32.totalorder %s80, %s96
      %p98 = scmp.eq.s32.totalorder %s34, 0
      %p99 = por %p97, %p98
      %s100 = ssub.s32 %s35, %s47
      %p101 = scmp.eq.s32.totalorder %s100, 0
      %s103 = sadd.s32 %s102, 1
      %s104 = scalar_select %p101, %s102, %s103
      %p107 = pneg %p101
      %p108 = scmp.eq.s32.totalorder %s28, 7
      %p109 = por %p107, %p108
      %p110 = scmp.ne.s32.totalorder %s102, %s105
      %p111 = scmp.eq.s32.totalorder %s28, 0
      %p112 = por %p110, %p111
      %p113 = scmp.ne.s32.totalorder %s102, %s105
      %p114 = scmp.eq.s32.totalorder %s33, 7
      %p115 = por %p113, %p114
      %p116 = scmp.ne.s32.totalorder %s105, %s106
      %p117 = scmp.eq.s32.totalorder %s33, 0
      %p118 = por %p116, %p117
      %p119 = scmp.ne.s32.totalorder %s105, %s106
      %p120 = scmp.eq.s32.totalorder %s34, 7
      %p121 = por %p119, %p120
      %p123 = scmp.ne.s32.totalorder %s106, %s122
      %p124 = scmp.eq.s32.totalorder %s34, 0
      %p125 = por %p123, %p124
      %s126 = ssub.s32 %s35, %s47
      %p127 = scmp.eq.s32.totalorder %s126, 0
      %s129 = sadd.s32 %s128, 1
      %s130 = scalar_select %p127, %s128, %s129
      %p133 = pneg %p127
      %p134 = scmp.eq.s32.totalorder %s28, 7
      %p135 = por %p133, %p134
      %p136 = scmp.ne.s32.totalorder %s128, %s131
      %p137 = scmp.eq.s32.totalorder %s28, 0
      %p138 = por %p136, %p137
      %p139 = scmp.ne.s32.totalorder %s128, %s131
      %p140 = scmp.eq.s32.totalorder %s33, 7
      %p141 = por %p139, %p140
      %p142 = scmp.ne.s32.totalorder %s131, %s132
      %p143 = scmp.eq.s32.totalorder %s33, 0
      %p144 = por %p142, %p143
      %p145 = scmp.ne.s32.totalorder %s131, %s132
      %p146 = scmp.eq.s32.totalorder %s34, 7
      %p147 = por %p145, %p146
      %p149 = scmp.ne.s32.totalorder %s132, %s148
      %p150 = scmp.eq.s32.totalorder %s34, 0
      %p151 = por %p149, %p150
      %s152 = ssub.s32 %s36, %s43
      %p153 = scmp.eq.s32.totalorder %s152, 0
      %s155 = sadd.s32 %s154, 1
      %s156 = scalar_select %p153, %s154, %s155
      %p159 = pneg %p153
      %p160 = scmp.eq.s32.totalorder %s28, 7
      %p161 = por %p159, %p160
      %p162 = scmp.ne.s32.totalorder %s154, %s157
      %p163 = scmp.eq.s32.totalorder %s28, 0
      %p164 = por %p162, %p163
      %p165 = scmp.ne.s32.totalorder %s154, %s157
      %p166 = scmp.eq.s32.totalorder %s33, 7
      %p167 = por %p165, %p166
      %p168 = scmp.ne.s32.totalorder %s157, %s158
      %p169 = scmp.eq.s32.totalorder %s33, 0
      %p170 = por %p168, %p169
      %p171 = scmp.ne.s32.totalorder %s157, %s158
      %p172 = scmp.eq.s32.totalorder %s34, 7
      %p173 = por %p171, %p172
      %p175 = scmp.ne.s32.totalorder %s158, %s174
      %p176 = scmp.eq.s32.totalorder %s34, 0
      %p177 = por %p175, %p176
      %s179 = sadd.s32 %s178, 1
      %p182 = scmp.eq.s32.totalorder %s28, 7
      %p183 = scmp.ne.s32.totalorder %s178, %s180
      %p184 = scmp.eq.s32.totalorder %s28, 0
      %p185 = por %p183, %p184
      %p186 = scmp.ne.s32.totalorder %s178, %s180
      %p187 = scmp.eq.s32.totalorder %s33, 7
      %p188 = por %p186, %p187
      %p189 = scmp.ne.s32.totalorder %s180, %s181
      %p190 = scmp.eq.s32.totalorder %s33, 0
      %p191 = por %p189, %p190
      %p192 = scmp.ne.s32.totalorder %s180, %s181
      %p193 = scmp.eq.s32.totalorder %s34, 7
      %p194 = por %p192, %p193
      %p196 = scmp.ne.s32.totalorder %s181, %s195
      %p197 = scmp.eq.s32.totalorder %s34, 0
      %p198 = por %p196, %p197
      %s199 = ssub.s32 %s36, %s43
      %p200 = scmp.eq.s32.totalorder %s199, 0
      %s202 = sadd.s32 %s201, 1
      %s203 = scalar_select %p200, %s201, %s202
      %p206 = pneg %p200
      %p207 = scmp.eq.s32.totalorder %s28, 7
      %p208 = por %p206, %p207
      %p209 = scmp.ne.s32.totalorder %s201, %s204
      %p210 = scmp.eq.s32.totalorder %s28, 0
      %p211 = por %p209, %p210
      %p212 = scmp.ne.s32.totalorder %s201, %s204
      %p213 = scmp.eq.s32.totalorder %s33, 7
      %p214 = por %p212, %p213
      %p215 = scmp.ne.s32.totalorder %s204, %s205
      %p216 = scmp.eq.s32.totalorder %s33, 0
      %p217 = por %p215, %p216
      %p218 = scmp.ne.s32.totalorder %s204, %s205
      %p219 = scmp.eq.s32.totalorder %s34, 7
      %p220 = por %p218, %p219
      %p222 = scmp.ne.s32.totalorder %s205, %s221
      %p223 = scmp.eq.s32.totalorder %s34, 0
      %p224 = por %p222, %p223
      %s226 = sadd.s32 %s225, 1
      %p229 = scmp.eq.s32.totalorder %s28, 7
      %p230 = scmp.ne.s32.totalorder %s225, %s227
      %p231 = scmp.eq.s32.totalorder %s28, 0
      %p232 = por %p230, %p231
      %p233 = scmp.ne.s32.totalorder %s225, %s227
      %p234 = scmp.eq.s32.totalorder %s33, 7
      %p235 = por %p233, %p234
      %p236 = scmp.ne.s32.totalorder %s227, %s228
      %p237 = scmp.eq.s32.totalorder %s33, 0
      %p238 = por %p236, %p237
      %p239 = scmp.ne.s32.totalorder %s227, %s228
      %p240 = scmp.eq.s32.totalorder %s34, 7
      %p241 = por %p239, %p240
      %p243 = scmp.ne.s32.totalorder %s228, %s242
      %p244 = scmp.eq.s32.totalorder %s34, 0
      %p245 = por %p243, %p244
      %s247 = sadd.s32 %s246, 1
      %p250 = scmp.eq.s32.totalorder %s28, 7
      %p251 = scmp.ne.s32.totalorder %s246, %s248
      %p252 = scmp.eq.s32.totalorder %s28, 0
      %p253 = por %p251, %p252
      %p254 = scmp.ne.s32.totalorder %s246, %s248
      %p255 = scmp.eq.s32.totalorder %s33, 7
      %p256 = por %p254, %p255
      %p257 = scmp.ne.s32.totalorder %s248, %s249
      %p258 = scmp.eq.s32.totalorder %s33, 0
      %p259 = por %p257, %p258
      %p260 = scmp.ne.s32.totalorder %s248, %s249
      %p261 = scmp.eq.s32.totalorder %s34, 7
      %p262 = por %p260, %p261
      %p264 = scmp.ne.s32.totalorder %s249, %s263
      %p265 = scmp.eq.s32.totalorder %s34, 0
      %p266 = por %p264, %p265
      %s267 = ssub.s32 %s35, %s47
      %s268 = ssub.s32 %s36, %s43
      %s269 = sor.u32 %s267, %s268
      %p270 = scmp.eq.s32.totalorder %s269, 0
      %s272 = sadd.s32 %s271, 1
      %s273 = scalar_select %p270, %s271, %s272
      %p276 = pneg %p270
      %p277 = scmp.eq.s32.totalorder %s28, 7
      %p278 = por %p276, %p277
      %p279 = scmp.ne.s32.totalorder %s271, %s274
      %p280 = scmp.eq.s32.totalorder %s28, 0
      %p281 = por %p279, %p280
      %p282 = scmp.ne.s32.totalorder %s271, %s274
      %p283 = scmp.eq.s32.totalorder %s33, 7
      %p284 = por %p282, %p283
      %p285 = scmp.ne.s32.totalorder %s274, %s275
      %p286 = scmp.eq.s32.totalorder %s33, 0
      %p287 = por %p285, %p286
      %p288 = scmp.ne.s32.totalorder %s274, %s275
      %p289 = scmp.eq.s32.totalorder %s34, 7
      %p290 = por %p288, %p289
      %p292 = scmp.ne.s32.totalorder %s275, %s291
      %p293 = scmp.eq.s32.totalorder %s34, 0
      %p294 = por %p292, %p293
      %p295 = scmp.le.s32.totalorder 1, %s28
      %p296 = scmp.lt.s32.totalorder %s28, 9
      %p297 = pnand %p295, %p296
      %p298 = pneg %p297
      // Predicated region
      $region9: #{g_resblock_cond_forward.3} parent=5 // pred_check
        _
      $region10: #{g_resblock_cond_forward.3} parent=5 // pred_check_branch
        %300 = sbr.rel (%p297) target = $region12
      $region11: #{g_resblock_cond_forward.3} parent=5 // pred_region
        %s301 = ssub.s32 %s28, 1
        // Predicated region
        $region13: #{g_resblock_cond_forward.3} parent=11 // pred_check
          %p302 = pneg %p191
        $region14: #{g_resblock_cond_forward.3} parent=11 // pred_check_branch
          %304 = sbr.rel (%p302) target = $region16
        $region15: #{g_resblock_cond_forward.3} parent=11 // pred_region
          %s306 = ssub.s32 12288, 12288
          %307 = vsyncadd [#allocation12], %s306
          %s308 = sshll.u32 [#allocation11], 4
          %s309 = int_to_ptr.vmem [resolvable:$true] %s308
          %314 = dma.hbm_to_vmem [thread:$0]  %s5, 12288, %s309, [#allocation12], 128, 128, 8
        $region16: #{g_resblock_cond_forward.3} parent=11 // pred_fallthru
          _
        // Predicated region
        $region17: #{g_resblock_cond_forward.3} parent=11 // pred_check
          %p315 = pneg %p238
        $region18: #{g_resblock_cond_forward.3} parent=11 // pred_check_branch
          %317 = sbr.rel (%p315) target = $region20
        $region19: #{g_resblock_cond_forward.3} parent=11 // pred_region
          %s319 = ssub.s32 1024, 1024
          %320 = vsyncadd [#allocation6], %s319
          %s321 = sshll.u32 [#allocation14], 4
          %s322 = int_to_ptr.vmem [resolvable:$true] %s321
          %327 = dma.hbm_to_vmem [thread:$0]  %s7, 1024, %s322, [#allocation6], 128, 128, 8
        $region20: #{g_resblock_cond_forward.3} parent=11 // pred_fallthru
          _
        // Predicated region
        $region21: #{g_resblock_cond_forward.3} parent=11 // pred_check
          %p328 = pneg %p259
        $region22: #{g_resblock_cond_forward.3} parent=11 // pred_check_branch
          %330 = sbr.rel (%p328) target = $region24
        $region23: #{g_resblock_cond_forward.3} parent=11 // pred_region
          %s332 = ssub.s32 32, 32
          %333 = vsyncadd [#allocation9], %s332
          %s335 = sshll.u32 [#allocation15], 4
          %s336 = int_to_ptr.vmem [resolvable:$true] %s335
          %338 = dma.hbm_to_vmem [thread:$0]  %s8, 32, %s336, [#allocation9]
        $region24: #{g_resblock_cond_forward.3} parent=11 // pred_fallthru
          _
      $region12: #{g_resblock_cond_forward.3} parent=5 // pred_fallthru
        _
      %p339 = scmp.lt.s32.totalorder %s28, 8
      // Predicated region
      $region25: #{g_resblock_cond_forward.3} parent=5 // pred_check
        %p340 = pneg %p339
      $region26: #{g_resblock_cond_forward.3} parent=5 // pred_check_branch
        %342 = sbr.rel (%p340) target = $region28
      $region27: #{g_resblock_cond_forward.3} parent=5 // pred_region
        // Predicated region
        $region29: #{g_resblock_cond_forward.3} parent=27 // pred_check
          %p343 = pneg %p60
        $region30: #{g_resblock_cond_forward.3} parent=27 // pred_check_branch
          %345 = sbr.rel (%p343) target = $region32
        $region31: #{g_resblock_cond_forward.3} parent=27 // pred_region
          %s346 = sand.u32 %s28, 1
          %s347 = scalar_lea.sflag [#allocation3], %s346
          %s348 = sand.u32 %s50, 1
          %s349 = smul.addr %s348, 64
          %s350 = scalar_lea.vmem [#allocation2], %s349
          %s352 = ssub.s32 1024, 1024
          %353 = vsyncadd %s347, %s352
          %s354 = smul.addr %s35, 8
          %s355 = smul.addr %s354, 128
          %s356 = scalar_lea.hbm %s0, %s355
          %s357 = sshll.u32 %s350, 4
          %s358 = int_to_ptr.vmem [resolvable:$true] %s357
          %363 = dma.hbm_to_vmem [thread:$0]  %s356, 1024, %s358, %s347, 256, 256, 16
        $region32: #{g_resblock_cond_forward.3} parent=27 // pred_fallthru
          _
        // Predicated region
        $region33: #{g_resblock_cond_forward.3} parent=27 // pred_check
          %p364 = pneg %p86
        $region34: #{g_resblock_cond_forward.3} parent=27 // pred_check_branch
          %366 = sbr.rel (%p364) target = $region36
        $region35: #{g_resblock_cond_forward.3} parent=27 // pred_region
          %s367 = sand.u32 %s28, 1
          %s368 = scalar_lea.sflag [#allocation6], %s367
          %s369 = sand.u32 %s76, 1
          %s370 = smul.addr %s369, 16
          %s371 = scalar_lea.vmem [#allocation5], %s370
          %s373 = ssub.s32 256, 256
          %374 = vsyncadd %s368, %s373
          %s375 = smul.addr %s35, 2
          %s376 = smul.addr %s375, 128
          %s377 = scalar_lea.hbm %s1, %s376
          %s378 = sshll.u32 %s371, 4
          %s379 = int_to_ptr.vmem [resolvable:$true] %s378
          %384 = dma.hbm_to_vmem [thread:$0]  %s377, 256, %s379, %s368, 128, 128, 8
        $region36: #{g_resblock_cond_forward.3} parent=27 // pred_fallthru
          _
        // Predicated region
        $region37: #{g_resblock_cond_forward.3} parent=27 // pred_check
          %p385 = pneg %p112
        $region38: #{g_resblock_cond_forward.3} parent=27 // pred_check_branch
          %387 = sbr.rel (%p385) target = $region40
        $region39: #{g_resblock_cond_forward.3} parent=27 // pred_region
          %s388 = sand.u32 %s28, 1
          %s389 = scalar_lea.sflag [#allocation6], %s388
          %s390 = sand.u32 %s102, 1
          %s391 = smul.addr %s390, 2
          %s392 = scalar_lea.vmem [#allocation7], %s391
          %s394 = ssub.s32 32, 32
          %395 = vsyncadd %s389, %s394
          %s396 = smul.addr %s35, 2
          %s397 = smul.addr %s396, 16
          %s398 = scalar_lea.hbm %s2, %s397
          %s400 = sshll.u32 %s392, 4
          %s401 = int_to_ptr.vmem [resolvable:$true] %s400
          %403 = dma.hbm_to_vmem [thread:$0]  %s398, 32, %s401, %s389
        $region40: #{g_resblock_cond_forward.3} parent=27 // pred_fallthru
          _
        // Predicated region
        $region41: #{g_resblock_cond_forward.3} parent=27 // pred_check
          %p404 = pneg %p138
        $region42: #{g_resblock_cond_forward.3} parent=27 // pred_check_branch
          %406 = sbr.rel (%p404) target = $region44
        $region43: #{g_resblock_cond_forward.3} parent=27 // pred_region
          %s407 = sand.u32 %s28, 1
          %s408 = scalar_lea.sflag [#allocation9], %s407
          %s409 = sand.u32 %s128, 1
          %s410 = smul.addr %s409, 2
          %s411 = scalar_lea.vmem [#allocation8], %s410
          %s413 = ssub.s32 32, 32
          %414 = vsyncadd %s408, %s413
          %s415 = smul.addr %s35, 2
          %s416 = smul.addr %s415, 16
          %s417 = scalar_lea.hbm %s3, %s416
          %s419 = sshll.u32 %s411, 4
          %s420 = int_to_ptr.vmem [resolvable:$true] %s419
          %422 = dma.hbm_to_vmem [thread:$0]  %s417, 32, %s420, %s408
        $region44: #{g_resblock_cond_forward.3} parent=27 // pred_fallthru
          _
        // Predicated region
        $region45: #{g_resblock_cond_forward.3} parent=27 // pred_check
          %p423 = pneg %p164
        $region46: #{g_resblock_cond_forward.3} parent=27 // pred_check_branch
          %425 = sbr.rel (%p423) target = $region48
        $region47: #{g_resblock_cond_forward.3} parent=27 // pred_region
          %s426 = sand.u32 %s28, 1
          %s427 = scalar_lea.sflag [#allocation9], %s426
          %s428 = sand.u32 %s154, 1
          %s429 = smul.addr %s428, 24
          %s430 = scalar_lea.vmem [#allocation10], %s429
          %s432 = ssub.s32 384, 384
          %433 = vsyncadd %s427, %s432
          %s434 = smul.addr %s36, 128
          %s435 = scalar_lea.hbm %s4, %s434
          %s436 = sshll.u32 %s430, 4
          %s437 = int_to_ptr.vmem [resolvable:$true] %s436
          %442 = dma.hbm_to_vmem [thread:$0]  %s435, 384, %s437, %s427, 512, 128, 8
        $region48: #{g_resblock_cond_forward.3} parent=27 // pred_fallthru
          _
        // Predicated region
        $region49: #{g_resblock_cond_forward.3} parent=27 // pred_check
          %p443 = pneg %p211
        $region50: #{g_resblock_cond_forward.3} parent=27 // pred_check_branch
          %445 = sbr.rel (%p443) target = $region52
        $region51: #{g_resblock_cond_forward.3} parent=27 // pred_region
          %s446 = sand.u32 %s28, 1
          %s447 = scalar_lea.sflag [#allocation3], %s446
          %s448 = sand.u32 %s201, 1
          %s449 = smul.addr %s448, 8
          %s450 = scalar_lea.vmem [#allocation13], %s449
          %s452 = ssub.s32 128, 128
          %453 = vsyncadd %s447, %s452
          %s454 = smul.addr %s36, 128
          %s455 = scalar_lea.hbm %s6, %s454
          %s457 = sshll.u32 %s450, 4
          %s458 = int_to_ptr.vmem [resolvable:$true] %s457
          %460 = dma.hbm_to_vmem [thread:$0]  %s455, 128, %s458, %s447
        $region52: #{g_resblock_cond_forward.3} parent=27 // pred_fallthru
          _
      $region28: #{g_resblock_cond_forward.3} parent=5 // pred_fallthru
        _
      %p461 = scmp.le.s32.totalorder 1, %s28
      %p462 = scmp.lt.s32.totalorder %s28, 9
      %p463 = pnand %p461, %p462
      %p464 = pneg %p463
      // Predicated region
      $region53: #{g_resblock_cond_forward.3} parent=5 // pred_check
        _
      $region54: #{g_resblock_cond_forward.3} parent=5 // pred_check_branch
        %466 = sbr.rel (%p463) target = $region56
      $region55: #{g_resblock_cond_forward.3} parent=5 // pred_region
        %s467 = ssub.s32 %s28, 1
        %s468 = sand.u32 %s33, 1
        %s469 = scalar_lea.sflag [#allocation3], %s468
        %s470 = sand.u32 %s53, 1
        %s471 = smul.addr %s470, 64
        %s472 = scalar_lea.vmem [#allocation2], %s471
        // Predicated region
        $region57: #{g_resblock_cond_forward.3} parent=55 // pred_check
          %p473 = pneg %p66
        $region58: #{g_resblock_cond_forward.3} parent=55 // pred_check_branch
          %475 = sbr.rel (%p473) target = $region60
        $region59: #{g_resblock_cond_forward.3} parent=55 // pred_region
          %476 = dma.done %s469, 1024
        $region60: #{g_resblock_cond_forward.3} parent=55 // pred_fallthru
          _
        %s477 = sand.u32 %s33, 1
        %s478 = scalar_lea.sflag [#allocation6], %s477
        %s479 = sand.u32 %s79, 1
        %s480 = smul.addr %s479, 16
        %s481 = scalar_lea.vmem [#allocation5], %s480
        // Predicated region
        $region61: #{g_resblock_cond_forward.3} parent=55 // pred_check
          %p482 = pneg %p92
        $region62: #{g_resblock_cond_forward.3} parent=55 // pred_check_branch
          %484 = sbr.rel (%p482) target = $region64
        $region63: #{g_resblock_cond_forward.3} parent=55 // pred_region
          %485 = dma.done %s478, 256
        $region64: #{g_resblock_cond_forward.3} parent=55 // pred_fallthru
          _
        %s486 = sand.u32 %s33, 1
        %s487 = scalar_lea.sflag [#allocation6], %s486
        %s488 = sand.u32 %s105, 1
        %s489 = smul.addr %s488, 2
        %s490 = scalar_lea.vmem [#allocation7], %s489
        // Predicated region
        $region65: #{g_resblock_cond_forward.3} parent=55 // pred_check
          %p491 = pneg %p118
        $region66: #{g_resblock_cond_forward.3} parent=55 // pred_check_branch
          %493 = sbr.rel (%p491) target = $region68
        $region67: #{g_resblock_cond_forward.3} parent=55 // pred_region
          %494 = dma.done %s487, 32
        $region68: #{g_resblock_cond_forward.3} parent=55 // pred_fallthru
          _
        %s495 = sand.u32 %s33, 1
        %s496 = scalar_lea.sflag [#allocation9], %s495
        %s497 = sand.u32 %s131, 1
        %s498 = smul.addr %s497, 2
        %s499 = scalar_lea.vmem [#allocation8], %s498
        // Predicated region
        $region69: #{g_resblock_cond_forward.3} parent=55 // pred_check
          %p500 = pneg %p144
        $region70: #{g_resblock_cond_forward.3} parent=55 // pred_check_branch
          %502 = sbr.rel (%p500) target = $region72
        $region71: #{g_resblock_cond_forward.3} parent=55 // pred_region
          %503 = dma.done %s496, 32
        $region72: #{g_resblock_cond_forward.3} parent=55 // pred_fallthru
          _
        %s504 = sand.u32 %s33, 1
        %s505 = scalar_lea.sflag [#allocation9], %s504
        %s506 = sand.u32 %s157, 1
        %s507 = smul.addr %s506, 24
        %s508 = scalar_lea.vmem [#allocation10], %s507
        // Predicated region
        $region73: #{g_resblock_cond_forward.3} parent=55 // pred_check
          %p509 = pneg %p170
        $region74: #{g_resblock_cond_forward.3} parent=55 // pred_check_branch
          %511 = sbr.rel (%p509) target = $region76
        $region75: #{g_resblock_cond_forward.3} parent=55 // pred_region
          %512 = dma.done %s505, 384
        $region76: #{g_resblock_cond_forward.3} parent=55 // pred_fallthru
          _
        // Predicated region
        $region77: #{g_resblock_cond_forward.3} parent=55 // pred_check
          %p513 = pneg %p191
        $region78: #{g_resblock_cond_forward.3} parent=55 // pred_check_branch
          %515 = sbr.rel (%p513) target = $region80
        $region79: #{g_resblock_cond_forward.3} parent=55 // pred_region
          %516 = dma.done [#allocation12], 12288
        $region80: #{g_resblock_cond_forward.3} parent=55 // pred_fallthru
          _
        %s517 = sand.u32 %s33, 1
        %s518 = scalar_lea.sflag [#allocation3], %s517
        %s519 = sand.u32 %s204, 1
        %s520 = smul.addr %s519, 8
        %s521 = scalar_lea.vmem [#allocation13], %s520
        // Predicated region
        $region81: #{g_resblock_cond_forward.3} parent=55 // pred_check
          %p522 = pneg %p217
        $region82: #{g_resblock_cond_forward.3} parent=55 // pred_check_branch
          %524 = sbr.rel (%p522) target = $region84
        $region83: #{g_resblock_cond_forward.3} parent=55 // pred_region
          %525 = dma.done %s518, 128
        $region84: #{g_resblock_cond_forward.3} parent=55 // pred_fallthru
          _
        // Predicated region
        $region85: #{g_resblock_cond_forward.3} parent=55 // pred_check
          %p526 = pneg %p238
        $region86: #{g_resblock_cond_forward.3} parent=55 // pred_check_branch
          %528 = sbr.rel (%p526) target = $region88
        $region87: #{g_resblock_cond_forward.3} parent=55 // pred_region
          %529 = dma.done [#allocation6], 1024
        $region88: #{g_resblock_cond_forward.3} parent=55 // pred_fallthru
          _
        // Predicated region
        $region89: #{g_resblock_cond_forward.3} parent=55 // pred_check
          %p530 = pneg %p259
        $region90: #{g_resblock_cond_forward.3} parent=55 // pred_check_branch
          %532 = sbr.rel (%p530) target = $region92
        $region91: #{g_resblock_cond_forward.3} parent=55 // pred_region
          %533 = dma.done [#allocation9], 32
        $region92: #{g_resblock_cond_forward.3} parent=55 // pred_fallthru
          _
        %s534 = sand.u32 %s33, 1
        %s535 = scalar_lea.sflag [#allocation3], %s534
        %s536 = sand.u32 %s53, 1
        %s537 = smul.addr %s536, 64
        %s538 = scalar_lea.vmem [#allocation2], %s537
        %p539 = pneg %p66
        %p540 = pneg %p63
        %s541 = sand.u32 %s33, 1
        %s542 = scalar_lea.sflag [#allocation6], %s541
        %s543 = sand.u32 %s79, 1
        %s544 = smul.addr %s543, 16
        %s545 = scalar_lea.vmem [#allocation5], %s544
        %p546 = pneg %p92
        %p547 = pneg %p89
        %s548 = sand.u32 %s33, 1
        %s549 = scalar_lea.sflag [#allocation6], %s548
        %s550 = sand.u32 %s105, 1
        %s551 = smul.addr %s550, 2
        %s552 = scalar_lea.vmem [#allocation7], %s551
        %p553 = pneg %p118
        %p554 = pneg %p115
        %s555 = sand.u32 %s33, 1
        %s556 = scalar_lea.sflag [#allocation9], %s555
        %s557 = sand.u32 %s131, 1
        %s558 = smul.addr %s557, 2
        %s559 = scalar_lea.vmem [#allocation8], %s558
        %p560 = pneg %p144
        %p561 = pneg %p141
        %s562 = sand.u32 %s33, 1
        %s563 = scalar_lea.sflag [#allocation9], %s562
        %s564 = sand.u32 %s157, 1
        %s565 = smul.addr %s564, 24
        %s566 = scalar_lea.vmem [#allocation10], %s565
        %p567 = pneg %p170
        %p568 = pneg %p167
        %p569 = pneg %p191
        %p570 = pneg %p188
        %s571 = sand.u32 %s33, 1
        %s572 = scalar_lea.sflag [#allocation3], %s571
        %s573 = sand.u32 %s204, 1
        %s574 = smul.addr %s573, 8
        %s575 = scalar_lea.vmem [#allocation13], %s574
        %p576 = pneg %p217
        %p577 = pneg %p214
        %p578 = pneg %p238
        %p579 = pneg %p235
        %p580 = pneg %p259
        %p581 = pneg %p256
        %p582 = pneg %p287
        %p583 = pneg %p284
        %s584 = sand.u32 %s274, 1
        %s585 = scalar_lea.sflag [#allocation4], %s584
        %s586 = sand.u32 %s274, 1
        %s587 = smul.addr %s586, 16
        %s588 = scalar_lea.vmem [#allocation16], %s587
        %v590 = vld [vmem:[%s472] sm:$0xff]
        %v591 = vld [vmem:[%s472 + $0x8] sm:$0xff]
        %v592 = vld [vmem:[%s472 + $0x10] sm:$0xff]
        %v593 = vld [vmem:[%s472 + $0x18] sm:$0xff]
        %v594 = vld [vmem:[%s472 + $0x20] sm:$0xff]
        %v595 = vld [vmem:[%s472 + $0x28] sm:$0xff]
        %v596 = vld [vmem:[%s472 + $0x30] sm:$0xff]
        %v597 = vld [vmem:[%s472 + $0x38] sm:$0xff]
        %v598 = vld [vmem:[%s490] sm:$0x3]
        %v600 = vlaneseq
        %v601 = vshrl.u32 %v600, 7
        %v602 = vsub.s32 0, %v601
        %v603 = vrot.slane %v598, %v602
        %v604 = vlaneseq
        %v605 = vshrl.u32 %v604, 7
        %v606 = vsub.s32 1, %v605
        %v607 = vrot.slane %v598, %v606
        %v610 = vmul.f32 %v590, %v603
        %v611 = vmul.f32 %v591, %v607
        %v612 = vmul.f32 %v592, %v603
        %v613 = vmul.f32 %v593, %v607
        %v614 = vmul.f32 %v594, %v603
        %v615 = vmul.f32 %v595, %v607
        %v616 = vmul.f32 %v596, %v603
        %v617 = vmul.f32 %v597, %v607
        %v618 = vld [vmem:[%s499] sm:$0x3]
        %v620 = vlaneseq
        %v621 = vshrl.u32 %v620, 7
        %v622 = vsub.s32 0, %v621
        %v623 = vrot.slane %v618, %v622
        %v624 = vlaneseq
        %v625 = vshrl.u32 %v624, 7
        %v626 = vsub.s32 1, %v625
        %v627 = vrot.slane %v618, %v626
        %v630 = vadd.f32 %v610, %v623
        %v631 = vadd.f32 %v611, %v627
        %v632 = vadd.f32 %v612, %v623
        %v633 = vadd.f32 %v613, %v627
        %v634 = vadd.f32 %v614, %v623
        %v635 = vadd.f32 %v615, %v627
        %v636 = vadd.f32 %v616, %v623
        %v637 = vadd.f32 %v617, %v627
        %v638 = vmax.f32 %v630, 0.0
        %v639 = vmax.f32 %v631, 0.0
        %v640 = vmax.f32 %v632, 0.0
        %v641 = vmax.f32 %v633, 0.0
        %v642 = vmax.f32 %v634, 0.0
        %v643 = vmax.f32 %v635, 0.0
        %v644 = vmax.f32 %v636, 0.0
        %v645 = vmax.f32 %v637, 0.0
        %v646 = vld [vmem:[%s508] sm:$0xff]
        %vm647 = vcmask 261120
        %v649 = vsel %vm647, %v646, 0
        %651 = vmatprep.subr.mxu0 %v639
        %652 = vmatpush1.msra.mxu0 %v638
        %653 = vmatprep.subr.mxu0 %v641
        %654 = vmatpush1.msra.mxu0 %v640
        %655 = vmatprep.subr.mxu0 %v643
        %656 = vmatpush1.msra.mxu0 %v642
        %657 = vmatprep.subr.mxu0 %v645
        %658 = vmatpush1.msra.mxu0 %v644
        %659 = vmatprep.subr.mxu0 0.0
        %660 = vmatpush1.msra.mxu0 0.0
        %661 = vmatprep.subr.mxu0 0.0
        %662 = vmatpush1.msra.mxu0 0.0
        %663 = vmatprep.subr.mxu0 0.0
        %664 = vmatpush1.msra.mxu0 0.0
        %665 = vmatprep.subr.mxu0 0.0
        %666 = vmatpush1.msra.mxu0 0.0
        %667 = vmatprep.subr.mxu0 0.0
        %668 = vmatpush1.msra.mxu0 0.0
        %669 = vmatprep.subr.mxu0 0.0
        %670 = vmatpush1.msra.mxu0 0.0
        %671 = vmatprep.subr.mxu0 0.0
        %672 = vmatpush1.msra.mxu0 0.0
        %673 = vmatprep.subr.mxu0 0.0
        %674 = vmatpush1.msra.mxu0 0.0
        %675 = vmatprep.subr.mxu0 0.0
        %676 = vmatpush1.msra.mxu0 0.0
        %677 = vmatprep.subr.mxu0 0.0
        %678 = vmatpush1.msra.mxu0 0.0
        %679 = vmatprep.subr.mxu0 0.0
        %680 = vmatpush1.msra.mxu0 0.0
        %681 = vmatprep.subr.mxu0 0.0
        %682 = vmatpush1.msra.mxu0 0.0
        %683 = vmatprep.subr.mxu0 0.0
        %684 = vmatpush1.msra.mxu0 0.0
        %685 = vmatprep.subr.mxu0 0.0
        %686 = vmatpush1.msra.mxu0 0.0
        %687 = vmatprep.subr.mxu0 0.0
        %688 = vmatpush1.msra.mxu0 0.0
        %689 = vmatprep.subr.mxu0 0.0
        %690 = vmatpush1.msra.mxu0 0.0
        %691 = vmatprep.subr.mxu0 0.0
        %692 = vmatpush1.msra.mxu0 0.0
        %693 = vmatprep.subr.mxu0 0.0
        %694 = vmatpush1.msra.mxu0 0.0
        %695 = vmatprep.subr.mxu0 0.0
        %696 = vmatpush1.msra.mxu0 0.0
        %697 = vmatprep.subr.mxu0 0.0
        %698 = vmatpush1.msra.mxu0 0.0
        %699 = vmatprep.subr.mxu0 0.0
        %700 = vmatpush1.msra.mxu0 0.0
        %701 = vmatprep.subr.mxu0 0.0
        %702 = vmatpush1.msra.mxu0 0.0
        %703 = vmatprep.subr.mxu0 0.0
        %704 = vmatpush1.msra.mxu0 0.0
        %705 = vmatprep.subr.mxu0 0.0
        %706 = vmatpush1.msra.mxu0 0.0
        %707 = vmatprep.subr.mxu0 0.0
        %708 = vmatpush1.msra.mxu0 0.0
        %709 = vmatprep.subr.mxu0 0.0
        %710 = vmatpush1.msra.mxu0 0.0
        %711 = vmatprep.subr.mxu0 0.0
        %712 = vmatpush1.msra.mxu0 0.0
        %713 = vmatprep.subr.mxu0 0.0
        %714 = vmatpush1.msra.mxu0 0.0
        %715 = vmatprep.mubr.f32.mxu0 0.0
        %716 = vmatmul.mubr.f32.gmra.mrb[0].mxu0 %v649
        %v717 = vpop.f32.mrb[0].mxu0
        %v718 = vadd.f32 0.0, %v717
        %v719 = vpop.f32.mrb[0].mxu0
        %v720 = vadd.f32 0.0, %v719
        %721 = vdwg.mxu0
        %v722 = vpack.c.bf16 %v718, %v718
        %v723 = vpack.c.bf16 %v720, %v720
        %v724 = vld [vmem:[#allocation11] sm:$0xff]
        %v725 = vld [vmem:[#allocation11 + $0x8] sm:$0xff]
        %v726 = vld [vmem:[#allocation11 + $0x10] sm:$0xff]
        %v727 = vld [vmem:[#allocation11 + $0x18] sm:$0xff]
        %v728 = vld [vmem:[#allocation11 + $0x20] sm:$0xff]
        %v729 = vld [vmem:[#allocation11 + $0x28] sm:$0xff]
        %v730 = vld [vmem:[#allocation11 + $0x30] sm:$0xff]
        %v731 = vld [vmem:[#allocation11 + $0x38] sm:$0xff]
        %v732 = vld [vmem:[#allocation11 + $0x40] sm:$0xff]
        %v733 = vld [vmem:[#allocation11 + $0x48] sm:$0xff]
        %v734 = vld [vmem:[#allocation11 + $0x50] sm:$0xff]
        %v735 = vld [vmem:[#allocation11 + $0x58] sm:$0xff]
        %v736 = vld [vmem:[#allocation11 + $0x60] sm:$0xff]
        %v737 = vld [vmem:[#allocation11 + $0x68] sm:$0xff]
        %v738 = vld [vmem:[#allocation11 + $0x70] sm:$0xff]
        %v739 = vld [vmem:[#allocation11 + $0x78] sm:$0xff]
        %v740 = vld [vmem:[#allocation11 + $0x80] sm:$0xff]
        %v741 = vld [vmem:[#allocation11 + $0x88] sm:$0xff]
        %v742 = vld [vmem:[#allocation11 + $0x90] sm:$0xff]
        %v743 = vld [vmem:[#allocation11 + $0x98] sm:$0xff]
        %v744 = vld [vmem:[#allocation11 + $0xa0] sm:$0xff]
        %v745 = vld [vmem:[#allocation11 + $0xa8] sm:$0xff]
        %v746 = vld [vmem:[#allocation11 + $0xb0] sm:$0xff]
        %v747 = vld [vmem:[#allocation11 + $0xb8] sm:$0xff]
        %v748 = vld [vmem:[#allocation11 + $0xc0] sm:$0xff]
        %v749 = vld [vmem:[#allocation11 + $0xc8] sm:$0xff]
        %v750 = vld [vmem:[#allocation11 + $0xd0] sm:$0xff]
        %v751 = vld [vmem:[#allocation11 + $0xd8] sm:$0xff]
        %v752 = vld [vmem:[#allocation11 + $0xe0] sm:$0xff]
        %v753 = vld [vmem:[#allocation11 + $0xe8] sm:$0xff]
        %v754 = vld [vmem:[#allocation11 + $0xf0] sm:$0xff]
        %v755 = vld [vmem:[#allocation11 + $0xf8] sm:$0xff]
        %s756 = scalar_lea.vmem %s508, 8 [#allocation10]
        %v757 = vld [vmem:[%s756] sm:$0xff]
        %v759 = vsel %vm647, %v757, 0
        %761 = vmatprep.subr.mxu0 %v639
        %762 = vmatpush1.msra.mxu0 %v638
        %763 = vmatprep.subr.mxu0 %v641
        %764 = vmatpush1.msra.mxu0 %v640
        %765 = vmatprep.subr.mxu0 %v643
        %766 = vmatpush1.msra.mxu0 %v642
        %767 = vmatprep.subr.mxu0 %v645
        %768 = vmatpush1.msra.mxu0 %v644
        %769 = vmatprep.subr.mxu0 0.0
        %770 = vmatpush1.msra.mxu0 0.0
        %771 = vmatprep.subr.mxu0 0.0
        %772 = vmatpush1.msra.mxu0 0.0
        %773 = vmatprep.subr.mxu0 0.0
        %774 = vmatpush1.msra.mxu0 0.0
        %775 = vmatprep.subr.mxu0 0.0
        %776 = vmatpush1.msra.mxu0 0.0
        %777 = vmatprep.subr.mxu0 0.0
        %778 = vmatpush1.msra.mxu0 0.0
        %779 = vmatprep.subr.mxu0 0.0
        %780 = vmatpush1.msra.mxu0 0.0
        %781 = vmatprep.subr.mxu0 0.0
        %782 = vmatpush1.msra.mxu0 0.0
        %783 = vmatprep.subr.mxu0 0.0
        %784 = vmatpush1.msra.mxu0 0.0
        %785 = vmatprep.subr.mxu0 0.0
        %786 = vmatpush1.msra.mxu0 0.0
        %787 = vmatprep.subr.mxu0 0.0
        %788 = vmatpush1.msra.mxu0 0.0
        %789 = vmatprep.subr.mxu0 0.0
        %790 = vmatpush1.msra.mxu0 0.0
        %791 = vmatprep.subr.mxu0 0.0
        %792 = vmatpush1.msra.mxu0 0.0
        %793 = vmatprep.subr.mxu0 0.0
        %794 = vmatpush1.msra.mxu0 0.0
        %795 = vmatprep.subr.mxu0 0.0
        %796 = vmatpush1.msra.mxu0 0.0
        %797 = vmatprep.subr.mxu0 0.0
        %798 = vmatpush1.msra.mxu0 0.0
        %799 = vmatprep.subr.mxu0 0.0
        %800 = vmatpush1.msra.mxu0 0.0
        %801 = vmatprep.subr.mxu0 0.0
        %802 = vmatpush1.msra.mxu0 0.0
        %803 = vmatprep.subr.mxu0 0.0
        %804 = vmatpush1.msra.mxu0 0.0
        %805 = vmatprep.subr.mxu0 0.0
        %806 = vmatpush1.msra.mxu0 0.0
        %807 = vmatprep.subr.mxu0 0.0
        %808 = vmatpush1.msra.mxu0 0.0
        %809 = vmatprep.subr.mxu0 0.0
        %810 = vmatpush1.msra.mxu0 0.0
        %811 = vmatprep.subr.mxu0 0.0
        %812 = vmatpush1.msra.mxu0 0.0
        %813 = vmatprep.subr.mxu0 0.0
        %814 = vmatpush1.msra.mxu0 0.0
        %815 = vmatprep.subr.mxu0 0.0
        %816 = vmatpush1.msra.mxu0 0.0
        %817 = vmatprep.subr.mxu0 0.0
        %818 = vmatpush1.msra.mxu0 0.0
        %819 = vmatprep.subr.mxu0 0.0
        %820 = vmatpush1.msra.mxu0 0.0
        %821 = vmatprep.subr.mxu0 0.0
        %822 = vmatpush1.msra.mxu0 0.0
        %823 = vmatprep.subr.mxu0 0.0
        %824 = vmatpush1.msra.mxu0 0.0
        %825 = vmatprep.mubr.f32.mxu0 0.0
        %826 = vmatmul.mubr.f32.gmra.mrb[0].mxu0 %v759
        %v827 = vpop.f32.mrb[0].mxu0
        %v828 = vadd.f32 0.0, %v827
        %v829 = vpop.f32.mrb[0].mxu0
        %v830 = vadd.f32 0.0, %v829
        %831 = vdwg.mxu0
        %v832 = vpack.c.bf16 %v828, %v828
        %v833 = vpack.c.bf16 %v830, %v830
        %s834 = scalar_lea.vmem [#allocation11], 256
        %v835 = vld [vmem:[%s834] sm:$0xff]
        %v836 = vld [vmem:[%s834 + $0x8] sm:$0xff]
        %v837 = vld [vmem:[%s834 + $0x10] sm:$0xff]
        %v838 = vld [vmem:[%s834 + $0x18] sm:$0xff]
        %v839 = vld [vmem:[%s834 + $0x20] sm:$0xff]
        %v840 = vld [vmem:[%s834 + $0x28] sm:$0xff]
        %v841 = vld [vmem:[%s834 + $0x30] sm:$0xff]
        %v842 = vld [vmem:[%s834 + $0x38] sm:$0xff]
        %v843 = vld [vmem:[%s834 + $0x40] sm:$0xff]
        %v844 = vld [vmem:[%s834 + $0x48] sm:$0xff]
        %v845 = vld [vmem:[%s834 + $0x50] sm:$0xff]
        %v846 = vld [vmem:[%s834 + $0x58] sm:$0xff]
        %v847 = vld [vmem:[%s834 + $0x60] sm:$0xff]
        %v848 = vld [vmem:[%s834 + $0x68] sm:$0xff]
        %v849 = vld [vmem:[%s834 + $0x70] sm:$0xff]
        %v850 = vld [vmem:[%s834 + $0x78] sm:$0xff]
        %v851 = vld [vmem:[%s834 + $0x80] sm:$0xff]
        %v852 = vld [vmem:[%s834 + $0x88] sm:$0xff]
        %v853 = vld [vmem:[%s834 + $0x90] sm:$0xff]
        %v854 = vld [vmem:[%s834 + $0x98] sm:$0xff]
        %v855 = vld [vmem:[%s834 + $0xa0] sm:$0xff]
        %v856 = vld [vmem:[%s834 + $0xa8] sm:$0xff]
        %v857 = vld [vmem:[%s834 + $0xb0] sm:$0xff]
        %v858 = vld [vmem:[%s834 + $0xb8] sm:$0xff]
        %v859 = vld [vmem:[%s834 + $0xc0] sm:$0xff]
        %v860 = vld [vmem:[%s834 + $0xc8] sm:$0xff]
        %v861 = vld [vmem:[%s834 + $0xd0] sm:$0xff]
        %v862 = vld [vmem:[%s834 + $0xd8] sm:$0xff]
        %v863 = vld [vmem:[%s834 + $0xe0] sm:$0xff]
        %v864 = vld [vmem:[%s834 + $0xe8] sm:$0xff]
        %v865 = vld [vmem:[%s834 + $0xf0] sm:$0xff]
        %v866 = vld [vmem:[%s834 + $0xf8] sm:$0xff]
        %v899 = vunpack.c.l.b16 %v835
        %v900 = vunpack.c.h.b16 %v835
        %v901 = vunpack.c.l.b16 %v836
        %v902 = vunpack.c.h.b16 %v836
        %v903 = vunpack.c.l.b16 %v837
        %v904 = vunpack.c.h.b16 %v837
        %v905 = vunpack.c.l.b16 %v838
        %v906 = vunpack.c.h.b16 %v838
        %v907 = vunpack.c.l.b16 %v839
        %v908 = vunpack.c.h.b16 %v839
        %v909 = vunpack.c.l.b16 %v840
        %v910 = vunpack.c.h.b16 %v840
        %v911 = vunpack.c.l.b16 %v841
        %v912 = vunpack.c.h.b16 %v841
        %v913 = vunpack.c.l.b16 %v842
        %v914 = vunpack.c.h.b16 %v842
        %v915 = vunpack.c.l.b16 %v843
        %v916 = vunpack.c.h.b16 %v843
        %v917 = vunpack.c.l.b16 %v844
        %v918 = vunpack.c.h.b16 %v844
        %v919 = vunpack.c.l.b16 %v845
        %v920 = vunpack.c.h.b16 %v845
        %v921 = vunpack.c.l.b16 %v846
        %v922 = vunpack.c.h.b16 %v846
        %v923 = vunpack.c.l.b16 %v847
        %v924 = vunpack.c.h.b16 %v847
        %v925 = vunpack.c.l.b16 %v848
        %v926 = vunpack.c.h.b16 %v848
        %v927 = vunpack.c.l.b16 %v849
        %v928 = vunpack.c.h.b16 %v849
        %v929 = vunpack.c.l.b16 %v850
        %v930 = vunpack.c.h.b16 %v850
        %v931 = vunpack.c.l.b16 %v851
        %v932 = vunpack.c.h.b16 %v851
        %v933 = vunpack.c.l.b16 %v852
        %v934 = vunpack.c.h.b16 %v852
        %v935 = vunpack.c.l.b16 %v853
        %v936 = vunpack.c.h.b16 %v853
        %v937 = vunpack.c.l.b16 %v854
        %v938 = vunpack.c.h.b16 %v854
        %v939 = vunpack.c.l.b16 %v855
        %v940 = vunpack.c.h.b16 %v855
        %v941 = vunpack.c.l.b16 %v856
        %v942 = vunpack.c.h.b16 %v856
        %v943 = vunpack.c.l.b16 %v857
        %v944 = vunpack.c.h.b16 %v857
        %v945 = vunpack.c.l.b16 %v858
        %v946 = vunpack.c.h.b16 %v858
        %v947 = vunpack.c.l.b16 %v859
        %v948 = vunpack.c.h.b16 %v859
        %v949 = vunpack.c.l.b16 %v860
        %v950 = vunpack.c.h.b16 %v860
        %v951 = vunpack.c.l.b16 %v861
        %v952 = vunpack.c.h.b16 %v861
        %v953 = vunpack.c.l.b16 %v862
        %v954 = vunpack.c.h.b16 %v862
        %v955 = vunpack.c.l.b16 %v863
        %v956 = vunpack.c.h.b16 %v863
        %v957 = vunpack.c.l.b16 %v864
        %v958 = vunpack.c.h.b16 %v864
        %v959 = vunpack.c.l.b16 %v865
        %v960 = vunpack.c.h.b16 %v865
        %v961 = vunpack.c.l.b16 %v866
        %v962 = vunpack.c.h.b16 %v866
        %v963 = vpack.c.b16 %v901, %v899
        %v964 = vpack.c.b16 %v902, %v900
        %v965 = vpack.c.b16 %v905, %v903
        %v966 = vpack.c.b16 %v906, %v904
        %v967 = vpack.c.b16 %v909, %v907
        %v968 = vpack.c.b16 %v910, %v908
        %v969 = vpack.c.b16 %v913, %v911
        %v970 = vpack.c.b16 %v914, %v912
        %v971 = vpack.c.b16 %v917, %v915
        %v972 = vpack.c.b16 %v918, %v916
        %v973 = vpack.c.b16 %v921, %v919
        %v974 = vpack.c.b16 %v922, %v920
        %v975 = vpack.c.b16 %v925, %v923
        %v976 = vpack.c.b16 %v926, %v924
        %v977 = vpack.c.b16 %v929, %v927
        %v978 = vpack.c.b16 %v930, %v928
        %v979 = vpack.c.b16 %v933, %v931
        %v980 = vpack.c.b16 %v934, %v932
        %v981 = vpack.c.b16 %v937, %v935
        %v982 = vpack.c.b16 %v938, %v936
        %v983 = vpack.c.b16 %v941, %v939
        %v984 = vpack.c.b16 %v942, %v940
        %v985 = vpack.c.b16 %v945, %v943
        %v986 = vpack.c.b16 %v946, %v944
        %v987 = vpack.c.b16 %v949, %v947
        %v988 = vpack.c.b16 %v950, %v948
        %v989 = vpack.c.b16 %v953, %v951
        %v990 = vpack.c.b16 %v954, %v952
        %v991 = vpack.c.b16 %v957, %v955
        %v992 = vpack.c.b16 %v958, %v956
        %v993 = vpack.c.b16 %v961, %v959
        %v994 = vpack.c.b16 %v962, %v960
        %1027 = vmatprep.subr.bf16.mxu0 %v964
        %1028 = vmatpush1.bf16.msra.mxu0 %v963
        %1029 = vmatprep.subr.bf16.mxu0 %v966
        %1030 = vmatpush1.bf16.msra.mxu0 %v965
        %1031 = vmatprep.subr.bf16.mxu0 %v968
        %1032 = vmatpush1.bf16.msra.mxu0 %v967
        %1033 = vmatprep.subr.bf16.mxu0 %v970
        %1034 = vmatpush1.bf16.msra.mxu0 %v969
        %1035 = vmatprep.subr.bf16.mxu0 %v972
        %1036 = vmatpush1.bf16.msra.mxu0 %v971
        %1037 = vmatprep.subr.bf16.mxu0 %v974
        %1038 = vmatpush1.bf16.msra.mxu0 %v973
        %1039 = vmatprep.subr.bf16.mxu0 %v976
        %1040 = vmatpush1.bf16.msra.mxu0 %v975
        %1041 = vmatprep.subr.bf16.mxu0 %v978
        %1042 = vmatpush1.bf16.msra.mxu0 %v977
        %1043 = vmatprep.subr.bf16.mxu0 %v980
        %1044 = vmatpush1.bf16.msra.mxu0 %v979
        %1045 = vmatprep.subr.bf16.mxu0 %v982
        %1046 = vmatpush1.bf16.msra.mxu0 %v981
        %1047 = vmatprep.subr.bf16.mxu0 %v984
        %1048 = vmatpush1.bf16.msra.mxu0 %v983
        %1049 = vmatprep.subr.bf16.mxu0 %v986
        %1050 = vmatpush1.bf16.msra.mxu0 %v985
        %1051 = vmatprep.subr.bf16.mxu0 %v988
        %1052 = vmatpush1.bf16.msra.mxu0 %v987
        %1053 = vmatprep.subr.bf16.mxu0 %v990
        %1054 = vmatpush1.bf16.msra.mxu0 %v989
        %1055 = vmatprep.subr.bf16.mxu0 %v992
        %1056 = vmatpush1.bf16.msra.mxu0 %v991
        %1057 = vmatprep.subr.bf16.mxu0 %v994
        %1058 = vmatpush1.bf16.msra.mxu0 %v993
        %1059 = vmatprep.mubr.bf16.mxu0 %v833
        %1060 = vmatmul.mubr.bf16.gmra.mrb[0].mxu0 %v832
        %v1061 = vpop.f32.mrb[0].mxu0
        %v1062 = vadd.f32 0.0, %v1061
        %v1063 = vpop.f32.mrb[0].mxu0
        %v1064 = vadd.f32 0.0, %v1063
        %v1065 = vpop.f32.mrb[0].mxu0
        %v1066 = vpop.f32.mrb[0].mxu0
        %1067 = vdwg.mxu0
        %v1100 = vunpack.c.l.b16 %v724
        %v1101 = vunpack.c.h.b16 %v724
        %v1102 = vunpack.c.l.b16 %v725
        %v1103 = vunpack.c.h.b16 %v725
        %v1104 = vunpack.c.l.b16 %v726
        %v1105 = vunpack.c.h.b16 %v726
        %v1106 = vunpack.c.l.b16 %v727
        %v1107 = vunpack.c.h.b16 %v727
        %v1108 = vunpack.c.l.b16 %v728
        %v1109 = vunpack.c.h.b16 %v728
        %v1110 = vunpack.c.l.b16 %v729
        %v1111 = vunpack.c.h.b16 %v729
        %v1112 = vunpack.c.l.b16 %v730
        %v1113 = vunpack.c.h.b16 %v730
        %v1114 = vunpack.c.l.b16 %v731
        %v1115 = vunpack.c.h.b16 %v731
        %v1116 = vunpack.c.l.b16 %v732
        %v1117 = vunpack.c.h.b16 %v732
        %v1118 = vunpack.c.l.b16 %v733
        %v1119 = vunpack.c.h.b16 %v733
        %v1120 = vunpack.c.l.b16 %v734
        %v1121 = vunpack.c.h.b16 %v734
        %v1122 = vunpack.c.l.b16 %v735
        %v1123 = vunpack.c.h.b16 %v735
        %v1124 = vunpack.c.l.b16 %v736
        %v1125 = vunpack.c.h.b16 %v736
        %v1126 = vunpack.c.l.b16 %v737
        %v1127 = vunpack.c.h.b16 %v737
        %v1128 = vunpack.c.l.b16 %v738
        %v1129 = vunpack.c.h.b16 %v738
        %v1130 = vunpack.c.l.b16 %v739
        %v1131 = vunpack.c.h.b16 %v739
        %v1132 = vunpack.c.l.b16 %v740
        %v1133 = vunpack.c.h.b16 %v740
        %v1134 = vunpack.c.l.b16 %v741
        %v1135 = vunpack.c.h.b16 %v741
        %v1136 = vunpack.c.l.b16 %v742
        %v1137 = vunpack.c.h.b16 %v742
        %v1138 = vunpack.c.l.b16 %v743
        %v1139 = vunpack.c.h.b16 %v743
        %v1140 = vunpack.c.l.b16 %v744
        %v1141 = vunpack.c.h.b16 %v744
        %v1142 = vunpack.c.l.b16 %v745
        %v1143 = vunpack.c.h.b16 %v745
        %v1144 = vunpack.c.l.b16 %v746
        %v1145 = vunpack.c.h.b16 %v746
        %v1146 = vunpack.c.l.b16 %v747
        %v1147 = vunpack.c.h.b16 %v747
        %v1148 = vunpack.c.l.b16 %v748
        %v1149 = vunpack.c.h.b16 %v748
        %v1150 = vunpack.c.l.b16 %v749
        %v1151 = vunpack.c.h.b16 %v749
        %v1152 = vunpack.c.l.b16 %v750
        %v1153 = vunpack.c.h.b16 %v750
        %v1154 = vunpack.c.l.b16 %v751
        %v1155 = vunpack.c.h.b16 %v751
        %v1156 = vunpack.c.l.b16 %v752
        %v1157 = vunpack.c.h.b16 %v752
        %v1158 = vunpack.c.l.b16 %v753
        %v1159 = vunpack.c.h.b16 %v753
        %v1160 = vunpack.c.l.b16 %v754
        %v1161 = vunpack.c.h.b16 %v754
        %v1162 = vunpack.c.l.b16 %v755
        %v1163 = vunpack.c.h.b16 %v755
        %v1164 = vpack.c.b16 %v1102, %v1100
        %v1165 = vpack.c.b16 %v1103, %v1101
        %v1166 = vpack.c.b16 %v1106, %v1104
        %v1167 = vpack.c.b16 %v1107, %v1105
        %v1168 = vpack.c.b16 %v1110, %v1108
        %v1169 = vpack.c.b16 %v1111, %v1109
        %v1170 = vpack.c.b16 %v1114, %v1112
        %v1171 = vpack.c.b16 %v1115, %v1113
        %v1172 = vpack.c.b16 %v1118, %v1116
        %v1173 = vpack.c.b16 %v1119, %v1117
        %v1174 = vpack.c.b16 %v1122, %v1120
        %v1175 = vpack.c.b16 %v1123, %v1121
        %v1176 = vpack.c.b16 %v1126, %v1124
        %v1177 = vpack.c.b16 %v1127, %v1125
        %v1178 = vpack.c.b16 %v1130, %v1128
        %v1179 = vpack.c.b16 %v1131, %v1129
        %v1180 = vpack.c.b16 %v1134, %v1132
        %v1181 = vpack.c.b16 %v1135, %v1133
        %v1182 = vpack.c.b16 %v1138, %v1136
        %v1183 = vpack.c.b16 %v1139, %v1137
        %v1184 = vpack.c.b16 %v1142, %v1140
        %v1185 = vpack.c.b16 %v1143, %v1141
        %v1186 = vpack.c.b16 %v1146, %v1144
        %v1187 = vpack.c.b16 %v1147, %v1145
        %v1188 = vpack.c.b16 %v1150, %v1148
        %v1189 = vpack.c.b16 %v1151, %v1149
        %v1190 = vpack.c.b16 %v1154, %v1152
        %v1191 = vpack.c.b16 %v1155, %v1153
        %v1192 = vpack.c.b16 %v1158, %v1156
        %v1193 = vpack.c.b16 %v1159, %v1157
        %v1194 = vpack.c.b16 %v1162, %v1160
        %v1195 = vpack.c.b16 %v1163, %v1161
        %1228 = vmatprep.subr.bf16.mxu0 %v1165
        %1229 = vmatpush1.bf16.msra.mxu0 %v1164
        %1230 = vmatprep.subr.bf16.mxu0 %v1167
        %1231 = vmatpush1.bf16.msra.mxu0 %v1166
        %1232 = vmatprep.subr.bf16.mxu0 %v1169
        %1233 = vmatpush1.bf16.msra.mxu0 %v1168
        %1234 = vmatprep.subr.bf16.mxu0 %v1171
        %1235 = vmatpush1.bf16.msra.mxu0 %v1170
        %1236 = vmatprep.subr.bf16.mxu0 %v1173
        %1237 = vmatpush1.bf16.msra.mxu0 %v1172
        %1238 = vmatprep.subr.bf16.mxu0 %v1175
        %1239 = vmatpush1.bf16.msra.mxu0 %v1174
        %1240 = vmatprep.subr.bf16.mxu0 %v1177
        %1241 = vmatpush1.bf16.msra.mxu0 %v1176
        %1242 = vmatprep.subr.bf16.mxu0 %v1179
        %1243 = vmatpush1.bf16.msra.mxu0 %v1178
        %1244 = vmatprep.subr.bf16.mxu0 %v1181
        %1245 = vmatpush1.bf16.msra.mxu0 %v1180
        %1246 = vmatprep.subr.bf16.mxu0 %v1183
        %1247 = vmatpush1.bf16.msra.mxu0 %v1182
        %1248 = vmatprep.subr.bf16.mxu0 %v1185
        %1249 = vmatpush1.bf16.msra.mxu0 %v1184
        %1250 = vmatprep.subr.bf16.mxu0 %v1187
        %1251 = vmatpush1.bf16.msra.mxu0 %v1186
        %1252 = vmatprep.subr.bf16.mxu0 %v1189
        %1253 = vmatpush1.bf16.msra.mxu0 %v1188
        %1254 = vmatprep.subr.bf16.mxu0 %v1191
        %1255 = vmatpush1.bf16.msra.mxu0 %v1190
        %1256 = vmatprep.subr.bf16.mxu0 %v1193
        %1257 = vmatpush1.bf16.msra.mxu0 %v1192
        %1258 = vmatprep.subr.bf16.mxu0 %v1195
        %1259 = vmatpush1.bf16.msra.mxu0 %v1194
        %1260 = vmatprep.mubr.bf16.mxu0 %v723
        %1261 = vmatmul.mubr.bf16.gmra.mrb[0].mxu0 %v722
        %v1262 = vpop.f32.mrb[0].mxu0
        %v1263 = vadd.f32 %v1062, %v1262
        %v1264 = vpop.f32.mrb[0].mxu0
        %v1265 = vadd.f32 %v1064, %v1264
        %v1266 = vpop.f32.mrb[0].mxu0
        %v1267 = vpop.f32.mrb[0].mxu0
        %1268 = vdwg.mxu0
        %s1269 = scalar_lea.vmem %s508, 16 [#allocation10]
        %v1270 = vld [vmem:[%s1269] sm:$0xff]
        %v1272 = vsel %vm647, %v1270, 0
        %1274 = vmatprep.subr.mxu0 %v639
        %1275 = vmatpush1.msra.mxu0 %v638
        %1276 = vmatprep.subr.mxu0 %v641
        %1277 = vmatpush1.msra.mxu0 %v640
        %1278 = vmatprep.subr.mxu0 %v643
        %1279 = vmatpush1.msra.mxu0 %v642
        %1280 = vmatprep.subr.mxu0 %v645
        %1281 = vmatpush1.msra.mxu0 %v644
        %1282 = vmatprep.subr.mxu0 0.0
        %1283 = vmatpush1.msra.mxu0 0.0
        %1284 = vmatprep.subr.mxu0 0.0
        %1285 = vmatpush1.msra.mxu0 0.0
        %1286 = vmatprep.subr.mxu0 0.0
        %1287 = vmatpush1.msra.mxu0 0.0
        %1288 = vmatprep.subr.mxu0 0.0
        %1289 = vmatpush1.msra.mxu0 0.0
        %1290 = vmatprep.subr.mxu0 0.0
        %1291 = vmatpush1.msra.mxu0 0.0
        %1292 = vmatprep.subr.mxu0 0.0
        %1293 = vmatpush1.msra.mxu0 0.0
        %1294 = vmatprep.subr.mxu0 0.0
        %1295 = vmatpush1.msra.mxu0 0.0
        %1296 = vmatprep.subr.mxu0 0.0
        %1297 = vmatpush1.msra.mxu0 0.0
        %1298 = vmatprep.subr.mxu0 0.0
        %1299 = vmatpush1.msra.mxu0 0.0
        %1300 = vmatprep.subr.mxu0 0.0
        %1301 = vmatpush1.msra.mxu0 0.0
        %1302 = vmatprep.subr.mxu0 0.0
        %1303 = vmatpush1.msra.mxu0 0.0
        %1304 = vmatprep.subr.mxu0 0.0
        %1305 = vmatpush1.msra.mxu0 0.0
        %1306 = vmatprep.subr.mxu0 0.0
        %1307 = vmatpush1.msra.mxu0 0.0
        %1308 = vmatprep.subr.mxu0 0.0
        %1309 = vmatpush1.msra.mxu0 0.0
        %1310 = vmatprep.subr.mxu0 0.0
        %1311 = vmatpush1.msra.mxu0 0.0
        %1312 = vmatprep.subr.mxu0 0.0
        %1313 = vmatpush1.msra.mxu0 0.0
        %1314 = vmatprep.subr.mxu0 0.0
        %1315 = vmatpush1.msra.mxu0 0.0
        %1316 = vmatprep.subr.mxu0 0.0
        %1317 = vmatpush1.msra.mxu0 0.0
        %1318 = vmatprep.subr.mxu0 0.0
        %1319 = vmatpush1.msra.mxu0 0.0
        %1320 = vmatprep.subr.mxu0 0.0
        %1321 = vmatpush1.msra.mxu0 0.0
        %1322 = vmatprep.subr.mxu0 0.0
        %1323 = vmatpush1.msra.mxu0 0.0
        %1324 = vmatprep.subr.mxu0 0.0
        %1325 = vmatpush1.msra.mxu0 0.0
        %1326 = vmatprep.subr.mxu0 0.0
        %1327 = vmatpush1.msra.mxu0 0.0
        %1328 = vmatprep.subr.mxu0 0.0
        %1329 = vmatpush1.msra.mxu0 0.0
        %1330 = vmatprep.subr.mxu0 0.0
        %1331 = vmatpush1.msra.mxu0 0.0
        %1332 = vmatprep.subr.mxu0 0.0
        %1333 = vmatpush1.msra.mxu0 0.0
        %1334 = vmatprep.subr.mxu0 0.0
        %1335 = vmatpush1.msra.mxu0 0.0
        %1336 = vmatprep.subr.mxu0 0.0
        %1337 = vmatpush1.msra.mxu0 0.0
        %1338 = vmatprep.mubr.f32.mxu0 0.0
        %1339 = vmatmul.mubr.f32.gmra.mrb[0].mxu0 %v1272
        %v1340 = vpop.f32.mrb[0].mxu0
        %v1341 = vadd.f32 0.0, %v1340
        %v1342 = vpop.f32.mrb[0].mxu0
        %v1343 = vadd.f32 0.0, %v1342
        %1344 = vdwg.mxu0
        %v1345 = vpack.c.bf16 %v1341, %v1341
        %v1346 = vpack.c.bf16 %v1343, %v1343
        %s1347 = scalar_lea.vmem [#allocation11], 512
        %v1348 = vld [vmem:[%s1347] sm:$0xff]
        %v1349 = vld [vmem:[%s1347 + $0x8] sm:$0xff]
        %v1350 = vld [vmem:[%s1347 + $0x10] sm:$0xff]
        %v1351 = vld [vmem:[%s1347 + $0x18] sm:$0xff]
        %v1352 = vld [vmem:[%s1347 + $0x20] sm:$0xff]
        %v1353 = vld [vmem:[%s1347 + $0x28] sm:$0xff]
        %v1354 = vld [vmem:[%s1347 + $0x30] sm:$0xff]
        %v1355 = vld [vmem:[%s1347 + $0x38] sm:$0xff]
        %v1356 = vld [vmem:[%s1347 + $0x40] sm:$0xff]
        %v1357 = vld [vmem:[%s1347 + $0x48] sm:$0xff]
        %v1358 = vld [vmem:[%s1347 + $0x50] sm:$0xff]
        %v1359 = vld [vmem:[%s1347 + $0x58] sm:$0xff]
        %v1360 = vld [vmem:[%s1347 + $0x60] sm:$0xff]
        %v1361 = vld [vmem:[%s1347 + $0x68] sm:$0xff]
        %v1362 = vld [vmem:[%s1347 + $0x70] sm:$0xff]
        %v1363 = vld [vmem:[%s1347 + $0x78] sm:$0xff]
        %v1364 = vld [vmem:[%s1347 + $0x80] sm:$0xff]
        %v1365 = vld [vmem:[%s1347 + $0x88] sm:$0xff]
        %v1366 = vld [vmem:[%s1347 + $0x90] sm:$0xff]
        %v1367 = vld [vmem:[%s1347 + $0x98] sm:$0xff]
        %v1368 = vld [vmem:[%s1347 + $0xa0] sm:$0xff]
        %v1369 = vld [vmem:[%s1347 + $0xa8] sm:$0xff]
        %v1370 = vld [vmem:[%s1347 + $0xb0] sm:$0xff]
        %v1371 = vld [vmem:[%s1347 + $0xb8] sm:$0xff]
        %v1372 = vld [vmem:[%s1347 + $0xc0] sm:$0xff]
        %v1373 = vld [vmem:[%s1347 + $0xc8] sm:$0xff]
        %v1374 = vld [vmem:[%s1347 + $0xd0] sm:$0xff]
        %v1375 = vld [vmem:[%s1347 + $0xd8] sm:$0xff]
        %v1376 = vld [vmem:[%s1347 + $0xe0] sm:$0xff]
        %v1377 = vld [vmem:[%s1347 + $0xe8] sm:$0xff]
        %v1378 = vld [vmem:[%s1347 + $0xf0] sm:$0xff]
        %v1379 = vld [vmem:[%s1347 + $0xf8] sm:$0xff]
        %v1412 = vunpack.c.l.b16 %v1348
        %v1413 = vunpack.c.h.b16 %v1348
        %v1414 = vunpack.c.l.b16 %v1349
        %v1415 = vunpack.c.h.b16 %v1349
        %v1416 = vunpack.c.l.b16 %v1350
        %v1417 = vunpack.c.h.b16 %v1350
        %v1418 = vunpack.c.l.b16 %v1351
        %v1419 = vunpack.c.h.b16 %v1351
        %v1420 = vunpack.c.l.b16 %v1352
        %v1421 = vunpack.c.h.b16 %v1352
        %v1422 = vunpack.c.l.b16 %v1353
        %v1423 = vunpack.c.h.b16 %v1353
        %v1424 = vunpack.c.l.b16 %v1354
        %v1425 = vunpack.c.h.b16 %v1354
        %v1426 = vunpack.c.l.b16 %v1355
        %v1427 = vunpack.c.h.b16 %v1355
        %v1428 = vunpack.c.l.b16 %v1356
        %v1429 = vunpack.c.h.b16 %v1356
        %v1430 = vunpack.c.l.b16 %v1357
        %v1431 = vunpack.c.h.b16 %v1357
        %v1432 = vunpack.c.l.b16 %v1358
        %v1433 = vunpack.c.h.b16 %v1358
        %v1434 = vunpack.c.l.b16 %v1359
        %v1435 = vunpack.c.h.b16 %v1359
        %v1436 = vunpack.c.l.b16 %v1360
        %v1437 = vunpack.c.h.b16 %v1360
        %v1438 = vunpack.c.l.b16 %v1361
        %v1439 = vunpack.c.h.b16 %v1361
        %v1440 = vunpack.c.l.b16 %v1362
        %v1441 = vunpack.c.h.b16 %v1362
        %v1442 = vunpack.c.l.b16 %v1363
        %v1443 = vunpack.c.h.b16 %v1363
        %v1444 = vunpack.c.l.b16 %v1364
        %v1445 = vunpack.c.h.b16 %v1364
        %v1446 = vunpack.c.l.b16 %v1365
        %v1447 = vunpack.c.h.b16 %v1365
        %v1448 = vunpack.c.l.b16 %v1366
        %v1449 = vunpack.c.h.b16 %v1366
        %v1450 = vunpack.c.l.b16 %v1367
        %v1451 = vunpack.c.h.b16 %v1367
        %v1452 = vunpack.c.l.b16 %v1368
        %v1453 = vunpack.c.h.b16 %v1368
        %v1454 = vunpack.c.l.b16 %v1369
        %v1455 = vunpack.c.h.b16 %v1369
        %v1456 = vunpack.c.l.b16 %v1370
        %v1457 = vunpack.c.h.b16 %v1370
        %v1458 = vunpack.c.l.b16 %v1371
        %v1459 = vunpack.c.h.b16 %v1371
        %v1460 = vunpack.c.l.b16 %v1372
        %v1461 = vunpack.c.h.b16 %v1372
        %v1462 = vunpack.c.l.b16 %v1373
        %v1463 = vunpack.c.h.b16 %v1373
        %v1464 = vunpack.c.l.b16 %v1374
        %v1465 = vunpack.c.h.b16 %v1374
        %v1466 = vunpack.c.l.b16 %v1375
        %v1467 = vunpack.c.h.b16 %v1375
        %v1468 = vunpack.c.l.b16 %v1376
        %v1469 = vunpack.c.h.b16 %v1376
        %v1470 = vunpack.c.l.b16 %v1377
        %v1471 = vunpack.c.h.b16 %v1377
        %v1472 = vunpack.c.l.b16 %v1378
        %v1473 = vunpack.c.h.b16 %v1378
        %v1474 = vunpack.c.l.b16 %v1379
        %v1475 = vunpack.c.h.b16 %v1379
        %v1476 = vpack.c.b16 %v1414, %v1412
        %v1477 = vpack.c.b16 %v1415, %v1413
        %v1478 = vpack.c.b16 %v1418, %v1416
        %v1479 = vpack.c.b16 %v1419, %v1417
        %v1480 = vpack.c.b16 %v1422, %v1420
        %v1481 = vpack.c.b16 %v1423, %v1421
        %v1482 = vpack.c.b16 %v1426, %v1424
        %v1483 = vpack.c.b16 %v1427, %v1425
        %v1484 = vpack.c.b16 %v1430, %v1428
        %v1485 = vpack.c.b16 %v1431, %v1429
        %v1486 = vpack.c.b16 %v1434, %v1432
        %v1487 = vpack.c.b16 %v1435, %v1433
        %v1488 = vpack.c.b16 %v1438, %v1436
        %v1489 = vpack.c.b16 %v1439, %v1437
        %v1490 = vpack.c.b16 %v1442, %v1440
        %v1491 = vpack.c.b16 %v1443, %v1441
        %v1492 = vpack.c.b16 %v1446, %v1444
        %v1493 = vpack.c.b16 %v1447, %v1445
        %v1494 = vpack.c.b16 %v1450, %v1448
        %v1495 = vpack.c.b16 %v1451, %v1449
        %v1496 = vpack.c.b16 %v1454, %v1452
        %v1497 = vpack.c.b16 %v1455, %v1453
        %v1498 = vpack.c.b16 %v1458, %v1456
        %v1499 = vpack.c.b16 %v1459, %v1457
        %v1500 = vpack.c.b16 %v1462, %v1460
        %v1501 = vpack.c.b16 %v1463, %v1461
        %v1502 = vpack.c.b16 %v1466, %v1464
        %v1503 = vpack.c.b16 %v1467, %v1465
        %v1504 = vpack.c.b16 %v1470, %v1468
        %v1505 = vpack.c.b16 %v1471, %v1469
        %v1506 = vpack.c.b16 %v1474, %v1472
        %v1507 = vpack.c.b16 %v1475, %v1473
        %1540 = vmatprep.subr.bf16.mxu0 %v1477
        %1541 = vmatpush1.bf16.msra.mxu0 %v1476
        %1542 = vmatprep.subr.bf16.mxu0 %v1479
        %1543 = vmatpush1.bf16.msra.mxu0 %v1478
        %1544 = vmatprep.subr.bf16.mxu0 %v1481
        %1545 = vmatpush1.bf16.msra.mxu0 %v1480
        %1546 = vmatprep.subr.bf16.mxu0 %v1483
        %1547 = vmatpush1.bf16.msra.mxu0 %v1482
        %1548 = vmatprep.subr.bf16.mxu0 %v1485
        %1549 = vmatpush1.bf16.msra.mxu0 %v1484
        %1550 = vmatprep.subr.bf16.mxu0 %v1487
        %1551 = vmatpush1.bf16.msra.mxu0 %v1486
        %1552 = vmatprep.subr.bf16.mxu0 %v1489
        %1553 = vmatpush1.bf16.msra.mxu0 %v1488
        %1554 = vmatprep.subr.bf16.mxu0 %v1491
        %1555 = vmatpush1.bf16.msra.mxu0 %v1490
        %1556 = vmatprep.subr.bf16.mxu0 %v1493
        %1557 = vmatpush1.bf16.msra.mxu0 %v1492
        %1558 = vmatprep.subr.bf16.mxu0 %v1495
        %1559 = vmatpush1.bf16.msra.mxu0 %v1494
        %1560 = vmatprep.subr.bf16.mxu0 %v1497
        %1561 = vmatpush1.bf16.msra.mxu0 %v1496
        %1562 = vmatprep.subr.bf16.mxu0 %v1499
        %1563 = vmatpush1.bf16.msra.mxu0 %v1498
        %1564 = vmatprep.subr.bf16.mxu0 %v1501
        %1565 = vmatpush1.bf16.msra.mxu0 %v1500
        %1566 = vmatprep.subr.bf16.mxu0 %v1503
        %1567 = vmatpush1.bf16.msra.mxu0 %v1502
        %1568 = vmatprep.subr.bf16.mxu0 %v1505
        %1569 = vmatpush1.bf16.msra.mxu0 %v1504
        %1570 = vmatprep.subr.bf16.mxu0 %v1507
        %1571 = vmatpush1.bf16.msra.mxu0 %v1506
        %1572 = vmatprep.mubr.bf16.mxu0 %v1346
        %1573 = vmatmul.mubr.bf16.gmra.mrb[0].mxu0 %v1345
        %v1574 = vpop.f32.mrb[0].mxu0
        %v1575 = vadd.f32 0.0, %v1574
        %v1576 = vpop.f32.mrb[0].mxu0
        %v1577 = vadd.f32 0.0, %v1576
        %v1578 = vpop.f32.mrb[0].mxu0
        %v1579 = vpop.f32.mrb[0].mxu0
        %1580 = vdwg.mxu0
        %v1581 = vadd.f32 %v1263, %v1575
        %v1582 = vadd.f32 %v1265, %v1577
        %v1583 = vld [vmem:[%s521] sm:$0xff]
        %v1584 = vld [vmem:[%s481] sm:$0xff]
        %v1585 = vld [vmem:[%s481 + $0x8] sm:$0xff]
        %vm1586 = vcmask 130048
        %v1588 = vsel %vm1586, %v1583, 0
        %1590 = vmatprep.subr.mxu0 0.0
        %1591 = vmatpush1.msra.mxu0 %v1584
        %1592 = vmatprep.subr.mxu0 0.0
        %1593 = vmatpush1.msra.mxu0 %v1585
        %1594 = vmatprep.subr.mxu0 0.0
        %1595 = vmatpush1.msra.mxu0 0.0
        %1596 = vmatprep.subr.mxu0 0.0
        %1597 = vmatpush1.msra.mxu0 0.0
        %1598 = vmatprep.subr.mxu0 0.0
        %1599 = vmatpush1.msra.mxu0 0.0
        %1600 = vmatprep.subr.mxu0 0.0
        %1601 = vmatpush1.msra.mxu0 0.0
        %1602 = vmatprep.subr.mxu0 0.0
        %1603 = vmatpush1.msra.mxu0 0.0
        %1604 = vmatprep.subr.mxu0 0.0
        %1605 = vmatpush1.msra.mxu0 0.0
        %1606 = vmatprep.subr.mxu0 0.0
        %1607 = vmatpush1.msra.mxu0 0.0
        %1608 = vmatprep.subr.mxu0 0.0
        %1609 = vmatpush1.msra.mxu0 0.0
        %1610 = vmatprep.subr.mxu0 0.0
        %1611 = vmatpush1.msra.mxu0 0.0
        %1612 = vmatprep.subr.mxu0 0.0
        %1613 = vmatpush1.msra.mxu0 0.0
        %1614 = vmatprep.subr.mxu0 0.0
        %1615 = vmatpush1.msra.mxu0 0.0
        %1616 = vmatprep.subr.mxu0 0.0
        %1617 = vmatpush1.msra.mxu0 0.0
        %1618 = vmatprep.subr.mxu0 0.0
        %1619 = vmatpush1.msra.mxu0 0.0
        %1620 = vmatprep.subr.mxu0 0.0
        %1621 = vmatpush1.msra.mxu0 0.0
        %1622 = vmatprep.subr.mxu0 0.0
        %1623 = vmatpush1.msra.mxu0 0.0
        %1624 = vmatprep.subr.mxu0 0.0
        %1625 = vmatpush1.msra.mxu0 0.0
        %1626 = vmatprep.subr.mxu0 0.0
        %1627 = vmatpush1.msra.mxu0 0.0
        %1628 = vmatprep.subr.mxu0 0.0
        %1629 = vmatpush1.msra.mxu0 0.0
        %1630 = vmatprep.subr.mxu0 0.0
        %1631 = vmatpush1.msra.mxu0 0.0
        %1632 = vmatprep.subr.mxu0 0.0
        %1633 = vmatpush1.msra.mxu0 0.0
        %1634 = vmatprep.subr.mxu0 0.0
        %1635 = vmatpush1.msra.mxu0 0.0
        %1636 = vmatprep.subr.mxu0 0.0
        %1637 = vmatpush1.msra.mxu0 0.0
        %1638 = vmatprep.subr.mxu0 0.0
        %1639 = vmatpush1.msra.mxu0 0.0
        %1640 = vmatprep.subr.mxu0 0.0
        %1641 = vmatpush1.msra.mxu0 0.0
        %1642 = vmatprep.subr.mxu0 0.0
        %1643 = vmatpush1.msra.mxu0 0.0
        %1644 = vmatprep.subr.mxu0 0.0
        %1645 = vmatpush1.msra.mxu0 0.0
        %1646 = vmatprep.subr.mxu0 0.0
        %1647 = vmatpush1.msra.mxu0 0.0
        %1648 = vmatprep.subr.mxu0 0.0
        %1649 = vmatpush1.msra.mxu0 0.0
        %1650 = vmatprep.subr.mxu0 0.0
        %1651 = vmatpush1.msra.mxu0 0.0
        %1652 = vmatprep.subr.mxu0 0.0
        %1653 = vmatpush1.msra.mxu0 0.0
        %1654 = vmatprep.mubr.f32.mxu0 0.0
        %1655 = vmatmul.mubr.f32.gmra.mrb[0].mxu0 %v1588
        %v1656 = vpop.f32.mrb[0].mxu0
        %v1657 = vadd.f32 0.0, %v1656
        %v1658 = vpop.f32.mrb[0].mxu0
        %1659 = vdwg.mxu0
        %v1660 = vpack.c.bf16 %v1657, %v1657
        %v1661 = vld [vmem:[#allocation14] sm:$0xff]
        %v1662 = vld [vmem:[#allocation14 + $0x8] sm:$0xff]
        %v1663 = vld [vmem:[#allocation14 + $0x10] sm:$0xff]
        %v1664 = vld [vmem:[#allocation14 + $0x18] sm:$0xff]
        %v1665 = vld [vmem:[#allocation14 + $0x20] sm:$0xff]
        %v1666 = vld [vmem:[#allocation14 + $0x28] sm:$0xff]
        %v1667 = vld [vmem:[#allocation14 + $0x30] sm:$0xff]
        %v1668 = vld [vmem:[#allocation14 + $0x38] sm:$0xff]
        %v1677 = vunpack.c.l.b16 %v1661
        %v1678 = vunpack.c.h.b16 %v1661
        %v1679 = vunpack.c.l.b16 %v1662
        %v1680 = vunpack.c.h.b16 %v1662
        %v1681 = vunpack.c.l.b16 %v1663
        %v1682 = vunpack.c.h.b16 %v1663
        %v1683 = vunpack.c.l.b16 %v1664
        %v1684 = vunpack.c.h.b16 %v1664
        %v1685 = vunpack.c.l.b16 %v1665
        %v1686 = vunpack.c.h.b16 %v1665
        %v1687 = vunpack.c.l.b16 %v1666
        %v1688 = vunpack.c.h.b16 %v1666
        %v1689 = vunpack.c.l.b16 %v1667
        %v1690 = vunpack.c.h.b16 %v1667
        %v1691 = vunpack.c.l.b16 %v1668
        %v1692 = vunpack.c.h.b16 %v1668
        %v1693 = vpack.c.b16 %v1679, %v1677
        %v1694 = vpack.c.b16 %v1680, %v1678
        %v1695 = vpack.c.b16 %v1683, %v1681
        %v1696 = vpack.c.b16 %v1684, %v1682
        %v1697 = vpack.c.b16 %v1687, %v1685
        %v1698 = vpack.c.b16 %v1688, %v1686
        %v1699 = vpack.c.b16 %v1691, %v1689
        %v1700 = vpack.c.b16 %v1692, %v1690
        %vm1709 = vcmask 523264
        %v1711 = vsel %vm1709, %v1660, 0
        %1713 = vmatprep.subr.bf16.mxu0 %v1694
        %1714 = vmatpush1.bf16.msra.mxu0 %v1693
        %1715 = vmatprep.subr.bf16.mxu0 %v1696
        %1716 = vmatpush1.bf16.msra.mxu0 %v1695
        %1717 = vmatprep.subr.bf16.mxu0 %v1698
        %1718 = vmatpush1.bf16.msra.mxu0 %v1697
        %1719 = vmatprep.subr.bf16.mxu0 %v1700
        %1720 = vmatpush1.bf16.msra.mxu0 %v1699
        %1721 = vmatprep.subr.bf16.mxu0 0
        %1722 = vmatpush1.bf16.msra.mxu0 0
        %1723 = vmatprep.subr.bf16.mxu0 0
        %1724 = vmatpush1.bf16.msra.mxu0 0
        %1725 = vmatprep.subr.bf16.mxu0 0
        %1726 = vmatpush1.bf16.msra.mxu0 0
        %1727 = vmatprep.subr.bf16.mxu0 0
        %1728 = vmatpush1.bf16.msra.mxu0 0
        %1729 = vmatprep.subr.bf16.mxu0 0
        %1730 = vmatpush1.bf16.msra.mxu0 0
        %1731 = vmatprep.subr.bf16.mxu0 0
        %1732 = vmatpush1.bf16.msra.mxu0 0
        %1733 = vmatprep.subr.bf16.mxu0 0
        %1734 = vmatpush1.bf16.msra.mxu0 0
        %1735 = vmatprep.subr.bf16.mxu0 0
        %1736 = vmatpush1.bf16.msra.mxu0 0
        %1737 = vmatprep.subr.bf16.mxu0 0
        %1738 = vmatpush1.bf16.msra.mxu0 0
        %1739 = vmatprep.subr.bf16.mxu0 0
        %1740 = vmatpush1.bf16.msra.mxu0 0
        %1741 = vmatprep.subr.bf16.mxu0 0
        %1742 = vmatpush1.bf16.msra.mxu0 0
        %1743 = vmatprep.subr.bf16.mxu0 0
        %1744 = vmatpush1.bf16.msra.mxu0 0
        %1745 = vmatprep.mubr.bf16.mxu0 0
        %1746 = vmatmul.mubr.bf16.gmra.mrb[0].mxu0 %v1711
        %v1747 = vpop.f32.mrb[0].mxu0
        %v1748 = vadd.f32 0.0, %v1747
        %v1749 = vpop.f32.mrb[0].mxu0
        %v1750 = vadd.f32 0.0, %v1749
        %v1751 = vpop.f32.mrb[0].mxu0
        %v1752 = vpop.f32.mrb[0].mxu0
        %1753 = vdwg.mxu0
        %v1754 = vadd.f32 %v1581, %v1748
        %v1755 = vadd.f32 %v1582, %v1750
        %v1756 = vld [vmem:[#allocation15] sm:$0x3]
        %v1758 = vlaneseq
        %v1759 = vshrl.u32 %v1758, 7
        %v1760 = vsub.s32 0, %v1759
        %v1761 = vrot.slane %v1756, %v1760
        %v1762 = vlaneseq
        %v1763 = vshrl.u32 %v1762, 7
        %v1764 = vsub.s32 1, %v1763
        %v1765 = vrot.slane %v1756, %v1764
        %v1768 = vadd.f32 %v1754, %v1761
        %v1769 = vadd.f32 %v1755, %v1765
        %1770 = vst [vmem:[%s588] sm:$0xff] %v1768
        %1771 = vst [vmem:[%s588 + $0x8] sm:$0xff] %v1769
        %s1772 = sand.u32 %s274, 1
        %s1773 = scalar_lea.sflag [#allocation4], %s1772
        %s1774 = sand.u32 %s274, 1
        %s1775 = smul.addr %s1774, 16
        %s1776 = scalar_lea.vmem [#allocation16], %s1775
        // Predicated region
        $region93: #{g_resblock_cond_forward.3} parent=55 // pred_check
          %p1777 = pneg %p284
        $region94: #{g_resblock_cond_forward.3} parent=55 // pred_check_branch
          %1779 = sbr.rel (%p1777) target = $region96
        $region95: #{g_resblock_cond_forward.3} parent=55 // pred_region
          %s1781 = ssub.s32 256, 256
          %1782 = vsyncadd %s1773, %s1781
          %s1783 = smul.addr %s38, 2
          %s1784 = smul.addr %s37, 8
          %s1785 = sadd.s32 %s1783, %s1784
          %s1786 = smul.addr %s1785, 128
          %s1787 = scalar_lea.hbm %s9, %s1786
          %s1789 = sshll.u32 %s1776, 4
          %s1790 = int_to_ptr.vmem [resolvable:$true] %s1789
          %1792 = dma.vmem_to_hbm [thread:$0]  %s1790, 256, %s1787, %s1773
        $region96: #{g_resblock_cond_forward.3} parent=55 // pred_fallthru
          _
      $region56: #{g_resblock_cond_forward.3} parent=5 // pred_fallthru
        _
      %p1793 = scmp.le.s32.totalorder 2, %s28
      // Predicated region
      $region97: #{g_resblock_cond_forward.3} parent=5 // pred_check
        %p1794 = pneg %p1793
      $region98: #{g_resblock_cond_forward.3} parent=5 // pred_check_branch
        %1796 = sbr.rel (%p1794) target = $region100
      $region99: #{g_resblock_cond_forward.3} parent=5 // pred_region
        %s1797 = ssub.s32 %s28, 2
        // Predicated region
        $region101: #{g_resblock_cond_forward.3} parent=99 // pred_check
          %p1798 = pneg %p290
        $region102: #{g_resblock_cond_forward.3} parent=99 // pred_check_branch
          %1800 = sbr.rel (%p1798) target = $region104
        $region103: #{g_resblock_cond_forward.3} parent=99 // pred_region
          %s1801 = sand.u32 %s275, 1
          %s1802 = scalar_lea.sflag [#allocation4], %s1801
          %s1803 = sand.u32 %s275, 1
          %s1804 = smul.addr %s1803, 16
          %s1805 = scalar_lea.vmem [#allocation16], %s1804
          %1806 = dma.done %s1802, 256
        $region104: #{g_resblock_cond_forward.3} parent=99 // pred_fallthru
          _
      $region100: #{g_resblock_cond_forward.3} parent=5 // pred_fallthru
        _
    $region6: #{g_resblock_cond_forward.3} parent=1 // loop_footer
      %s32 = sadd.s32 1, %s28
    $region7: #{g_resblock_cond_forward.3} parent=1 // loop_footer_branch
      %27 = sbr.rel target = $region3
    $region8: #{g_resblock_cond_forward.3} parent=1 // loop_exit
      _
    %1807 = vsyncpa [#allocation3], 1
    %s1808 = scalar_lea.sflag [#allocation3], 1
    %1809 = vsyncpa %s1808, 1
    %1810 = vsyncpa [#allocation6], 1
    %s1811 = scalar_lea.sflag [#allocation6], 1
    %1812 = vsyncpa %s1811, 1
    %1813 = vsyncpa [#allocation9], 1
    %s1814 = scalar_lea.sflag [#allocation9], 1
    %1815 = vsyncpa %s1814, 1
    %1816 = vsyncpa [#allocation12], 1
    %1817 = vsyncpa [#allocation4], 1
    %s1818 = scalar_lea.sflag [#allocation4], 1
    %1819 = vsyncpa %s1818, 1

</llo_original>
